<compile_context>
chip_gen: v7x
topology: tpu7x:2x2x1
jax: 0.10.0
libtpu: 0.0.40
codegen_flags: <defaults>
</compile_context>

<pallas_src>
import math
import functools

import jax
import jax.numpy as jnp
from jax.experimental import pallas as pl
from jax.experimental.pallas import tpu as pltpu


# ----------------------------- small helpers --------------------------------

def _round_up(x, m):
    return ((x + m - 1) // m) * m


def _pick_batch_tile(B, S, target_rows=128):
    # aim for ~target_rows MXU rows per grid step, but keep >= 2 grid steps
    # when B > 1 so both v7x TensorCores get work.
    bt = max(1, min(B, target_rows // max(S, 1)))
    while B % bt:
        bt -= 1
    if B > 1 and B // bt < 2:
        bt = max(d for d in range(1, B) if B % d == 0)
    return bt


def _row_tile(M, target=256):
    if M <= target:
        return M
    t = (target // 8) * 8
    while t >= 8:
        if M % t == 0:
            return t
        t -= 8
    return M


def _vmem_limit(n_bytes):
    # floor = smallest default scoped limit (v5e, 16 MiB); cap = v7x physical.
    return int(min(max(2 * n_bytes, 16 << 20), 64 << 20))


def _nbytes(*arrays):
    return sum(int(a.size) * a.dtype.itemsize for a in arrays)


# ----------------------------- in-kernel helpers ----------------------------

def _mm(a, w):
    # bf16 MXU matmul with f32 accumulation
    return jnp.dot(a.astype(jnp.bfloat16), w.astype(jnp.bfloat16),
                   preferred_element_type=jnp.float32)


def _layer_norm(y, g, b):
    # post-LN, eps=1e-5, biased variance (matches torch.nn.LayerNorm), f32 math
    mean = jnp.mean(y, axis=-1, keepdims=True)
    var = jnp.mean((y - mean) ** 2, axis=-1, keepdims=True)
    return (y - mean) * jax.lax.rsqrt(var + 1e-5) * g + b


def _mha(xq, kv, w_ref, b_ref, bt, sq, sk, n_heads, causal):
    # xq: (bt*sq, D) bf16 ; kv: (bt*sk, D) bf16
    # w_ref: (4, D, D) bf16 = [Wq(pre-scaled 1/sqrt(dk)), Wk, Wv, Wo]
    # b_ref: (4, 1, D) f32
    D = w_ref.shape[-1]
    dk = D // n_heads
    # full-width projections over all bt*s rows (good MXU row occupancy);
    # cast once to bf16 so every later matmul operand is already narrow.
    q = (_mm(xq, w_ref[0]) + b_ref[0]).astype(jnp.bfloat16)
    k = (_mm(kv, w_ref[1]) + b_ref[1]).astype(jnp.bfloat16)
    v = (_mm(kv, w_ref[2]) + b_ref[2]).astype(jnp.bfloat16)
    wo = w_ref[3]

    if causal:  # mask built once, outside the per-head loop (f32, additive)
        row = jax.lax.broadcasted_iota(jnp.int32, (sq, sk), 0)
        col = jax.lax.broadcasted_iota(jnp.int32, (sq, sk), 1)
        neg = jnp.where(row >= col, 0.0, -1e9).astype(jnp.float32)

    # TODO(synk): for long sequences switch to flash-style Sk-tiling with an
    # online softmax so the (sq, sk) score matrix never fully materializes.
    outs = []
    for b in range(bt):                       # static, bt is small
        qb = q[b * sq:(b + 1) * sq, :]
        kb = k[b * sk:(b + 1) * sk, :]
        vb = v[b * sk:(b + 1) * sk, :]
        acc = jnp.zeros((sq, D), jnp.float32)
        for h in range(n_heads):              # static unroll
            lo = h * dk
            s = jax.lax.dot_general(
                qb[:, lo:lo + dk], kb[:, lo:lo + dk],
                (((1,), (1,)), ((), ())), preferred_element_type=jnp.float32)
            if causal:
                s = s + neg
            s = s - jnp.max(s, axis=-1, keepdims=True)
            p = jnp.exp(s)
            p = p * pl.reciprocal(jnp.sum(p, axis=-1, keepdims=True),
                                  approx=True)
            hv = jnp.dot(p.astype(jnp.bfloat16), vb[:, lo:lo + dk],
                         preferred_element_type=jnp.float32)
            # fold the head concat into the output projection:
            #   concat(heads) @ Wo == sum_h head_h @ Wo[h*dk:(h+1)*dk, :]
            acc = acc + jnp.dot(hv.astype(jnp.bfloat16), wo[lo:lo + dk, :],
                                preferred_element_type=jnp.float32)
        outs.append(acc)
    out = outs[0] if bt == 1 else jnp.concatenate(outs, axis=0)
    return out + b_ref[3]


# ----------------------------- Pallas kernels ------------------------------

def _attn_block_kernel(x_ref, enc_ref, ws_ref, bs_ref, wc_ref, bc_ref,
                       lng_ref, lnb_ref, o_ref, *, n_heads):
    Bt, S, D = x_ref.shape
    S_src = enc_ref.shape[1]
    x_bf = x_ref[...].reshape(Bt * S, D)            # bf16 residual stream
    enc_bf = enc_ref[...].reshape(Bt * S_src, D)    # bf16

    # masked self-attention + add & norm
    y = _mha(x_bf, x_bf, ws_ref, bs_ref, Bt, S, S, n_heads, causal=True)
    x1 = _layer_norm(y + x_bf.astype(jnp.float32), lng_ref[0], lnb_ref[0])

    # encoder-decoder attention + add & norm (no source mask)
    y = _mha(x1.astype(jnp.bfloat16), enc_bf, wc_ref, bc_ref,
             Bt, S, S_src, n_heads, causal=False)
    x2 = _layer_norm(y + x1, lng_ref[1], lnb_ref[1])

    o_ref[...] = x2.reshape(Bt, S, D).astype(o_ref.dtype)


def attn_block(lp, x, enc, n_heads):
    B, S, D = x.shape
    S_src = enc.shape[1]
    Bt = _pick_batch_tile(B, S)
    kern = functools.partial(_attn_block_kernel, n_heads=n_heads)
    c3 = lambda b: (0, 0, 0)
    single = pl.Buffered(1)          # grid-invariant blocks: no double-buffer
    w_bytes = _nbytes(lp["w_self"], lp["b_self"], lp["w_cross"], lp["b_cross"],
                      lp["attn_ln_g"], lp["attn_ln_b"])
    act_bytes = 2 * 2 * (2 * Bt * S * D + Bt * S_src * D)   # bf16, dbl-buffered
    return pl.pallas_call(
        kern,
        grid=(B // Bt,),
        in_specs=[
            pl.BlockSpec((Bt, S, D), lambda b: (b, 0, 0)),            # x
            pl.BlockSpec((Bt, S_src, D), lambda b: (b, 0, 0)),        # enc_out
            pl.BlockSpec((4, D, D), c3, pipeline_mode=single),        # self W
            pl.BlockSpec((4, 1, D), c3, pipeline_mode=single),        # self b
            pl.BlockSpec((4, D, D), c3, pipeline_mode=single),        # cross W
            pl.BlockSpec((4, 1, D), c3, pipeline_mode=single),        # cross b
            pl.BlockSpec((2, 1, D), c3, pipeline_mode=single),        # LN gamma
            pl.BlockSpec((2, 1, D), c3, pipeline_mode=single),        # LN beta
        ],
        out_specs=pl.BlockSpec((Bt, S, D), lambda b: (b, 0, 0)),
        out_shape=jax.ShapeDtypeStruct((B, S, D), jnp.bfloat16),
        compiler_params=pltpu.CompilerParams(
            dimension_semantics=("parallel",),
            vmem_limit_bytes=_vmem_limit(w_bytes + act_bytes)),
    )(x, enc, lp["w_self"], lp["b_self"], lp["w_cross"], lp["b_cross"],
      lp["attn_ln_g"], lp["attn_ln_b"])


def _ffn_block_kernel(x_ref, w1_ref, b1_ref, w2_ref, b2_ref, g_ref, bb_ref,
                      o_ref, *, f_chunk):
    x_bf = x_ref[...]                                # (tm, D) bf16
    tm, D = x_bf.shape
    F = w1_ref.shape[1]
    # FFN contraction tiled over F chunks so the (tm, F) hidden never has to
    # be fully resident at large F.
    y = jnp.zeros((tm, D), jnp.float32) + b2_ref[...]
    for c in range(0, F, f_chunk):                   # static unroll
        h = jnp.maximum(_mm(x_bf, w1_ref[:, c:c + f_chunk])
                        + b1_ref[:, c:c + f_chunk], 0.0)
        y = y + jnp.dot(h.astype(jnp.bfloat16), w2_ref[c:c + f_chunk, :],
                        preferred_element_type=jnp.float32)
    out = _layer_norm(y + x_bf.astype(jnp.float32), g_ref[...], bb_ref[...])
    o_ref[...] = out.astype(o_ref.dtype)


def ffn_block(lp, x2d):
    M, D = x2d.shape
    F = lp["w1"].shape[1]
    tm = _row_tile(M)
    f_chunk = F if (F <= 512 or F % 512) else 512
    kern = functools.partial(_ffn_block_kernel, f_chunk=f_chunk)
    c2 = lambda r: (0, 0)
    single = pl.Buffered(1)
    w_bytes = _nbytes(lp["w1"], lp["b1"], lp["w2"], lp["b2"],
                      lp["ffn_ln_g"], lp["ffn_ln_b"])
    act_bytes = 2 * 2 * (2 * tm * D) + 4 * tm * f_chunk
    return pl.pallas_call(
        kern,
        grid=(M // tm,),
        in_specs=[
            pl.BlockSpec((tm, D), lambda r: (r, 0)),                  # x rows
            pl.BlockSpec((D, F), c2, pipeline_mode=single),           # W1
            pl.BlockSpec((1, F), c2, pipeline_mode=single),           # b1
            pl.BlockSpec((F, D), c2, pipeline_mode=single),           # W2
            pl.BlockSpec((1, D), c2, pipeline_mode=single),           # b2
            pl.BlockSpec((1, D), c2, pipeline_mode=single),           # LN gamma
            pl.BlockSpec((1, D), c2, pipeline_mode=single),           # LN beta
        ],
        out_specs=pl.BlockSpec((tm, D), lambda r: (r, 0)),
        out_shape=jax.ShapeDtypeStruct((M, D), jnp.bfloat16),
        compiler_params=pltpu.CompilerParams(
            dimension_semantics=("parallel",),
            vmem_limit_bytes=_vmem_limit(w_bytes + act_bytes)),
    )(x2d, lp["w1"], lp["b1"], lp["w2"], lp["b2"],
      lp["ffn_ln_g"], lp["ffn_ln_b"])


def _fc_kernel(x_ref, w_ref, b_ref, o_ref):
    o_ref[...] = (_mm(x_ref[...], w_ref[...]) + b_ref[...]).astype(o_ref.dtype)


def fc_projection(x2d, w_bf16, b_row, *, tm=256, tn=512):
    # final vocab projection: lane-dense padded vocab, rows padded up to the
    # row tile (no giant-single-tile fallback).  Vocab tiles sit on the SLOW
    # grid axis so each (K, tn) weight block is fetched once and only the
    # (much smaller) activation stream re-streams.
    M, K = x2d.shape
    N = w_bf16.shape[1]                       # already a multiple of 128
    tm = min(tm, _round_up(M, 8))
    Mp = _round_up(M, tm)
    if Mp != M:
        x2d = jnp.pad(x2d, ((0, Mp - M), (0, 0)))
    tn = min(tn, N)
    if N % tn:
        tn = math.gcd(N, tn)
    w_bytes = 2 * (K * tn * 2 + tn * 4)
    act_bytes = 2 * (tm * K * 2 + tm * tn * 4)
    return pl.pallas_call(
        _fc_kernel,
        grid=(N // tn, Mp // tm),             # vocab slow, rows fast
        in_specs=[
            pl.BlockSpec((tm, K), lambda v, r: (r, 0)),
            pl.BlockSpec((K, tn), lambda v, r: (0, v)),
            pl.BlockSpec((1, tn), lambda v, r: (0, v)),
        ],
        out_specs=pl.BlockSpec((tm, tn), lambda v, r: (r, v)),
        out_shape=jax.ShapeDtypeStruct((Mp, N), jnp.float32),
        compiler_params=pltpu.CompilerParams(
            dimension_semantics=("parallel", "parallel"),
            vmem_limit_bytes=_vmem_limit(w_bytes + act_bytes)),
    )(x2d, w_bf16, b_row)


# ------------------------------- parameters ---------------------------------

def _linear_wb(key, d_in, d_out):
    # torch nn.Linear(d_in, d_out) weight is (out, in); keep it pre-transposed
    w = jax.random.normal(key, (d_in, d_out), jnp.float32) * 0.02
    b = jnp.zeros((1, d_out), jnp.float32)
    return w, b


def _attn_params(keys, d_model, n_heads):
    scale = 1.0 / math.sqrt(d_model // n_heads)
    ws, bs = [], []
    for i, k in enumerate(keys):              # q, k, v, o
        w, b = _linear_wb(k, d_model, d_model)
        if i == 0:                            # fold 1/sqrt(dk) into Q proj
            w, b = w * scale, b * scale
        ws.append(w)
        bs.append(b)
    return (jnp.stack(ws).astype(jnp.bfloat16),   # (4, D, D) bf16
            jnp.stack(bs))                        # (4, 1, D) f32


def init_params(key, vocab, max_len, d_model, d_ffn, n_heads, n_layer):
    keys = list(jax.random.split(key, n_layer * 10 + 2))
    it = iter(keys)

    params = {}
    params["tok_emb"] = (
        jax.random.normal(next(it), (vocab, d_model), jnp.float32) * 0.02)

    # sinusoidal positional encoding (max_len, d_model)
    pos = jnp.arange(max_len, dtype=jnp.float32)[:, None]
    i = jnp.arange(0, d_model, 2, dtype=jnp.float32)
    angle = pos / jnp.power(10000.0, i / d_model)
    pe = jnp.zeros((max_len, d_model), jnp.float32)
    pe = pe.at[:, 0::2].set(jnp.sin(angle))
    pe = pe.at[:, 1::2].set(jnp.cos(angle))
    params["pos_enc"] = pe

    layers = []
    for _ in range(n_layer):
        w_self, b_self = _attn_params([next(it) for _ in range(4)],
                                      d_model, n_heads)
        w_cross, b_cross = _attn_params([next(it) for _ in range(4)],
                                        d_model, n_heads)
        w1, b1 = _linear_wb(next(it), d_model, d_ffn)
        w2, b2 = _linear_wb(next(it), d_ffn, d_model)
        layers.append({
            "w_self": w_self, "b_self": b_self,
            "w_cross": w_cross, "b_cross": b_cross,
            "attn_ln_g": jnp.ones((2, 1, d_model), jnp.float32),
            "attn_ln_b": jnp.zeros((2, 1, d_model), jnp.float32),
            "w1": w1.astype(jnp.bfloat16), "b1": b1,
            "w2": w2.astype(jnp.bfloat16), "b2": b2,
            "ffn_ln_g": jnp.ones((1, d_model), jnp.float32),
            "ffn_ln_b": jnp.zeros((1, d_model), jnp.float32),
        })
    params["layers"] = layers

    # final projection, vocab padded up to a multiple of 128 (lane-dense store)
    vocab_pad = _round_up(vocab, 128)
    w_fc, b_fc = _linear_wb(next(it), d_model, vocab)
    params["fc_w"] = jnp.pad(
        w_fc, ((0, 0), (0, vocab_pad - vocab))).astype(jnp.bfloat16)
    params["fc_b"] = jnp.pad(b_fc, ((0, 0), (0, vocab_pad - vocab)))
    return params


# ------------------------------- forward pass --------------------------------

def decoder_forward(params, dec_ids, enc_out, n_heads):
    B, S = dec_ids.shape
    d_model = enc_out.shape[-1]
    vocab = params["tok_emb"].shape[0]

    # TODO(synk): token-embedding gather (data-dependent row lookup) is left to
    # XLA; a Pallas scalar-prefetch DMA gather adds complexity for little gain.
    # Embedding / attention / FFN dropout are identity (inference semantics).
    x = (params["tok_emb"][dec_ids]
         + params["pos_enc"][:S][None, :, :]).astype(jnp.bfloat16)
    enc_bf = enc_out.astype(jnp.bfloat16)

    for lp in params["layers"]:
        x = attn_block(lp, x, enc_bf, n_heads)                      # bf16
        x = ffn_block(lp, x.reshape(B * S, d_model)).reshape(B, S, d_model)

    logits = fc_projection(x.reshape(B * S, d_model),
                           params["fc_w"], params["fc_b"])
    return logits[:B * S, :vocab].reshape(B, S, vocab)


# ---------------------------------- main ------------------------------------

if __name__ == "__main__":
    B, S_tgt, S_src = 2, 8, 8
    d_model, d_ffn, n_heads, n_layer = 32, 64, 4, 2
    vocab, max_len = 50, 16

    root = jax.random.PRNGKey(0)
    k_param, k_ids, k_enc = jax.random.split(root, 3)

    params = init_params(k_param, vocab, max_len, d_model, d_ffn,
                         n_heads, n_layer)
    dec_ids = jax.random.randint(k_ids, (B, S_tgt), 0, vocab, dtype=jnp.int32)
    enc_out = jax.random.normal(k_enc, (B, S_src, d_model), jnp.float32)

    fwd = jax.jit(functools.partial(decoder_forward, n_heads=n_heads))
    out = fwd(params, dec_ids, enc_out)
    out = jax.block_until_ready(out)

    assert out.shape == (B, S_tgt, vocab)
    assert out.dtype == jnp.float32
    assert bool(jnp.all(jnp.isfinite(out)))
    print("KERNEL_OK")
</pallas_src>

<mosaic_0001>
module attributes {stable_mosaic.version = 11 : i64} {
  func.func @_fc_kernel(%arg0: i32, %arg1: i32, %arg2: memref<16x32xbf16, #tpu.memory_space<vmem>>, %arg3: memref<32x128xbf16, #tpu.memory_space<vmem>>, %arg4: memref<1x128xf32, #tpu.memory_space<vmem>>, %arg5: memref<16x128xf32, #tpu.memory_space<vmem>>) attributes {dimension_semantics = [#tpu.dimension_semantics<parallel>, #tpu.dimension_semantics<parallel>], iteration_bounds = array<i64: 1, 1>, scalar_prefetch = 0 : i64, scratch_operands = 0 : i64, tpu.core_type = #tpu.core_type<tc>, window_params = [{transform_indices = @transform_0, window_bounds = array<i64: 16, 32>}, {transform_indices = @transform_1, window_bounds = array<i64: 32, 128>}, {transform_indices = @transform_2, window_bounds = array<i64: 1, 128>}, {transform_indices = @transform_3, window_bounds = array<i64: 16, 128>}]} {
    %c0 = arith.constant 0 : index
    %c0_0 = arith.constant 0 : index
    %0 = vector.load %arg2[%c0, %c0_0] : memref<16x32xbf16, #tpu.memory_space<vmem>>, vector<16x32xbf16>
    %c0_1 = arith.constant 0 : index
    %c0_2 = arith.constant 0 : index
    %1 = vector.load %arg3[%c0_1, %c0_2] : memref<32x128xbf16, #tpu.memory_space<vmem>>, vector<32x128xbf16>
    %cst = arith.constant dense<0.000000e+00> : vector<16x128xf32>
    %2 = tpu.matmul %0, %1, %cst {dimension_numbers = #tpu.dot_dimension_numbers<[1], [0], [0], [1], [0, 0, 1, 1], [], []>} : vector<16x32xbf16>, vector<32x128xbf16>, vector<16x128xf32> -> vector<16x128xf32>
    %c0_3 = arith.constant 0 : index
    %c0_4 = arith.constant 0 : index
    %3 = vector.load %arg4[%c0_3, %c0_4] : memref<1x128xf32, #tpu.memory_space<vmem>>, vector<1x128xf32>
    %4 = vector.broadcast %3 : vector<1x128xf32> to vector<16x128xf32>
    %5 = arith.addf %2, %4 : vector<16x128xf32>
    %c0_5 = arith.constant 0 : index
    %c0_6 = arith.constant 0 : index
    %6 = vector.load %arg5[%c0_5, %c0_6] : memref<16x128xf32, #tpu.memory_space<vmem>>, vector<16x128xf32>
    tpu.vector_store %arg5[%c0_5, %c0_6], %5 {strides = array<i32>} : memref<16x128xf32, #tpu.memory_space<vmem>>, vector<16x128xf32>,
    return
  }
  func.func @transform_0(%arg0: i32, %arg1: i32) -> (i32, i32) {
    %c0_i32 = arith.constant 0 : i32
    %c0_i32_0 = arith.constant 0 : i32
    return %arg1, %c0_i32 : i32, i32
  }
  func.func @transform_1(%arg0: i32, %arg1: i32) -> (i32, i32) {
    %c0_i32 = arith.constant 0 : i32
    %c0_i32_0 = arith.constant 0 : i32
    return %c0_i32, %arg0 : i32, i32
  }
  func.func @transform_2(%arg0: i32, %arg1: i32) -> (i32, i32) {
    %c0_i32 = arith.constant 0 : i32
    %c0_i32_0 = arith.constant 0 : i32
    return %c0_i32, %arg0 : i32, i32
  }
  func.func @transform_3(%arg0: i32, %arg1: i32) -> (i32, i32) {
    %c0_i32 = arith.constant 0 : i32
    return %arg1, %arg0 : i32, i32
  }
}

module attributes {stable_mosaic.version = 11 : i64} {
  func.func @_ffn_block_kernel(%arg0: i32, %arg1: memref<16x32xbf16, #tpu.memory_space<vmem>>, %arg2: memref<32x64xbf16, #tpu.memory_space<vmem>>, %arg3: memref<1x64xf32, #tpu.memory_space<vmem>>, %arg4: memref<64x32xbf16, #tpu.memory_space<vmem>>, %arg5: memref<1x32xf32, #tpu.memory_space<vmem>>, %arg6: memref<1x32xf32, #tpu.memory_space<vmem>>, %arg7: memref<1x32xf32, #tpu.memory_space<vmem>>, %arg8: memref<16x32xbf16, #tpu.memory_space<vmem>>) attributes {dimension_semantics = [#tpu.dimension_semantics<parallel>], iteration_bounds = array<i64: 1>, scalar_prefetch = 0 : i64, scratch_operands = 0 : i64, tpu.core_type = #tpu.core_type<tc>, window_params = [{transform_indices = @transform_0, window_bounds = array<i64: 16, 32>}, {pipeline_mode = #tpu.pipeline_mode<synchronous>, transform_indices = @transform_1, window_bounds = array<i64: 32, 64>}, {pipeline_mode = #tpu.pipeline_mode<synchronous>, transform_indices = @transform_2, window_bounds = array<i64: 1, 64>}, {pipeline_mode = #tpu.pipeline_mode<synchronous>, transform_indices = @transform_3, window_bounds = array<i64: 64, 32>}, {pipeline_mode = #tpu.pipeline_mode<synchronous>, transform_indices = @transform_4, window_bounds = array<i64: 1, 32>}, {pipeline_mode = #tpu.pipeline_mode<synchronous>, transform_indices = @transform_5, window_bounds = array<i64: 1, 32>}, {pipeline_mode = #tpu.pipeline_mode<synchronous>, transform_indices = @transform_6, window_bounds = array<i64: 1, 32>}, {transform_indices = @transform_7, window_bounds = array<i64: 16, 32>}]} {
    %c0 = arith.constant 0 : index
    %c0_0 = arith.constant 0 : index
    %0 = vector.load %arg1[%c0, %c0_0] : memref<16x32xbf16, #tpu.memory_space<vmem>>, vector<16x32xbf16>
    %cst = arith.constant 0.000000e+00 : f32
    %1 = vector.broadcast %cst : f32 to vector<16x32xf32>
    %c0_1 = arith.constant 0 : index
    %c0_2 = arith.constant 0 : index
    %2 = vector.load %arg5[%c0_1, %c0_2] : memref<1x32xf32, #tpu.memory_space<vmem>>, vector<1x32xf32>
    %3 = vector.broadcast %2 : vector<1x32xf32> to vector<16x32xf32>
    %4 = arith.addf %1, %3 : vector<16x32xf32>
    %c0_3 = arith.constant 0 : index
    %c0_4 = arith.constant 0 : index
    %5 = vector.load %arg2[%c0_3, %c0_4] : memref<32x64xbf16, #tpu.memory_space<vmem>>, vector<32x64xbf16>
    %cst_5 = arith.constant dense<0.000000e+00> : vector<16x64xf32>
    %6 = tpu.matmul %0, %5, %cst_5 {dimension_numbers = #tpu.dot_dimension_numbers<[1], [0], [0], [1], [0, 0, 1, 1], [], []>} : vector<16x32xbf16>, vector<32x64xbf16>, vector<16x64xf32> -> vector<16x64xf32>
    %c0_6 = arith.constant 0 : index
    %c0_7 = arith.constant 0 : index
    %7 = vector.load %arg3[%c0_6, %c0_7] : memref<1x64xf32, #tpu.memory_space<vmem>>, vector<1x64xf32>
    %8 = vector.broadcast %7 : vector<1x64xf32> to vector<16x64xf32>
    %9 = arith.addf %6, %8 : vector<16x64xf32>
    %cst_8 = arith.constant 0.000000e+00 : f32
    %10 = vector.broadcast %cst_8 : f32 to vector<16x64xf32>
    %11 = arith.maximumf %9, %10 : vector<16x64xf32>
    %12 = arith.truncf %11 : vector<16x64xf32> to vector<16x64xbf16>
    %c0_9 = arith.constant 0 : index
    %c0_10 = arith.constant 0 : index
    %13 = vector.load %arg4[%c0_9, %c0_10] : memref<64x32xbf16, #tpu.memory_space<vmem>>, vector<64x32xbf16>
    %cst_11 = arith.constant dense<0.000000e+00> : vector<16x32xf32>
    %14 = tpu.matmul %12, %13, %cst_11 {dimension_numbers = #tpu.dot_dimension_numbers<[1], [0], [0], [1], [0, 0, 1, 1], [], []>} : vector<16x64xbf16>, vector<64x32xbf16>, vector<16x32xf32> -> vector<16x32xf32>
    %15 = arith.addf %4, %14 : vector<16x32xf32>
    %16 = arith.extf %0 : vector<16x32xbf16> to vector<16x32xf32>
    %17 = arith.addf %15, %16 : vector<16x32xf32>
    %c0_12 = arith.constant 0 : index
    %c0_13 = arith.constant 0 : index
    %18 = vector.load %arg6[%c0_12, %c0_13] : memref<1x32xf32, #tpu.memory_space<vmem>>, vector<1x32xf32>
    %c0_14 = arith.constant 0 : index
    %c0_15 = arith.constant 0 : index
    %19 = vector.load %arg7[%c0_14, %c0_15] : memref<1x32xf32, #tpu.memory_space<vmem>>, vector<1x32xf32>
    %cst_16 = arith.constant dense<0.000000e+00> : vector<16xf32>
    %20 = vector.multi_reduction <add>, %17, %cst_16 [1] : vector<16x32xf32> to vector<16xf32>
    %21 = vector.shape_cast %20 : vector<16xf32> to vector<16x1xf32>
    %cst_17 = arith.constant 3.200000e+01 : f32
    %22 = vector.broadcast %cst_17 : f32 to vector<16x1xf32>
    %23 = arith.divf %21, %22 : vector<16x1xf32>
    %24 = vector.broadcast %23 : vector<16x1xf32> to vector<16x32xf32>
    %25 = arith.subf %17, %24 : vector<16x32xf32>
    %26 = arith.mulf %25, %25 : vector<16x32xf32>
    %cst_18 = arith.constant dense<0.000000e+00> : vector<16xf32>
    %27 = vector.multi_reduction <add>, %26, %cst_18 [1] : vector<16x32xf32> to vector<16xf32>
    %28 = vector.shape_cast %27 : vector<16xf32> to vector<16x1xf32>
    %cst_19 = arith.constant 3.200000e+01 : f32
    %29 = vector.broadcast %cst_19 : f32 to vector<16x1xf32>
    %30 = arith.divf %28, %29 : vector<16x1xf32>
    %31 = vector.broadcast %23 : vector<16x1xf32> to vector<16x32xf32>
    %32 = arith.subf %17, %31 : vector<16x32xf32>
    %cst_20 = arith.constant 9.99999974E-6 : f32
    %33 = vector.broadcast %cst_20 : f32 to vector<16x1xf32>
    %34 = arith.addf %30, %33 : vector<16x1xf32>
    %35 = math.rsqrt %34 : vector<16x1xf32>
    %36 = vector.broadcast %35 : vector<16x1xf32> to vector<16x32xf32>
    %37 = arith.mulf %32, %36 : vector<16x32xf32>
    %38 = vector.broadcast %18 : vector<1x32xf32> to vector<16x32xf32>
    %39 = arith.mulf %37, %38 : vector<16x32xf32>
    %40 = vector.broadcast %19 : vector<1x32xf32> to vector<16x32xf32>
    %41 = arith.addf %39, %40 : vector<16x32xf32>
    %42 = arith.truncf %41 : vector<16x32xf32> to vector<16x32xbf16>
    %c0_21 = arith.constant 0 : index
    %c0_22 = arith.constant 0 : index
    %43 = vector.load %arg8[%c0_21, %c0_22] : memref<16x32xbf16, #tpu.memory_space<vmem>>, vector<16x32xbf16>
    tpu.vector_store %arg8[%c0_21, %c0_22], %42 {strides = array<i32>} : memref<16x32xbf16, #tpu.memory_space<vmem>>, vector<16x32xbf16>,
    return
  }
  func.func @transform_0(%arg0: i32) -> (i32, i32) {
    %c0_i32 = arith.constant 0 : i32
    %c0_i32_0 = arith.constant 0 : i32
    return %arg0, %c0_i32 : i32, i32
  }
  func.func @transform_1(%arg0: i32) -> (i32, i32) {
    %c0_i32 = arith.constant 0 : i32
    %c0_i32_0 = arith.constant 0 : i32
    %c0_i32_1 = arith.constant 0 : i32
    return %c0_i32, %c0_i32_0 : i32, i32
  }
  func.func @transform_2(%arg0: i32) -> (i32, i32) {
    %c0_i32 = arith.constant 0 : i32
    %c0_i32_0 = arith.constant 0 : i32
    %c0_i32_1 = arith.constant 0 : i32
    return %c0_i32, %c0_i32_0 : i32, i32
  }
  func.func @transform_3(%arg0: i32) -> (i32, i32) {
    %c0_i32 = arith.constant 0 : i32
    %c0_i32_0 = arith.constant 0 : i32
    %c0_i32_1 = arith.constant 0 : i32
    return %c0_i32, %c0_i32_0 : i32, i32
  }
  func.func @transform_4(%arg0: i32) -> (i32, i32) {
    %c0_i32 = arith.constant 0 : i32
    %c0_i32_0 = arith.constant 0 : i32
    %c0_i32_1 = arith.constant 0 : i32
    return %c0_i32, %c0_i32_0 : i32, i32
  }
  func.func @transform_5(%arg0: i32) -> (i32, i32) {
    %c0_i32 = arith.constant 0 : i32
    %c0_i32_0 = arith.constant 0 : i32
    %c0_i32_1 = arith.constant 0 : i32
    return %c0_i32, %c0_i32_0 : i32, i32
  }
  func.func @transform_6(%arg0: i32) -> (i32, i32) {
    %c0_i32 = arith.constant 0 : i32
    %c0_i32_0 = arith.constant 0 : i32
    %c0_i32_1 = arith.constant 0 : i32
    return %c0_i32, %c0_i32_0 : i32, i32
  }
  func.func @transform_7(%arg0: i32) -> (i32, i32) {
    %c0_i32 = arith.constant 0 : i32
    %c0_i32_0 = arith.constant 0 : i32
    return %arg0, %c0_i32 : i32, i32
  }
}

module attributes {stable_mosaic.version = 11 : i64} {
  func.func @_attn_block_kernel(%arg0: i32, %arg1: memref<1x8x32xbf16, #tpu.memory_space<vmem>>, %arg2: memref<1x8x32xbf16, #tpu.memory_space<vmem>>, %arg3: memref<4x32x32xbf16, #tpu.memory_space<vmem>>, %arg4: memref<4x1x32xf32, #tpu.memory_space<vmem>>, %arg5: memref<4x32x32xbf16, #tpu.memory_space<vmem>>, %arg6: memref<4x1x32xf32, #tpu.memory_space<vmem>>, %arg7: memref<2x1x32xf32, #tpu.memory_space<vmem>>, %arg8: memref<2x1x32xf32, #tpu.memory_space<vmem>>, %arg9: memref<1x8x32xbf16, #tpu.memory_space<vmem>>) attributes {dimension_semantics = [#tpu.dimension_semantics<parallel>], iteration_bounds = array<i64: 2>, scalar_prefetch = 0 : i64, scratch_operands = 0 : i64, tpu.core_type = #tpu.core_type<tc>, window_params = [{transform_indices = @transform_0, window_bounds = array<i64: 1, 8, 32>}, {transform_indices = @transform_1, window_bounds = array<i64: 1, 8, 32>}, {pipeline_mode = #tpu.pipeline_mode<synchronous>, transform_indices = @transform_2, window_bounds = array<i64: 4, 32, 32>}, {pipeline_mode = #tpu.pipeline_mode<synchronous>, transform_indices = @transform_3, window_bounds = array<i64: 4, 1, 32>}, {pipeline_mode = #tpu.pipeline_mode<synchronous>, transform_indices = @transform_4, window_bounds = array<i64: 4, 32, 32>}, {pipeline_mode = #tpu.pipeline_mode<synchronous>, transform_indices = @transform_5, window_bounds = array<i64: 4, 1, 32>}, {pipeline_mode = #tpu.pipeline_mode<synchronous>, transform_indices = @transform_6, window_bounds = array<i64: 2, 1, 32>}, {pipeline_mode = #tpu.pipeline_mode<synchronous>, transform_indices = @transform_7, window_bounds = array<i64: 2, 1, 32>}, {transform_indices = @transform_8, window_bounds = array<i64: 1, 8, 32>}]} {
    %c0 = arith.constant 0 : index
    %c0_0 = arith.constant 0 : index
    %c0_1 = arith.constant 0 : index
    %0 = vector.load %arg1[%c0, %c0_0, %c0_1] : memref<1x8x32xbf16, #tpu.memory_space<vmem>>, vector<1x8x32xbf16>
    %1 = vector.shape_cast %0 : vector<1x8x32xbf16> to vector<8x32xbf16>
    %c0_2 = arith.constant 0 : index
    %c0_3 = arith.constant 0 : index
    %c0_4 = arith.constant 0 : index
    %2 = vector.load %arg2[%c0_2, %c0_3, %c0_4] : memref<1x8x32xbf16, #tpu.memory_space<vmem>>, vector<1x8x32xbf16>
    %3 = vector.shape_cast %2 : vector<1x8x32xbf16> to vector<8x32xbf16>
    %c0_5 = arith.constant 0 : index
    %c0_6 = arith.constant 0 : index
    %c0_7 = arith.constant 0 : index
    %4 = vector.load %arg3[%c0_5, %c0_6, %c0_7] : memref<4x32x32xbf16, #tpu.memory_space<vmem>>, vector<1x32x32xbf16>
    %5 = vector.shape_cast %4 : vector<1x32x32xbf16> to vector<32x32xbf16>
    %cst = arith.constant dense<0.000000e+00> : vector<8x32xf32>
    %6 = tpu.matmul %1, %5, %cst {dimension_numbers = #tpu.dot_dimension_numbers<[1], [0], [0], [1], [0, 0, 1, 1], [], []>} : vector<8x32xbf16>, vector<32x32xbf16>, vector<8x32xf32> -> vector<8x32xf32>
    %c0_8 = arith.constant 0 : index
    %c0_9 = arith.constant 0 : index
    %c0_10 = arith.constant 0 : index
    %7 = vector.load %arg4[%c0_8, %c0_9, %c0_10] : memref<4x1x32xf32, #tpu.memory_space<vmem>>, vector<1x1x32xf32>
    %8 = vector.shape_cast %7 : vector<1x1x32xf32> to vector<1x32xf32>
    %9 = vector.broadcast %8 : vector<1x32xf32> to vector<8x32xf32>
    %10 = arith.addf %6, %9 : vector<8x32xf32>
    %11 = arith.truncf %10 : vector<8x32xf32> to vector<8x32xbf16>
    %c1 = arith.constant 1 : index
    %c0_11 = arith.constant 0 : index
    %c0_12 = arith.constant 0 : index
    %12 = vector.load %arg3[%c1, %c0_11, %c0_12] : memref<4x32x32xbf16, #tpu.memory_space<vmem>>, vector<1x32x32xbf16>
    %13 = vector.shape_cast %12 : vector<1x32x32xbf16> to vector<32x32xbf16>
    %cst_13 = arith.constant dense<0.000000e+00> : vector<8x32xf32>
    %14 = tpu.matmul %1, %13, %cst_13 {dimension_numbers = #tpu.dot_dimension_numbers<[1], [0], [0], [1], [0, 0, 1, 1], [], []>} : vector<8x32xbf16>, vector<32x32xbf16>, vector<8x32xf32> -> vector<8x32xf32>
    %c1_14 = arith.constant 1 : index
    %c0_15 = arith.constant 0 : index
    %c0_16 = arith.constant 0 : index
    %15 = vector.load %arg4[%c1_14, %c0_15, %c0_16] : memref<4x1x32xf32, #tpu.memory_space<vmem>>, vector<1x1x32xf32>
    %16 = vector.shape_cast %15 : vector<1x1x32xf32> to vector<1x32xf32>
    %17 = vector.broadcast %16 : vector<1x32xf32> to vector<8x32xf32>
    %18 = arith.addf %14, %17 : vector<8x32xf32>
    %19 = arith.truncf %18 : vector<8x32xf32> to vector<8x32xbf16>
    %c2 = arith.constant 2 : index
    %c0_17 = arith.constant 0 : index
    %c0_18 = arith.constant 0 : index
    %20 = vector.load %arg3[%c2, %c0_17, %c0_18] : memref<4x32x32xbf16, #tpu.memory_space<vmem>>, vector<1x32x32xbf16>
    %21 = vector.shape_cast %20 : vector<1x32x32xbf16> to vector<32x32xbf16>
    %cst_19 = arith.constant dense<0.000000e+00> : vector<8x32xf32>
    %22 = tpu.matmul %1, %21, %cst_19 {dimension_numbers = #tpu.dot_dimension_numbers<[1], [0], [0], [1], [0, 0, 1, 1], [], []>} : vector<8x32xbf16>, vector<32x32xbf16>, vector<8x32xf32> -> vector<8x32xf32>
    %c2_20 = arith.constant 2 : index
    %c0_21 = arith.constant 0 : index
    %c0_22 = arith.constant 0 : index
    %23 = vector.load %arg4[%c2_20, %c0_21, %c0_22] : memref<4x1x32xf32, #tpu.memory_space<vmem>>, vector<1x1x32xf32>
    %24 = vector.shape_cast %23 : vector<1x1x32xf32> to vector<1x32xf32>
    %25 = vector.broadcast %24 : vector<1x32xf32> to vector<8x32xf32>
    %26 = arith.addf %22, %25 : vector<8x32xf32>
    %27 = arith.truncf %26 : vector<8x32xf32> to vector<8x32xbf16>
    %c3 = arith.constant 3 : index
    %c0_23 = arith.constant 0 : index
    %c0_24 = arith.constant 0 : index
    %28 = vector.load %arg3[%c3, %c0_23, %c0_24] : memref<4x32x32xbf16, #tpu.memory_space<vmem>>, vector<1x32x32xbf16>
    %29 = vector.shape_cast %28 : vector<1x32x32xbf16> to vector<32x32xbf16>
    %30 = tpu.iota {dimensions = array<i32: 0>} : vector<8x8xi32>
    %31 = tpu.iota {dimensions = array<i32: 1>} : vector<8x8xi32>
    %32 = arith.cmpi sge, %30, %31 : vector<8x8xi32>
    %cst_25 = arith.constant 0.000000e+00 : f32
    %cst_26 = arith.constant -1.000000e+09 : f32
    %33 = vector.broadcast %cst_25 : f32 to vector<8x8xf32>
    %34 = vector.broadcast %cst_26 : f32 to vector<8x8xf32>
    %35 = arith.select %32, %33, %34 : vector<8x8xi1>, vector<8x8xf32>
    %cst_27 = arith.constant 0.000000e+00 : f32
    %36 = vector.broadcast %cst_27 : f32 to vector<8x32xf32>
    %37 = vector.extract_strided_slice %11 {offsets = [0, 0], sizes = [8, 8], strides = [1, 1]} : vector<8x32xbf16> to vector<8x8xbf16>
    %38 = vector.extract_strided_slice %19 {offsets = [0, 0], sizes = [8, 8], strides = [1, 1]} : vector<8x32xbf16> to vector<8x8xbf16>
    %cst_28 = arith.constant dense<0.000000e+00> : vector<8x8xf32>
    %39 = tpu.matmul %37, %38, %cst_28 {dimension_numbers = #tpu.dot_dimension_numbers<[1], [1], [0], [0], [0, 0, 1, 0], [], []>} : vector<8x8xbf16>, vector<8x8xbf16>, vector<8x8xf32> -> vector<8x8xf32>
    %40 = arith.addf %39, %35 : vector<8x8xf32>
    %cst_29 = arith.constant dense<0xFF800000> : vector<8xf32>
    %41 = vector.multi_reduction <maximumf>, %40, %cst_29 [1] : vector<8x8xf32> to vector<8xf32>
    %42 = vector.shape_cast %41 : vector<8xf32> to vector<8x1xf32>
    %43 = vector.broadcast %42 : vector<8x1xf32> to vector<8x8xf32>
    %44 = arith.subf %40, %43 : vector<8x8xf32>
    %45 = math.exp %44 : vector<8x8xf32>
    %cst_30 = arith.constant dense<0.000000e+00> : vector<8xf32>
    %46 = vector.multi_reduction <add>, %45, %cst_30 [1] : vector<8x8xf32> to vector<8xf32>
    %47 = vector.shape_cast %46 : vector<8xf32> to vector<8x1xf32>
    %48 = tpu.reciprocal %47 {approx = true} : vector<8x1xf32> -> vector<8x1xf32>
    %49 = vector.broadcast %48 : vector<8x1xf32> to vector<8x8xf32>
    %50 = arith.mulf %45, %49 : vector<8x8xf32>
    %51 = arith.truncf %50 : vector<8x8xf32> to vector<8x8xbf16>
    %52 = vector.extract_strided_slice %27 {offsets = [0, 0], sizes = [8, 8], strides = [1, 1]} : vector<8x32xbf16> to vector<8x8xbf16>
    %cst_31 = arith.constant dense<0.000000e+00> : vector<8x8xf32>
    %53 = tpu.matmul %51, %52, %cst_31 {dimension_numbers = #tpu.dot_dimension_numbers<[1], [0], [0], [1], [0, 0, 1, 1], [], []>} : vector<8x8xbf16>, vector<8x8xbf16>, vector<8x8xf32> -> vector<8x8xf32>
    %54 = arith.truncf %53 : vector<8x8xf32> to vector<8x8xbf16>
    %55 = vector.extract_strided_slice %29 {offsets = [0, 0], sizes = [8, 32], strides = [1, 1]} : vector<32x32xbf16> to vector<8x32xbf16>
    %cst_32 = arith.constant dense<0.000000e+00> : vector<8x32xf32>
    %56 = tpu.matmul %54, %55, %cst_32 {dimension_numbers = #tpu.dot_dimension_numbers<[1], [0], [0], [1], [0, 0, 1, 1], [], []>} : vector<8x8xbf16>, vector<8x32xbf16>, vector<8x32xf32> -> vector<8x32xf32>
    %57 = arith.addf %36, %56 : vector<8x32xf32>
    %58 = vector.extract_strided_slice %11 {offsets = [0, 8], sizes = [8, 8], strides = [1, 1]} : vector<8x32xbf16> to vector<8x8xbf16>
    %59 = vector.extract_strided_slice %19 {offsets = [0, 8], sizes = [8, 8], strides = [1, 1]} : vector<8x32xbf16> to vector<8x8xbf16>
    %cst_33 = arith.constant dense<0.000000e+00> : vector<8x8xf32>
    %60 = tpu.matmul %58, %59, %cst_33 {dimension_numbers = #tpu.dot_dimension_numbers<[1], [1], [0], [0], [0, 0, 1, 0], [], []>} : vector<8x8xbf16>, vector<8x8xbf16>, vector<8x8xf32> -> vector<8x8xf32>
    %61 = arith.addf %60, %35 : vector<8x8xf32>
    %cst_34 = arith.constant dense<0xFF800000> : vector<8xf32>
    %62 = vector.multi_reduction <maximumf>, %61, %cst_34 [1] : vector<8x8xf32> to vector<8xf32>
    %63 = vector.shape_cast %62 : vector<8xf32> to vector<8x1xf32>
    %64 = vector.broadcast %63 : vector<8x1xf32> to vector<8x8xf32>
    %65 = arith.subf %61, %64 : vector<8x8xf32>
    %66 = math.exp %65 : vector<8x8xf32>
    %cst_35 = arith.constant dense<0.000000e+00> : vector<8xf32>
    %67 = vector.multi_reduction <add>, %66, %cst_35 [1] : vector<8x8xf32> to vector<8xf32>
    %68 = vector.shape_cast %67 : vector<8xf32> to vector<8x1xf32>
    %69 = tpu.reciprocal %68 {approx = true} : vector<8x1xf32> -> vector<8x1xf32>
    %70 = vector.broadcast %69 : vector<8x1xf32> to vector<8x8xf32>
    %71 = arith.mulf %66, %70 : vector<8x8xf32>
    %72 = arith.truncf %71 : vector<8x8xf32> to vector<8x8xbf16>
    %73 = vector.extract_strided_slice %27 {offsets = [0, 8], sizes = [8, 8], strides = [1, 1]} : vector<8x32xbf16> to vector<8x8xbf16>
    %cst_36 = arith.constant dense<0.000000e+00> : vector<8x8xf32>
    %74 = tpu.matmul %72, %73, %cst_36 {dimension_numbers = #tpu.dot_dimension_numbers<[1], [0], [0], [1], [0, 0, 1, 1], [], []>} : vector<8x8xbf16>, vector<8x8xbf16>, vector<8x8xf32> -> vector<8x8xf32>
    %75 = arith.truncf %74 : vector<8x8xf32> to vector<8x8xbf16>
    %76 = vector.extract_strided_slice %29 {offsets = [8, 0], sizes = [8, 32], strides = [1, 1]} : vector<32x32xbf16> to vector<8x32xbf16>
    %cst_37 = arith.constant dense<0.000000e+00> : vector<8x32xf32>
    %77 = tpu.matmul %75, %76, %cst_37 {dimension_numbers = #tpu.dot_dimension_numbers<[1], [0], [0], [1], [0, 0, 1, 1], [], []>} : vector<8x8xbf16>, vector<8x32xbf16>, vector<8x32xf32> -> vector<8x32xf32>
    %78 = arith.addf %57, %77 : vector<8x32xf32>
    %79 = vector.extract_strided_slice %11 {offsets = [0, 16], sizes = [8, 8], strides = [1, 1]} : vector<8x32xbf16> to vector<8x8xbf16>
    %80 = vector.extract_strided_slice %19 {offsets = [0, 16], sizes = [8, 8], strides = [1, 1]} : vector<8x32xbf16> to vector<8x8xbf16>
    %cst_38 = arith.constant dense<0.000000e+00> : vector<8x8xf32>
    %81 = tpu.matmul %79, %80, %cst_38 {dimension_numbers = #tpu.dot_dimension_numbers<[1], [1], [0], [0], [0, 0, 1, 0], [], []>} : vector<8x8xbf16>, vector<8x8xbf16>, vector<8x8xf32> -> vector<8x8xf32>
    %82 = arith.addf %81, %35 : vector<8x8xf32>
    %cst_39 = arith.constant dense<0xFF800000> : vector<8xf32>
    %83 = vector.multi_reduction <maximumf>, %82, %cst_39 [1] : vector<8x8xf32> to vector<8xf32>
    %84 = vector.shape_cast %83 : vector<8xf32> to vector<8x1xf32>
    %85 = vector.broadcast %84 : vector<8x1xf32> to vector<8x8xf32>
    %86 = arith.subf %82, %85 : vector<8x8xf32>
    %87 = math.exp %86 : vector<8x8xf32>
    %cst_40 = arith.constant dense<0.000000e+00> : vector<8xf32>
    %88 = vector.multi_reduction <add>, %87, %cst_40 [1] : vector<8x8xf32> to vector<8xf32>
    %89 = vector.shape_cast %88 : vector<8xf32> to vector<8x1xf32>
    %90 = tpu.reciprocal %89 {approx = true} : vector<8x1xf32> -> vector<8x1xf32>
    %91 = vector.broadcast %90 : vector<8x1xf32> to vector<8x8xf32>
    %92 = arith.mulf %87, %91 : vector<8x8xf32>
    %93 = arith.truncf %92 : vector<8x8xf32> to vector<8x8xbf16>
    %94 = vector.extract_strided_slice %27 {offsets = [0, 16], sizes = [8, 8], strides = [1, 1]} : vector<8x32xbf16> to vector<8x8xbf16>
    %cst_41 = arith.constant dense<0.000000e+00> : vector<8x8xf32>
    %95 = tpu.matmul %93, %94, %cst_41 {dimension_numbers = #tpu.dot_dimension_numbers<[1], [0], [0], [1], [0, 0, 1, 1], [], []>} : vector<8x8xbf16>, vector<8x8xbf16>, vector<8x8xf32> -> vector<8x8xf32>
    %96 = arith.truncf %95 : vector<8x8xf32> to vector<8x8xbf16>
    %97 = vector.extract_strided_slice %29 {offsets = [16, 0], sizes = [8, 32], strides = [1, 1]} : vector<32x32xbf16> to vector<8x32xbf16>
    %cst_42 = arith.constant dense<0.000000e+00> : vector<8x32xf32>
    %98 = tpu.matmul %96, %97, %cst_42 {dimension_numbers = #tpu.dot_dimension_numbers<[1], [0], [0], [1], [0, 0, 1, 1], [], []>} : vector<8x8xbf16>, vector<8x32xbf16>, vector<8x32xf32> -> vector<8x32xf32>
    %99 = arith.addf %78, %98 : vector<8x32xf32>
    %100 = vector.extract_strided_slice %11 {offsets = [0, 24], sizes = [8, 8], strides = [1, 1]} : vector<8x32xbf16> to vector<8x8xbf16>
    %101 = vector.extract_strided_slice %19 {offsets = [0, 24], sizes = [8, 8], strides = [1, 1]} : vector<8x32xbf16> to vector<8x8xbf16>
    %cst_43 = arith.constant dense<0.000000e+00> : vector<8x8xf32>
    %102 = tpu.matmul %100, %101, %cst_43 {dimension_numbers = #tpu.dot_dimension_numbers<[1], [1], [0], [0], [0, 0, 1, 0], [], []>} : vector<8x8xbf16>, vector<8x8xbf16>, vector<8x8xf32> -> vector<8x8xf32>
    %103 = arith.addf %102, %35 : vector<8x8xf32>
    %cst_44 = arith.constant dense<0xFF800000> : vector<8xf32>
    %104 = vector.multi_reduction <maximumf>, %103, %cst_44 [1] : vector<8x8xf32> to vector<8xf32>
    %105 = vector.shape_cast %104 : vector<8xf32> to vector<8x1xf32>
    %106 = vector.broadcast %105 : vector<8x1xf32> to vector<8x8xf32>
    %107 = arith.subf %103, %106 : vector<8x8xf32>
    %108 = math.exp %107 : vector<8x8xf32>
    %cst_45 = arith.constant dense<0.000000e+00> : vector<8xf32>
    %109 = vector.multi_reduction <add>, %108, %cst_45 [1] : vector<8x8xf32> to vector<8xf32>
    %110 = vector.shape_cast %109 : vector<8xf32> to vector<8x1xf32>
    %111 = tpu.reciprocal %110 {approx = true} : vector<8x1xf32> -> vector<8x1xf32>
    %112 = vector.broadcast %111 : vector<8x1xf32> to vector<8x8xf32>
    %113 = arith.mulf %108, %112 : vector<8x8xf32>
    %114 = arith.truncf %113 : vector<8x8xf32> to vector<8x8xbf16>
    %115 = vector.extract_strided_slice %27 {offsets = [0, 24], sizes = [8, 8], strides = [1, 1]} : vector<8x32xbf16> to vector<8x8xbf16>
    %cst_46 = arith.constant dense<0.000000e+00> : vector<8x8xf32>
    %116 = tpu.matmul %114, %115, %cst_46 {dimension_numbers = #tpu.dot_dimension_numbers<[1], [0], [0], [1], [0, 0, 1, 1], [], []>} : vector<8x8xbf16>, vector<8x8xbf16>, vector<8x8xf32> -> vector<8x8xf32>
    %117 = arith.truncf %116 : vector<8x8xf32> to vector<8x8xbf16>
    %118 = vector.extract_strided_slice %29 {offsets = [24, 0], sizes = [8, 32], strides = [1, 1]} : vector<32x32xbf16> to vector<8x32xbf16>
    %cst_47 = arith.constant dense<0.000000e+00> : vector<8x32xf32>
    %119 = tpu.matmul %117, %118, %cst_47 {dimension_numbers = #tpu.dot_dimension_numbers<[1], [0], [0], [1], [0, 0, 1, 1], [], []>} : vector<8x8xbf16>, vector<8x32xbf16>, vector<8x32xf32> -> vector<8x32xf32>
    %120 = arith.addf %99, %119 : vector<8x32xf32>
    %c3_48 = arith.constant 3 : index
    %c0_49 = arith.constant 0 : index
    %c0_50 = arith.constant 0 : index
    %121 = vector.load %arg4[%c3_48, %c0_49, %c0_50] : memref<4x1x32xf32, #tpu.memory_space<vmem>>, vector<1x1x32xf32>
    %122 = vector.shape_cast %121 : vector<1x1x32xf32> to vector<1x32xf32>
    %123 = vector.broadcast %122 : vector<1x32xf32> to vector<8x32xf32>
    %124 = arith.addf %120, %123 : vector<8x32xf32>
    %125 = arith.extf %1 : vector<8x32xbf16> to vector<8x32xf32>
    %126 = arith.addf %124, %125 : vector<8x32xf32>
    %c0_51 = arith.constant 0 : index
    %c0_52 = arith.constant 0 : index
    %c0_53 = arith.constant 0 : index
    %127 = vector.load %arg7[%c0_51, %c0_52, %c0_53] : memref<2x1x32xf32, #tpu.memory_space<vmem>>, vector<1x1x32xf32>
    %128 = vector.shape_cast %127 : vector<1x1x32xf32> to vector<1x32xf32>
    %c0_54 = arith.constant 0 : index
    %c0_55 = arith.constant 0 : index
    %c0_56 = arith.constant 0 : index
    %129 = vector.load %arg8[%c0_54, %c0_55, %c0_56] : memref<2x1x32xf32, #tpu.memory_space<vmem>>, vector<1x1x32xf32>
    %130 = vector.shape_cast %129 : vector<1x1x32xf32> to vector<1x32xf32>
    %cst_57 = arith.constant dense<0.000000e+00> : vector<8xf32>
    %131 = vector.multi_reduction <add>, %126, %cst_57 [1] : vector<8x32xf32> to vector<8xf32>
    %132 = vector.shape_cast %131 : vector<8xf32> to vector<8x1xf32>
    %cst_58 = arith.constant 3.200000e+01 : f32
    %133 = vector.broadcast %cst_58 : f32 to vector<8x1xf32>
    %134 = arith.divf %132, %133 : vector<8x1xf32>
    %135 = vector.broadcast %134 : vector<8x1xf32> to vector<8x32xf32>
    %136 = arith.subf %126, %135 : vector<8x32xf32>
    %137 = arith.mulf %136, %136 : vector<8x32xf32>
    %cst_59 = arith.constant dense<0.000000e+00> : vector<8xf32>
    %138 = vector.multi_reduction <add>, %137, %cst_59 [1] : vector<8x32xf32> to vector<8xf32>
    %139 = vector.shape_cast %138 : vector<8xf32> to vector<8x1xf32>
    %cst_60 = arith.constant 3.200000e+01 : f32
    %140 = vector.broadcast %cst_60 : f32 to vector<8x1xf32>
    %141 = arith.divf %139, %140 : vector<8x1xf32>
    %142 = vector.broadcast %134 : vector<8x1xf32> to vector<8x32xf32>
    %143 = arith.subf %126, %142 : vector<8x32xf32>
    %cst_61 = arith.constant 9.99999974E-6 : f32
    %144 = vector.broadcast %cst_61 : f32 to vector<8x1xf32>
    %145 = arith.addf %141, %144 : vector<8x1xf32>
    %146 = math.rsqrt %145 : vector<8x1xf32>
    %147 = vector.broadcast %146 : vector<8x1xf32> to vector<8x32xf32>
    %148 = arith.mulf %143, %147 : vector<8x32xf32>
    %149 = vector.broadcast %128 : vector<1x32xf32> to vector<8x32xf32>
    %150 = arith.mulf %148, %149 : vector<8x32xf32>
    %151 = vector.broadcast %130 : vector<1x32xf32> to vector<8x32xf32>
    %152 = arith.addf %150, %151 : vector<8x32xf32>
    %153 = arith.truncf %152 : vector<8x32xf32> to vector<8x32xbf16>
    %c0_62 = arith.constant 0 : index
    %c0_63 = arith.constant 0 : index
    %c0_64 = arith.constant 0 : index
    %154 = vector.load %arg5[%c0_62, %c0_63, %c0_64] : memref<4x32x32xbf16, #tpu.memory_space<vmem>>, vector<1x32x32xbf16>
    %155 = vector.shape_cast %154 : vector<1x32x32xbf16> to vector<32x32xbf16>
    %cst_65 = arith.constant dense<0.000000e+00> : vector<8x32xf32>
    %156 = tpu.matmul %153, %155, %cst_65 {dimension_numbers = #tpu.dot_dimension_numbers<[1], [0], [0], [1], [0, 0, 1, 1], [], []>} : vector<8x32xbf16>, vector<32x32xbf16>, vector<8x32xf32> -> vector<8x32xf32>
    %c0_66 = arith.constant 0 : index
    %c0_67 = arith.constant 0 : index
    %c0_68 = arith.constant 0 : index
    %157 = vector.load %arg6[%c0_66, %c0_67, %c0_68] : memref<4x1x32xf32, #tpu.memory_space<vmem>>, vector<1x1x32xf32>
    %158 = vector.shape_cast %157 : vector<1x1x32xf32> to vector<1x32xf32>
    %159 = vector.broadcast %158 : vector<1x32xf32> to vector<8x32xf32>
    %160 = arith.addf %156, %159 : vector<8x32xf32>
    %161 = arith.truncf %160 : vector<8x32xf32> to vector<8x32xbf16>
    %c1_69 = arith.constant 1 : index
    %c0_70 = arith.constant 0 : index
    %c0_71 = arith.constant 0 : index
    %162 = vector.load %arg5[%c1_69, %c0_70, %c0_71] : memref<4x32x32xbf16, #tpu.memory_space<vmem>>, vector<1x32x32xbf16>
    %163 = vector.shape_cast %162 : vector<1x32x32xbf16> to vector<32x32xbf16>
    %cst_72 = arith.constant dense<0.000000e+00> : vector<8x32xf32>
    %164 = tpu.matmul %3, %163, %cst_72 {dimension_numbers = #tpu.dot_dimension_numbers<[1], [0], [0], [1], [0, 0, 1, 1], [], []>} : vector<8x32xbf16>, vector<32x32xbf16>, vector<8x32xf32> -> vector<8x32xf32>
    %c1_73 = arith.constant 1 : index
    %c0_74 = arith.constant 0 : index
    %c0_75 = arith.constant 0 : index
    %165 = vector.load %arg6[%c1_73, %c0_74, %c0_75] : memref<4x1x32xf32, #tpu.memory_space<vmem>>, vector<1x1x32xf32>
    %166 = vector.shape_cast %165 : vector<1x1x32xf32> to vector<1x32xf32>
    %167 = vector.broadcast %166 : vector<1x32xf32> to vector<8x32xf32>
    %168 = arith.addf %164, %167 : vector<8x32xf32>
    %169 = arith.truncf %168 : vector<8x32xf32> to vector<8x32xbf16>
    %c2_76 = arith.constant 2 : index
    %c0_77 = arith.constant 0 : index
    %c0_78 = arith.constant 0 : index
    %170 = vector.load %arg5[%c2_76, %c0_77, %c0_78] : memref<4x32x32xbf16, #tpu.memory_space<vmem>>, vector<1x32x32xbf16>
    %171 = vector.shape_cast %170 : vector<1x32x32xbf16> to vector<32x32xbf16>
    %cst_79 = arith.constant dense<0.000000e+00> : vector<8x32xf32>
    %172 = tpu.matmul %3, %171, %cst_79 {dimension_numbers = #tpu.dot_dimension_numbers<[1], [0], [0], [1], [0, 0, 1, 1], [], []>} : vector<8x32xbf16>, vector<32x32xbf16>, vector<8x32xf32> -> vector<8x32xf32>
    %c2_80 = arith.constant 2 : index
    %c0_81 = arith.constant 0 : index
    %c0_82 = arith.constant 0 : index
    %173 = vector.load %arg6[%c2_80, %c0_81, %c0_82] : memref<4x1x32xf32, #tpu.memory_space<vmem>>, vector<1x1x32xf32>
    %174 = vector.shape_cast %173 : vector<1x1x32xf32> to vector<1x32xf32>
    %175 = vector.broadcast %174 : vector<1x32xf32> to vector<8x32xf32>
    %176 = arith.addf %172, %175 : vector<8x32xf32>
    %177 = arith.truncf %176 : vector<8x32xf32> to vector<8x32xbf16>
    %c3_83 = arith.constant 3 : index
    %c0_84 = arith.constant 0 : index
    %c0_85 = arith.constant 0 : index
    %178 = vector.load %arg5[%c3_83, %c0_84, %c0_85] : memref<4x32x32xbf16, #tpu.memory_space<vmem>>, vector<1x32x32xbf16>
    %179 = vector.shape_cast %178 : vector<1x32x32xbf16> to vector<32x32xbf16>
    %cst_86 = arith.constant 0.000000e+00 : f32
    %180 = vector.broadcast %cst_86 : f32 to vector<8x32xf32>
    %181 = vector.extract_strided_slice %161 {offsets = [0, 0], sizes = [8, 8], strides = [1, 1]} : vector<8x32xbf16> to vector<8x8xbf16>
    %182 = vector.extract_strided_slice %169 {offsets = [0, 0], sizes = [8, 8], strides = [1, 1]} : vector<8x32xbf16> to vector<8x8xbf16>
    %cst_87 = arith.constant dense<0.000000e+00> : vector<8x8xf32>
    %183 = tpu.matmul %181, %182, %cst_87 {dimension_numbers = #tpu.dot_dimension_numbers<[1], [1], [0], [0], [0, 0, 1, 0], [], []>} : vector<8x8xbf16>, vector<8x8xbf16>, vector<8x8xf32> -> vector<8x8xf32>
    %cst_88 = arith.constant dense<0xFF800000> : vector<8xf32>
    %184 = vector.multi_reduction <maximumf>, %183, %cst_88 [1] : vector<8x8xf32> to vector<8xf32>
    %185 = vector.shape_cast %184 : vector<8xf32> to vector<8x1xf32>
    %186 = vector.broadcast %185 : vector<8x1xf32> to vector<8x8xf32>
    %187 = arith.subf %183, %186 : vector<8x8xf32>
    %188 = math.exp %187 : vector<8x8xf32>
    %cst_89 = arith.constant dense<0.000000e+00> : vector<8xf32>
    %189 = vector.multi_reduction <add>, %188, %cst_89 [1] : vector<8x8xf32> to vector<8xf32>
    %190 = vector.shape_cast %189 : vector<8xf32> to vector<8x1xf32>
    %191 = tpu.reciprocal %190 {approx = true} : vector<8x1xf32> -> vector<8x1xf32>
    %192 = vector.broadcast %191 : vector<8x1xf32> to vector<8x8xf32>
    %193 = arith.mulf %188, %192 : vector<8x8xf32>
    %194 = arith.truncf %193 : vector<8x8xf32> to vector<8x8xbf16>
    %195 = vector.extract_strided_slice %177 {offsets = [0, 0], sizes = [8, 8], strides = [1, 1]} : vector<8x32xbf16> to vector<8x8xbf16>
    %cst_90 = arith.constant dense<0.000000e+00> : vector<8x8xf32>
    %196 = tpu.matmul %194, %195, %cst_90 {dimension_numbers = #tpu.dot_dimension_numbers<[1], [0], [0], [1], [0, 0, 1, 1], [], []>} : vector<8x8xbf16>, vector<8x8xbf16>, vector<8x8xf32> -> vector<8x8xf32>
    %197 = arith.truncf %196 : vector<8x8xf32> to vector<8x8xbf16>
    %198 = vector.extract_strided_slice %179 {offsets = [0, 0], sizes = [8, 32], strides = [1, 1]} : vector<32x32xbf16> to vector<8x32xbf16>
    %cst_91 = arith.constant dense<0.000000e+00> : vector<8x32xf32>
    %199 = tpu.matmul %197, %198, %cst_91 {dimension_numbers = #tpu.dot_dimension_numbers<[1], [0], [0], [1], [0, 0, 1, 1], [], []>} : vector<8x8xbf16>, vector<8x32xbf16>, vector<8x32xf32> -> vector<8x32xf32>
    %200 = arith.addf %180, %199 : vector<8x32xf32>
    %201 = vector.extract_strided_slice %161 {offsets = [0, 8], sizes = [8, 8], strides = [1, 1]} : vector<8x32xbf16> to vector<8x8xbf16>
    %202 = vector.extract_strided_slice %169 {offsets = [0, 8], sizes = [8, 8], strides = [1, 1]} : vector<8x32xbf16> to vector<8x8xbf16>
    %cst_92 = arith.constant dense<0.000000e+00> : vector<8x8xf32>
    %203 = tpu.matmul %201, %202, %cst_92 {dimension_numbers = #tpu.dot_dimension_numbers<[1], [1], [0], [0], [0, 0, 1, 0], [], []>} : vector<8x8xbf16>, vector<8x8xbf16>, vector<8x8xf32> -> vector<8x8xf32>
    %cst_93 = arith.constant dense<0xFF800000> : vector<8xf32>
    %204 = vector.multi_reduction <maximumf>, %203, %cst_93 [1] : vector<8x8xf32> to vector<8xf32>
    %205 = vector.shape_cast %204 : vector<8xf32> to vector<8x1xf32>
    %206 = vector.broadcast %205 : vector<8x1xf32> to vector<8x8xf32>
    %207 = arith.subf %203, %206 : vector<8x8xf32>
    %208 = math.exp %207 : vector<8x8xf32>
    %cst_94 = arith.constant dense<0.000000e+00> : vector<8xf32>
    %209 = vector.multi_reduction <add>, %208, %cst_94 [1] : vector<8x8xf32> to vector<8xf32>
    %210 = vector.shape_cast %209 : vector<8xf32> to vector<8x1xf32>
    %211 = tpu.reciprocal %210 {approx = true} : vector<8x1xf32> -> vector<8x1xf32>
    %212 = vector.broadcast %211 : vector<8x1xf32> to vector<8x8xf32>
    %213 = arith.mulf %208, %212 : vector<8x8xf32>
    %214 = arith.truncf %213 : vector<8x8xf32> to vector<8x8xbf16>
    %215 = vector.extract_strided_slice %177 {offsets = [0, 8], sizes = [8, 8], strides = [1, 1]} : vector<8x32xbf16> to vector<8x8xbf16>
    %cst_95 = arith.constant dense<0.000000e+00> : vector<8x8xf32>
    %216 = tpu.matmul %214, %215, %cst_95 {dimension_numbers = #tpu.dot_dimension_numbers<[1], [0], [0], [1], [0, 0, 1, 1], [], []>} : vector<8x8xbf16>, vector<8x8xbf16>, vector<8x8xf32> -> vector<8x8xf32>
    %217 = arith.truncf %216 : vector<8x8xf32> to vector<8x8xbf16>
    %218 = vector.extract_strided_slice %179 {offsets = [8, 0], sizes = [8, 32], strides = [1, 1]} : vector<32x32xbf16> to vector<8x32xbf16>
    %cst_96 = arith.constant dense<0.000000e+00> : vector<8x32xf32>
    %219 = tpu.matmul %217, %218, %cst_96 {dimension_numbers = #tpu.dot_dimension_numbers<[1], [0], [0], [1], [0, 0, 1, 1], [], []>} : vector<8x8xbf16>, vector<8x32xbf16>, vector<8x32xf32> -> vector<8x32xf32>
    %220 = arith.addf %200, %219 : vector<8x32xf32>
    %221 = vector.extract_strided_slice %161 {offsets = [0, 16], sizes = [8, 8], strides = [1, 1]} : vector<8x32xbf16> to vector<8x8xbf16>
    %222 = vector.extract_strided_slice %169 {offsets = [0, 16], sizes = [8, 8], strides = [1, 1]} : vector<8x32xbf16> to vector<8x8xbf16>
    %cst_97 = arith.constant dense<0.000000e+00> : vector<8x8xf32>
    %223 = tpu.matmul %221, %222, %cst_97 {dimension_numbers = #tpu.dot_dimension_numbers<[1], [1], [0], [0], [0, 0, 1, 0], [], []>} : vector<8x8xbf16>, vector<8x8xbf16>, vector<8x8xf32> -> vector<8x8xf32>
    %cst_98 = arith.constant dense<0xFF800000> : vector<8xf32>
    %224 = vector.multi_reduction <maximumf>, %223, %cst_98 [1] : vector<8x8xf32> to vector<8xf32>
    %225 = vector.shape_cast %224 : vector<8xf32> to vector<8x1xf32>
    %226 = vector.broadcast %225 : vector<8x1xf32> to vector<8x8xf32>
    %227 = arith.subf %223, %226 : vector<8x8xf32>
    %228 = math.exp %227 : vector<8x8xf32>
    %cst_99 = arith.constant dense<0.000000e+00> : vector<8xf32>
    %229 = vector.multi_reduction <add>, %228, %cst_99 [1] : vector<8x8xf32> to vector<8xf32>
    %230 = vector.shape_cast %229 : vector<8xf32> to vector<8x1xf32>
    %231 = tpu.reciprocal %230 {approx = true} : vector<8x1xf32> -> vector<8x1xf32>
    %232 = vector.broadcast %231 : vector<8x1xf32> to vector<8x8xf32>
    %233 = arith.mulf %228, %232 : vector<8x8xf32>
    %234 = arith.truncf %233 : vector<8x8xf32> to vector<8x8xbf16>
    %235 = vector.extract_strided_slice %177 {offsets = [0, 16], sizes = [8, 8], strides = [1, 1]} : vector<8x32xbf16> to vector<8x8xbf16>
    %cst_100 = arith.constant dense<0.000000e+00> : vector<8x8xf32>
    %236 = tpu.matmul %234, %235, %cst_100 {dimension_numbers = #tpu.dot_dimension_numbers<[1], [0], [0], [1], [0, 0, 1, 1], [], []>} : vector<8x8xbf16>, vector<8x8xbf16>, vector<8x8xf32> -> vector<8x8xf32>
    %237 = arith.truncf %236 : vector<8x8xf32> to vector<8x8xbf16>
    %238 = vector.extract_strided_slice %179 {offsets = [16, 0], sizes = [8, 32], strides = [1, 1]} : vector<32x32xbf16> to vector<8x32xbf16>
    %cst_101 = arith.constant dense<0.000000e+00> : vector<8x32xf32>
    %239 = tpu.matmul %237, %238, %cst_101 {dimension_numbers = #tpu.dot_dimension_numbers<[1], [0], [0], [1], [0, 0, 1, 1], [], []>} : vector<8x8xbf16>, vector<8x32xbf16>, vector<8x32xf32> -> vector<8x32xf32>
    %240 = arith.addf %220, %239 : vector<8x32xf32>
    %241 = vector.extract_strided_slice %161 {offsets = [0, 24], sizes = [8, 8], strides = [1, 1]} : vector<8x32xbf16> to vector<8x8xbf16>
    %242 = vector.extract_strided_slice %169 {offsets = [0, 24], sizes = [8, 8], strides = [1, 1]} : vector<8x32xbf16> to vector<8x8xbf16>
    %cst_102 = arith.constant dense<0.000000e+00> : vector<8x8xf32>
    %243 = tpu.matmul %241, %242, %cst_102 {dimension_numbers = #tpu.dot_dimension_numbers<[1], [1], [0], [0], [0, 0, 1, 0], [], []>} : vector<8x8xbf16>, vector<8x8xbf16>, vector<8x8xf32> -> vector<8x8xf32>
    %cst_103 = arith.constant dense<0xFF800000> : vector<8xf32>
    %244 = vector.multi_reduction <maximumf>, %243, %cst_103 [1] : vector<8x8xf32> to vector<8xf32>
    %245 = vector.shape_cast %244 : vector<8xf32> to vector<8x1xf32>
    %246 = vector.broadcast %245 : vector<8x1xf32> to vector<8x8xf32>
    %247 = arith.subf %243, %246 : vector<8x8xf32>
    %248 = math.exp %247 : vector<8x8xf32>
    %cst_104 = arith.constant dense<0.000000e+00> : vector<8xf32>
    %249 = vector.multi_reduction <add>, %248, %cst_104 [1] : vector<8x8xf32> to vector<8xf32>
    %250 = vector.shape_cast %249 : vector<8xf32> to vector<8x1xf32>
    %251 = tpu.reciprocal %250 {approx = true} : vector<8x1xf32> -> vector<8x1xf32>
    %252 = vector.broadcast %251 : vector<8x1xf32> to vector<8x8xf32>
    %253 = arith.mulf %248, %252 : vector<8x8xf32>
    %254 = arith.truncf %253 : vector<8x8xf32> to vector<8x8xbf16>
    %255 = vector.extract_strided_slice %177 {offsets = [0, 24], sizes = [8, 8], strides = [1, 1]} : vector<8x32xbf16> to vector<8x8xbf16>
    %cst_105 = arith.constant dense<0.000000e+00> : vector<8x8xf32>
    %256 = tpu.matmul %254, %255, %cst_105 {dimension_numbers = #tpu.dot_dimension_numbers<[1], [0], [0], [1], [0, 0, 1, 1], [], []>} : vector<8x8xbf16>, vector<8x8xbf16>, vector<8x8xf32> -> vector<8x8xf32>
    %257 = arith.truncf %256 : vector<8x8xf32> to vector<8x8xbf16>
    %258 = vector.extract_strided_slice %179 {offsets = [24, 0], sizes = [8, 32], strides = [1, 1]} : vector<32x32xbf16> to vector<8x32xbf16>
    %cst_106 = arith.constant dense<0.000000e+00> : vector<8x32xf32>
    %259 = tpu.matmul %257, %258, %cst_106 {dimension_numbers = #tpu.dot_dimension_numbers<[1], [0], [0], [1], [0, 0, 1, 1], [], []>} : vector<8x8xbf16>, vector<8x32xbf16>, vector<8x32xf32> -> vector<8x32xf32>
    %260 = arith.addf %240, %259 : vector<8x32xf32>
    %c3_107 = arith.constant 3 : index
    %c0_108 = arith.constant 0 : index
    %c0_109 = arith.constant 0 : index
    %261 = vector.load %arg6[%c3_107, %c0_108, %c0_109] : memref<4x1x32xf32, #tpu.memory_space<vmem>>, vector<1x1x32xf32>
    %262 = vector.shape_cast %261 : vector<1x1x32xf32> to vector<1x32xf32>
    %263 = vector.broadcast %262 : vector<1x32xf32> to vector<8x32xf32>
    %264 = arith.addf %260, %263 : vector<8x32xf32>
    %265 = arith.addf %264, %152 : vector<8x32xf32>
    %c1_110 = arith.constant 1 : index
    %c0_111 = arith.constant 0 : index
    %c0_112 = arith.constant 0 : index
    %266 = vector.load %arg7[%c1_110, %c0_111, %c0_112] : memref<2x1x32xf32, #tpu.memory_space<vmem>>, vector<1x1x32xf32>
    %267 = vector.shape_cast %266 : vector<1x1x32xf32> to vector<1x32xf32>
    %c1_113 = arith.constant 1 : index
    %c0_114 = arith.constant 0 : index
    %c0_115 = arith.constant 0 : index
    %268 = vector.load %arg8[%c1_113, %c0_114, %c0_115] : memref<2x1x32xf32, #tpu.memory_space<vmem>>, vector<1x1x32xf32>
    %269 = vector.shape_cast %268 : vector<1x1x32xf32> to vector<1x32xf32>
    %cst_116 = arith.constant dense<0.000000e+00> : vector<8xf32>
    %270 = vector.multi_reduction <add>, %265, %cst_116 [1] : vector<8x32xf32> to vector<8xf32>
    %271 = vector.shape_cast %270 : vector<8xf32> to vector<8x1xf32>
    %cst_117 = arith.constant 3.200000e+01 : f32
    %272 = vector.broadcast %cst_117 : f32 to vector<8x1xf32>
    %273 = arith.divf %271, %272 : vector<8x1xf32>
    %274 = vector.broadcast %273 : vector<8x1xf32> to vector<8x32xf32>
    %275 = arith.subf %265, %274 : vector<8x32xf32>
    %276 = arith.mulf %275, %275 : vector<8x32xf32>
    %cst_118 = arith.constant dense<0.000000e+00> : vector<8xf32>
    %277 = vector.multi_reduction <add>, %276, %cst_118 [1] : vector<8x32xf32> to vector<8xf32>
    %278 = vector.shape_cast %277 : vector<8xf32> to vector<8x1xf32>
    %cst_119 = arith.constant 3.200000e+01 : f32
    %279 = vector.broadcast %cst_119 : f32 to vector<8x1xf32>
    %280 = arith.divf %278, %279 : vector<8x1xf32>
    %281 = vector.broadcast %273 : vector<8x1xf32> to vector<8x32xf32>
    %282 = arith.subf %265, %281 : vector<8x32xf32>
    %cst_120 = arith.constant 9.99999974E-6 : f32
    %283 = vector.broadcast %cst_120 : f32 to vector<8x1xf32>
    %284 = arith.addf %280, %283 : vector<8x1xf32>
    %285 = math.rsqrt %284 : vector<8x1xf32>
    %286 = vector.broadcast %285 : vector<8x1xf32> to vector<8x32xf32>
    %287 = arith.mulf %282, %286 : vector<8x32xf32>
    %288 = vector.broadcast %267 : vector<1x32xf32> to vector<8x32xf32>
    %289 = arith.mulf %287, %288 : vector<8x32xf32>
    %290 = vector.broadcast %269 : vector<1x32xf32> to vector<8x32xf32>
    %291 = arith.addf %289, %290 : vector<8x32xf32>
    %292 = vector.shape_cast %291 : vector<8x32xf32> to vector<1x8x32xf32>
    %293 = arith.truncf %292 : vector<1x8x32xf32> to vector<1x8x32xbf16>
    %c0_121 = arith.constant 0 : index
    %c0_122 = arith.constant 0 : index
    %c0_123 = arith.constant 0 : index
    %294 = vector.load %arg9[%c0_121, %c0_122, %c0_123] : memref<1x8x32xbf16, #tpu.memory_space<vmem>>, vector<1x8x32xbf16>
    tpu.vector_store %arg9[%c0_121, %c0_122, %c0_123], %293 {strides = array<i32>} : memref<1x8x32xbf16, #tpu.memory_space<vmem>>, vector<1x8x32xbf16>,
    return
  }
  func.func @transform_0(%arg0: i32) -> (i32, i32, i32) {
    %c0_i32 = arith.constant 0 : i32
    %c0_i32_0 = arith.constant 0 : i32
    %c0_i32_1 = arith.constant 0 : i32
    return %arg0, %c0_i32, %c0_i32_0 : i32, i32, i32
  }
  func.func @transform_1(%arg0: i32) -> (i32, i32, i32) {
    %c0_i32 = arith.constant 0 : i32
    %c0_i32_0 = arith.constant 0 : i32
    %c0_i32_1 = arith.constant 0 : i32
    return %arg0, %c0_i32, %c0_i32_0 : i32, i32, i32
  }
  func.func @transform_2(%arg0: i32) -> (i32, i32, i32) {
    %c0_i32 = arith.constant 0 : i32
    %c0_i32_0 = arith.constant 0 : i32
    %c0_i32_1 = arith.constant 0 : i32
    %c0_i32_2 = arith.constant 0 : i32
    return %c0_i32, %c0_i32_0, %c0_i32_1 : i32, i32, i32
  }
  func.func @transform_3(%arg0: i32) -> (i32, i32, i32) {
    %c0_i32 = arith.constant 0 : i32
    %c0_i32_0 = arith.constant 0 : i32
    %c0_i32_1 = arith.constant 0 : i32
    %c0_i32_2 = arith.constant 0 : i32
    return %c0_i32, %c0_i32_0, %c0_i32_1 : i32, i32, i32
  }
  func.func @transform_4(%arg0: i32) -> (i32, i32, i32) {
    %c0_i32 = arith.constant 0 : i32
    %c0_i32_0 = arith.constant 0 : i32
    %c0_i32_1 = arith.constant 0 : i32
    %c0_i32_2 = arith.constant 0 : i32
    return %c0_i32, %c0_i32_0, %c0_i32_1 : i32, i32, i32
  }
  func.func @transform_5(%arg0: i32) -> (i32, i32, i32) {
    %c0_i32 = arith.constant 0 : i32
    %c0_i32_0 = arith.constant 0 : i32
    %c0_i32_1 = arith.constant 0 : i32
    %c0_i32_2 = arith.constant 0 : i32
    return %c0_i32, %c0_i32_0, %c0_i32_1 : i32, i32, i32
  }
  func.func @transform_6(%arg0: i32) -> (i32, i32, i32) {
    %c0_i32 = arith.constant 0 : i32
    %c0_i32_0 = arith.constant 0 : i32
    %c0_i32_1 = arith.constant 0 : i32
    %c0_i32_2 = arith.constant 0 : i32
    return %c0_i32, %c0_i32_0, %c0_i32_1 : i32, i32, i32
  }
  func.func @transform_7(%arg0: i32) -> (i32, i32, i32) {
    %c0_i32 = arith.constant 0 : i32
    %c0_i32_0 = arith.constant 0 : i32
    %c0_i32_1 = arith.constant 0 : i32
    %c0_i32_2 = arith.constant 0 : i32
    return %c0_i32, %c0_i32_0, %c0_i32_1 : i32, i32, i32
  }
  func.func @transform_8(%arg0: i32) -> (i32, i32, i32) {
    %c0_i32 = arith.constant 0 : i32
    %c0_i32_0 = arith.constant 0 : i32
    %c0_i32_1 = arith.constant 0 : i32
    return %arg0, %c0_i32, %c0_i32_0 : i32, i32, i32
  }
}

</mosaic_0001>

<llo_original>
// kernel: decoder_forward.6
$region0: #{decoder_forward.6}
  #allocation0 [shape = 'u32[]', space=smem, size = 0x4, offset = 0x4, fixed_abs, tag = 'smem constant byte address 0x4 - core index']
  #allocation1 [shape = 'u32[144,128]{1,0:T(1,128)}', space=vmem, size = 0x12000, scoped, tag = 'internal scratch']
  %s0 = inlined_call_operand.vmem [shape: bf16[16,32], index: 0, kind: input, shape index: {}]
  %s1 = inlined_call_operand.vmem [shape: bf16[32,64], index: 1, kind: input, shape index: {}]
  %s2 = inlined_call_operand.vmem [shape: f32[1,64], index: 2, kind: input, shape index: {}]
  %s3 = inlined_call_operand.vmem [shape: bf16[64,32], index: 3, kind: input, shape index: {}]
  %s4 = inlined_call_operand.vmem [shape: f32[1,32], index: 4, kind: input, shape index: {}]
  %s5 = inlined_call_operand.vmem [shape: f32[1,32], index: 5, kind: input, shape index: {}]
  %s6 = inlined_call_operand.vmem [shape: f32[1,32], index: 6, kind: input, shape index: {}]
  %s7 = inlined_call_operand.vmem [shape: bf16[16,32], index: 7, kind: output, shape index: {}]
  %s8 = sld [smem:[#allocation0]]
  $region38: #{decoder_forward.6} parent=0
    _
  %s10 = ssub.s32 1, %s8
  %s11 = scalar_select 0, %s10, %s8
  // Predicated region
  $region2: #{decoder_forward.6} parent=0 // pred_check
    _
  $region3: #{decoder_forward.6} parent=0 // pred_check_branch
    %13 = sbr.rel (0) target = $region5
  $region4: #{decoder_forward.6} parent=0 // pred_region
    _
  $region5: #{decoder_forward.6} parent=0 // pred_fallthru
    _
  // Predicated region
  $region6: #{decoder_forward.6} parent=0 // pred_check
    _
  $region7: #{decoder_forward.6} parent=0 // pred_check_branch
    %15 = sbr.rel (0) target = $region9
  $region8: #{decoder_forward.6} parent=0 // pred_region
    _
  $region9: #{decoder_forward.6} parent=0 // pred_fallthru
    _
  // Predicated region
  $region10: #{decoder_forward.6} parent=0 // pred_check
    _
  $region11: #{decoder_forward.6} parent=0 // pred_check_branch
    %17 = sbr.rel (0) target = $region13
  $region12: #{decoder_forward.6} parent=0 // pred_region
    _
  $region13: #{decoder_forward.6} parent=0 // pred_fallthru
    _
  // Predicated region
  $region14: #{decoder_forward.6} parent=0 // pred_check
    _
  $region15: #{decoder_forward.6} parent=0 // pred_check_branch
    %19 = sbr.rel (0) target = $region17
  $region16: #{decoder_forward.6} parent=0 // pred_region
    _
  $region17: #{decoder_forward.6} parent=0 // pred_fallthru
    _
  // Predicated region
  $region18: #{decoder_forward.6} parent=0 // pred_check
    _
  $region19: #{decoder_forward.6} parent=0 // pred_check_branch
    %21 = sbr.rel (0) target = $region21
  $region20: #{decoder_forward.6} parent=0 // pred_region
    _
  $region21: #{decoder_forward.6} parent=0 // pred_fallthru
    _
  // Predicated region
  $region22: #{decoder_forward.6} parent=0 // pred_check
    _
  $region23: #{decoder_forward.6} parent=0 // pred_check_branch
    %23 = sbr.rel (0) target = $region25
  $region24: #{decoder_forward.6} parent=0 // pred_region
    _
  $region25: #{decoder_forward.6} parent=0 // pred_fallthru
    _
  // Predicated region
  $region26: #{decoder_forward.6} parent=0 // pred_check
    _
  $region27: #{decoder_forward.6} parent=0 // pred_check_branch
    %25 = sbr.rel (0) target = $region29
  $region28: #{decoder_forward.6} parent=0 // pred_region
    _
  $region29: #{decoder_forward.6} parent=0 // pred_fallthru
    _
  %v27 = vld [vmem:[%s0] sm:$0xf]
  %v28 = vld [vmem:[%s0 + $0x4] sm:$0xf]
  %v29 = vld [vmem:[%s4] sm:$0x1]
  %v31 = vlaneseq
  %v32 = vshrl.u32 %v31, 7
  %v33 = vsub.s32 0, %v32
  %v34 = vrot.slane %v29, %v33
  %v36 = vadd.f32 %v34, 0.0
  %v37 = vld [vmem:[%s1] sm:$0xf]
  %v38 = vld [vmem:[%s1 + $0x4] sm:$0xf]
  %v39 = vld [vmem:[%s1 + $0x8] sm:$0xf]
  %v40 = vld [vmem:[%s1 + $0xc] sm:$0xf]
  %v41 = vld [vmem:[%s2] sm:$0x1]
  %v43 = vlaneseq
  %v44 = vshrl.u32 %v43, 7
  %v45 = vsub.s32 0, %v44
  %v46 = vrot.slane %v41, %v45
  %v50 = vunpack.c.l.b16 %v27
  %v51 = vunpack.c.l.b16 %v28
  %v52 = vpack.c.b16 %v51, %v50
  %v57 = vunpack.c.l.b16 %v37
  %v58 = vunpack.c.l.b16 %v38
  %v59 = vunpack.c.l.b16 %v39
  %v60 = vunpack.c.l.b16 %v40
  %v61 = vpack.c.b16 %v58, %v57
  %v62 = vpack.c.b16 %v60, %v59
  %vm65 = vcmask 261120
  %v67 = vsel %vm65, %v52, 0
  %69 = vmatprep.subr.bf16.mxu0 0
  %70 = vmatpush1.bf16.msra.mxu0 %v61
  %71 = vmatprep.subr.bf16.mxu0 0
  %72 = vmatpush1.bf16.msra.mxu0 %v62
  %73 = vmatprep.subr.bf16.mxu0 0
  %74 = vmatpush1.bf16.msra.mxu0 0
  %75 = vmatprep.subr.bf16.mxu0 0
  %76 = vmatpush1.bf16.msra.mxu0 0
  %77 = vmatprep.subr.bf16.mxu0 0
  %78 = vmatpush1.bf16.msra.mxu0 0
  %79 = vmatprep.subr.bf16.mxu0 0
  %80 = vmatpush1.bf16.msra.mxu0 0
  %81 = vmatprep.subr.bf16.mxu0 0
  %82 = vmatpush1.bf16.msra.mxu0 0
  %83 = vmatprep.subr.bf16.mxu0 0
  %84 = vmatpush1.bf16.msra.mxu0 0
  %85 = vmatprep.subr.bf16.mxu0 0
  %86 = vmatpush1.bf16.msra.mxu0 0
  %87 = vmatprep.subr.bf16.mxu0 0
  %88 = vmatpush1.bf16.msra.mxu0 0
  %89 = vmatprep.subr.bf16.mxu0 0
  %90 = vmatpush1.bf16.msra.mxu0 0
  %91 = vmatprep.subr.bf16.mxu0 0
  %92 = vmatpush1.bf16.msra.mxu0 0
  %93 = vmatprep.subr.bf16.mxu0 0
  %94 = vmatpush1.bf16.msra.mxu0 0
  %95 = vmatprep.subr.bf16.mxu0 0
  %96 = vmatpush1.bf16.msra.mxu0 0
  %97 = vmatprep.subr.bf16.mxu0 0
  %98 = vmatpush1.bf16.msra.mxu0 0
  %99 = vmatprep.subr.bf16.mxu0 0
  %100 = vmatpush1.bf16.msra.mxu0 0
  %101 = vmatprep.mubr.bf16.mxu0 0
  %102 = vmatmul.mubr.bf16.gmra.mrb[0].mxu0 %v67
  %v103 = vpop.f32.mrb[0].mxu0
  %v104 = vadd.f32 %v46, %v103
  %v105 = vpop.f32.mrb[0].mxu0
  %v106 = vpop.f32.mrb[0].mxu0
  %v107 = vadd.f32 %v46, %v106
  %v108 = vpop.f32.mrb[0].mxu0
  %109 = vdwg.mxu0
  %v110 = vmax.f32 %v104, 0.0
  %v111 = vmax.f32 %v107, 0.0
  %v112 = vpack.c.bf16 %v111, %v110
  %v113 = vld [vmem:[%s3] sm:$0xf]
  %v114 = vld [vmem:[%s3 + $0x4] sm:$0xf]
  %v115 = vld [vmem:[%s3 + $0x8] sm:$0xf]
  %v116 = vld [vmem:[%s3 + $0xc] sm:$0xf]
  %v117 = vld [vmem:[%s3 + $0x10] sm:$0xf]
  %v118 = vld [vmem:[%s3 + $0x14] sm:$0xf]
  %v119 = vld [vmem:[%s3 + $0x18] sm:$0xf]
  %v120 = vld [vmem:[%s3 + $0x1c] sm:$0xf]
  %v129 = vunpack.c.l.b16 %v113
  %v130 = vunpack.c.l.b16 %v114
  %v131 = vunpack.c.l.b16 %v115
  %v132 = vunpack.c.l.b16 %v116
  %v133 = vunpack.c.l.b16 %v117
  %v134 = vunpack.c.l.b16 %v118
  %v135 = vunpack.c.l.b16 %v119
  %v136 = vunpack.c.l.b16 %v120
  %v137 = vpack.c.b16 %v130, %v129
  %v138 = vpack.c.b16 %v132, %v131
  %v139 = vpack.c.b16 %v134, %v133
  %v140 = vpack.c.b16 %v136, %v135
  %vm145 = vcmask 523264
  %v147 = vsel %vm145, %v112, 0
  %149 = vmatprep.subr.bf16.mxu0 0
  %150 = vmatpush1.bf16.msra.mxu0 %v137
  %151 = vmatprep.subr.bf16.mxu0 0
  %152 = vmatpush1.bf16.msra.mxu0 %v138
  %153 = vmatprep.subr.bf16.mxu0 0
  %154 = vmatpush1.bf16.msra.mxu0 %v139
  %155 = vmatprep.subr.bf16.mxu0 0
  %156 = vmatpush1.bf16.msra.mxu0 %v140
  %157 = vmatprep.subr.bf16.mxu0 0
  %158 = vmatpush1.bf16.msra.mxu0 0
  %159 = vmatprep.subr.bf16.mxu0 0
  %160 = vmatpush1.bf16.msra.mxu0 0
  %161 = vmatprep.subr.bf16.mxu0 0
  %162 = vmatpush1.bf16.msra.mxu0 0
  %163 = vmatprep.subr.bf16.mxu0 0
  %164 = vmatpush1.bf16.msra.mxu0 0
  %165 = vmatprep.subr.bf16.mxu0 0
  %166 = vmatpush1.bf16.msra.mxu0 0
  %167 = vmatprep.subr.bf16.mxu0 0
  %168 = vmatpush1.bf16.msra.mxu0 0
  %169 = vmatprep.subr.bf16.mxu0 0
  %170 = vmatpush1.bf16.msra.mxu0 0
  %171 = vmatprep.subr.bf16.mxu0 0
  %172 = vmatpush1.bf16.msra.mxu0 0
  %173 = vmatprep.subr.bf16.mxu0 0
  %174 = vmatpush1.bf16.msra.mxu0 0
  %175 = vmatprep.subr.bf16.mxu0 0
  %176 = vmatpush1.bf16.msra.mxu0 0
  %177 = vmatprep.subr.bf16.mxu0 0
  %178 = vmatpush1.bf16.msra.mxu0 0
  %179 = vmatprep.subr.bf16.mxu0 0
  %180 = vmatpush1.bf16.msra.mxu0 0
  %181 = vmatprep.mubr.bf16.mxu0 0
  %182 = vmatmul.mubr.bf16.gmra.mrb[0].mxu0 %v147
  %v183 = vpop.f32.mrb[0].mxu0
  %v184 = vadd.f32 0.0, %v183
  %v185 = vpop.f32.mrb[0].mxu0
  %v186 = vpop.f32.mrb[0].mxu0
  %v187 = vadd.f32 0.0, %v186
  %v188 = vpop.f32.mrb[0].mxu0
  %189 = vdwg.mxu0
  %v190 = vadd.f32 %v36, %v184
  %v191 = vadd.f32 %v36, %v187
  %v192 = vunpack.c.l.bf16 %v27
  %v193 = vunpack.c.l.bf16 %v28
  %v194 = vadd.f32 %v190, %v192
  %v195 = vadd.f32 %v191, %v193
  %v196 = vld [vmem:[%s5] sm:$0x1]
  %v197 = vld [vmem:[%s6] sm:$0x1]
  %v198 = vsel %vm65, %v194, 0.0
  %199 = vadd.xlane.f32.xlu0 %v198
  %v200 = vpop.xlane.xlu0 %199
  %v201 = vsel %vm65, %v195, 0.0
  %202 = vadd.xlane.f32.xlu0 %v201
  %v203 = vpop.xlane.xlu0 %202
  %v204 = vrcp.pop 32.0
  %v205 = vmul.f32 %v200, %v204
  %v206 = vmul.f32 %v203, %v204
  %v207 = vsub.f32 %v194, %v205
  %v208 = vsub.f32 %v195, %v206
  %v209 = vmul.f32 %v207, %v207
  %v210 = vmul.f32 %v208, %v208
  %v211 = vsel %vm65, %v209, 0.0
  %212 = vadd.xlane.f32.xlu0 %v211
  %v213 = vpop.xlane.xlu0 %212
  %v214 = vsel %vm65, %v210, 0.0
  %215 = vadd.xlane.f32.xlu0 %v214
  %v216 = vpop.xlane.xlu0 %215
  %v217 = vmul.f32 %v213, %v204
  %v218 = vmul.f32 %v216, %v204
  %v219 = vadd.f32 %v217, 1e-05
  %v220 = vadd.f32 %v218, 1e-05
  %v221 = vrsqrt.pop %v219
  %v222 = vrsqrt.pop %v220
  %v223 = vmul.f32 %v207, %v221
  %v224 = vmul.f32 %v208, %v222
  %v226 = vlaneseq
  %v227 = vshrl.u32 %v226, 7
  %v228 = vsub.s32 0, %v227
  %v229 = vrot.slane %v196, %v228
  %v231 = vmul.f32 %v223, %v229
  %v232 = vmul.f32 %v224, %v229
  %v234 = vlaneseq
  %v235 = vshrl.u32 %v234, 7
  %v236 = vsub.s32 0, %v235
  %v237 = vrot.slane %v197, %v236
  %v239 = vadd.f32 %v231, %v237
  %v240 = vadd.f32 %v232, %v237
  %v241 = vpack.c.bf16 %v240, %v239
  %v243 = vunpack.c.l.b16 %v241
  %v244 = vunpack.c.h.b16 %v241
  %v245 = vpack.c.b16 %v243, %v243
  %v246 = vpack.c.b16 %v244, %v244
  %vm249 = vcmask 257024
  %250 = vst.msk [vmem:[%s7] sm:$0xf] %vm249, %v245
  %251 = vst.msk [vmem:[%s7 + $0x4] sm:$0xf] %vm249, %v246
  // Predicated region
  $region30: #{decoder_forward.6} parent=0 // pred_check
    _
  $region31: #{decoder_forward.6} parent=0 // pred_check_branch
    %253 = sbr.rel (0) target = $region33
  $region32: #{decoder_forward.6} parent=0 // pred_region
    _
  $region33: #{decoder_forward.6} parent=0 // pred_fallthru
    _
  // Predicated region
  $region34: #{decoder_forward.6} parent=0 // pred_check
    _
  $region35: #{decoder_forward.6} parent=0 // pred_check_branch
    %255 = sbr.rel (0) target = $region37
  $region36: #{decoder_forward.6} parent=0 // pred_region
    _
  $region37: #{decoder_forward.6} parent=0 // pred_fallthru
    _

// kernel: decoder_forward.9
$region0: #{decoder_forward.9}
  #allocation0 [shape = 'u32[]', space=smem, size = 0x4, offset = 0x4, fixed_abs, tag = 'smem constant byte address 0x4 - core index']
  #allocation1 [shape = 'u32[144,128]{1,0:T(1,128)}', space=vmem, size = 0x12000, scoped, tag = 'internal scratch']
  %s0 = inlined_call_operand.vmem [shape: bf16[16,32], index: 0, kind: input, shape index: {}]
  %s1 = inlined_call_operand.vmem [shape: bf16[32,128], index: 1, kind: input, shape index: {}]
  %s2 = inlined_call_operand.vmem [shape: f32[1,128], index: 2, kind: input, shape index: {}]
  %s3 = inlined_call_operand.vmem [shape: f32[16,128], index: 3, kind: output, shape index: {}]
  %s4 = sld [smem:[#allocation0]]
  $region22: #{decoder_forward.9} parent=0
    _
  %s6 = ssub.s32 1, %s4
  %s7 = scalar_select 0, %s6, %s4
  // Predicated region
  $region2: #{decoder_forward.9} parent=0 // pred_check
    _
  $region3: #{decoder_forward.9} parent=0 // pred_check_branch
    %9 = sbr.rel (0) target = $region5
  $region4: #{decoder_forward.9} parent=0 // pred_region
    _
  $region5: #{decoder_forward.9} parent=0 // pred_fallthru
    _
  // Predicated region
  $region6: #{decoder_forward.9} parent=0 // pred_check
    _
  $region7: #{decoder_forward.9} parent=0 // pred_check_branch
    %11 = sbr.rel (0) target = $region9
  $region8: #{decoder_forward.9} parent=0 // pred_region
    _
  $region9: #{decoder_forward.9} parent=0 // pred_fallthru
    _
  // Predicated region
  $region10: #{decoder_forward.9} parent=0 // pred_check
    _
  $region11: #{decoder_forward.9} parent=0 // pred_check_branch
    %13 = sbr.rel (0) target = $region13
  $region12: #{decoder_forward.9} parent=0 // pred_region
    _
  $region13: #{decoder_forward.9} parent=0 // pred_fallthru
    _
  %v15 = vld [vmem:[%s0] sm:$0xf]
  %v16 = vld [vmem:[%s0 + $0x4] sm:$0xf]
  %v17 = vld [vmem:[%s1] sm:$0xf]
  %v18 = vld [vmem:[%s1 + $0x4] sm:$0xf]
  %v19 = vld [vmem:[%s1 + $0x8] sm:$0xf]
  %v20 = vld [vmem:[%s1 + $0xc] sm:$0xf]
  %v21 = vld [vmem:[%s2] sm:$0x1]
  %v23 = vlaneseq
  %v24 = vshrl.u32 %v23, 7
  %v25 = vsub.s32 0, %v24
  %v26 = vrot.slane %v21, %v25
  %v30 = vunpack.c.l.b16 %v15
  %v31 = vunpack.c.l.b16 %v16
  %v32 = vpack.c.b16 %v31, %v30
  %v37 = vunpack.c.l.b16 %v17
  %v38 = vunpack.c.l.b16 %v18
  %v39 = vunpack.c.l.b16 %v19
  %v40 = vunpack.c.l.b16 %v20
  %v41 = vpack.c.b16 %v38, %v37
  %v42 = vpack.c.b16 %v40, %v39
  %vm45 = vcmask 261120
  %v47 = vsel %vm45, %v32, 0
  %49 = vmatprep.subr.bf16.mxu0 0
  %50 = vmatpush1.bf16.msra.mxu0 %v41
  %51 = vmatprep.subr.bf16.mxu0 0
  %52 = vmatpush1.bf16.msra.mxu0 %v42
  %53 = vmatprep.subr.bf16.mxu0 0
  %54 = vmatpush1.bf16.msra.mxu0 0
  %55 = vmatprep.subr.bf16.mxu0 0
  %56 = vmatpush1.bf16.msra.mxu0 0
  %57 = vmatprep.subr.bf16.mxu0 0
  %58 = vmatpush1.bf16.msra.mxu0 0
  %59 = vmatprep.subr.bf16.mxu0 0
  %60 = vmatpush1.bf16.msra.mxu0 0
  %61 = vmatprep.subr.bf16.mxu0 0
  %62 = vmatpush1.bf16.msra.mxu0 0
  %63 = vmatprep.subr.bf16.mxu0 0
  %64 = vmatpush1.bf16.msra.mxu0 0
  %65 = vmatprep.subr.bf16.mxu0 0
  %66 = vmatpush1.bf16.msra.mxu0 0
  %67 = vmatprep.subr.bf16.mxu0 0
  %68 = vmatpush1.bf16.msra.mxu0 0
  %69 = vmatprep.subr.bf16.mxu0 0
  %70 = vmatpush1.bf16.msra.mxu0 0
  %71 = vmatprep.subr.bf16.mxu0 0
  %72 = vmatpush1.bf16.msra.mxu0 0
  %73 = vmatprep.subr.bf16.mxu0 0
  %74 = vmatpush1.bf16.msra.mxu0 0
  %75 = vmatprep.subr.bf16.mxu0 0
  %76 = vmatpush1.bf16.msra.mxu0 0
  %77 = vmatprep.subr.bf16.mxu0 0
  %78 = vmatpush1.bf16.msra.mxu0 0
  %79 = vmatprep.subr.bf16.mxu0 0
  %80 = vmatpush1.bf16.msra.mxu0 0
  %81 = vmatprep.mubr.bf16.mxu0 0
  %82 = vmatmul.mubr.bf16.gmra.mrb[0].mxu0 %v47
  %v83 = vpop.f32.mrb[0].mxu0
  %v84 = vadd.f32 %v26, %v83
  %v85 = vpop.f32.mrb[0].mxu0
  %v86 = vpop.f32.mrb[0].mxu0
  %v87 = vadd.f32 %v26, %v86
  %v88 = vpop.f32.mrb[0].mxu0
  %89 = vdwg.mxu0
  %90 = vst [vmem:[%s3] sm:$0xff] %v84
  %91 = vst [vmem:[%s3 + $0x8] sm:$0xff] %v87
  // Predicated region
  $region14: #{decoder_forward.9} parent=0 // pred_check
    _
  $region15: #{decoder_forward.9} parent=0 // pred_check_branch
    %93 = sbr.rel (0) target = $region17
  $region16: #{decoder_forward.9} parent=0 // pred_region
    _
  $region17: #{decoder_forward.9} parent=0 // pred_fallthru
    _
  // Predicated region
  $region18: #{decoder_forward.9} parent=0 // pred_check
    _
  $region19: #{decoder_forward.9} parent=0 // pred_check_branch
    %95 = sbr.rel (0) target = $region21
  $region20: #{decoder_forward.9} parent=0 // pred_region
    _
  $region21: #{decoder_forward.9} parent=0 // pred_fallthru
    _

// kernel: decoder_forward.5
$region0: #{decoder_forward.5}
  #allocation0 [shape = 'u32[]', space=smem, size = 0x4, offset = 0x4, fixed_abs, tag = 'smem constant byte address 0x4 - core index']
  #allocation1 [shape = 'u32[144,128]{1,0:T(1,128)}', space=vmem, size = 0x12000, scoped, tag = 'internal scratch']
  %s0 = inlined_call_operand.vmem [shape: bf16[2,8,32], index: 0, kind: input, shape index: {}]
  %s1 = inlined_call_operand.vmem [shape: bf16[2,8,32], index: 1, kind: input, shape index: {}]
  %s2 = inlined_call_operand.vmem [shape: bf16[4,32,32], index: 2, kind: input, shape index: {}]
  %s3 = inlined_call_operand.vmem [shape: f32[4,1,32], index: 3, kind: input, shape index: {}]
  %s4 = inlined_call_operand.vmem [shape: bf16[4,32,32], index: 4, kind: input, shape index: {}]
  %s5 = inlined_call_operand.vmem [shape: f32[4,1,32], index: 5, kind: input, shape index: {}]
  %s6 = inlined_call_operand.vmem [shape: f32[2,1,32], index: 6, kind: input, shape index: {}]
  %s7 = inlined_call_operand.vmem [shape: f32[2,1,32], index: 7, kind: input, shape index: {}]
  %s8 = inlined_call_operand.vmem [shape: bf16[2,8,32], index: 8, kind: output, shape index: {}]
  %s9 = sld [smem:[#allocation0]]
  $region65: #{decoder_forward.5} parent=0
    _
  %s11 = ssub.s32 1, %s9
  %s12 = scalar_select 0, %s11, %s9
  loop: start=0, step=1, limit=4
  $region2: #{decoder_forward.5} parent=0 // loop_pre_header
    _
  $region3: #{decoder_forward.5} parent=0 // loop_header
    %s14 = sphi 0, %s18
    %p15 = scmp.ge.s32.totalorder %s14, 4
    %s24 = sphi 0, %s26
    %s27 = sphi 0, %s24
    %s28 = sphi 0, %s27
    %s44 = sphi 0, %s28
    %s50 = sphi 0, %s52
    %s53 = sphi 0, %s50
    %s54 = sphi 0, %s53
    %s70 = sphi 0, %s54
    %s74 = sphi 0, %s74
    %s76 = sphi 0, %s74
    %s77 = sphi 0, %s76
    %s91 = sphi 0, %s77
    %s95 = sphi 0, %s95
    %s97 = sphi 0, %s95
    %s98 = sphi 0, %s97
    %s112 = sphi 0, %s98
    %s116 = sphi 0, %s116
    %s118 = sphi 0, %s116
    %s119 = sphi 0, %s118
    %s133 = sphi 0, %s119
    %s137 = sphi 0, %s137
    %s139 = sphi 0, %s137
    %s140 = sphi 0, %s139
    %s154 = sphi 0, %s140
    %s158 = sphi 0, %s158
    %s160 = sphi 0, %s158
    %s161 = sphi 0, %s160
    %s175 = sphi 0, %s161
    %s179 = sphi 0, %s179
    %s181 = sphi 0, %s179
    %s182 = sphi 0, %s181
    %s196 = sphi 0, %s182
    %s202 = sphi 0, %s204
    %s205 = sphi 0, %s202
    %s206 = sphi 0, %s205
    %s222 = sphi 0, %s206
  $region4: #{decoder_forward.5} parent=0 // loop_header_branch
    %17 = sbr.rel (%p15) target = $region8
  $region5: #{decoder_forward.5} parent=0 // loop_body
    %s19 = ssub.s32 %s14, 1
    %s20 = ssub.s32 %s14, 2
    %s21 = sadd.s32 %s14, 1
    %s22 = ssub.s32 %s14, %s21
    %p23 = scmp.eq.s32.totalorder %s22, 0
    %s25 = sadd.s32 %s24, 1
    %s26 = scalar_select %p23, %s24, %s25
    %p29 = pneg %p23
    %p30 = scmp.eq.s32.totalorder %s14, 1
    %p31 = por %p29, %p30
    %p32 = scmp.ne.s32.totalorder %s24, %s27
    %p33 = scmp.eq.s32.totalorder %s14, 0
    %p34 = por %p32, %p33
    %p35 = scmp.ne.s32.totalorder %s24, %s27
    %p36 = scmp.eq.s32.totalorder %s19, 1
    %p37 = por %p35, %p36
    %p38 = scmp.ne.s32.totalorder %s27, %s28
    %p39 = scmp.eq.s32.totalorder %s19, 0
    %p40 = por %p38, %p39
    %p41 = scmp.ne.s32.totalorder %s27, %s28
    %p42 = scmp.eq.s32.totalorder %s20, 1
    %p43 = por %p41, %p42
    %p45 = scmp.ne.s32.totalorder %s28, %s44
    %p46 = scmp.eq.s32.totalorder %s20, 0
    %p47 = por %p45, %p46
    %s48 = ssub.s32 %s14, %s21
    %p49 = scmp.eq.s32.totalorder %s48, 0
    %s51 = sadd.s32 %s50, 1
    %s52 = scalar_select %p49, %s50, %s51
    %p55 = pneg %p49
    %p56 = scmp.eq.s32.totalorder %s14, 1
    %p57 = por %p55, %p56
    %p58 = scmp.ne.s32.totalorder %s50, %s53
    %p59 = scmp.eq.s32.totalorder %s14, 0
    %p60 = por %p58, %p59
    %p61 = scmp.ne.s32.totalorder %s50, %s53
    %p62 = scmp.eq.s32.totalorder %s19, 1
    %p63 = por %p61, %p62
    %p64 = scmp.ne.s32.totalorder %s53, %s54
    %p65 = scmp.eq.s32.totalorder %s19, 0
    %p66 = por %p64, %p65
    %p67 = scmp.ne.s32.totalorder %s53, %s54
    %p68 = scmp.eq.s32.totalorder %s20, 1
    %p69 = por %p67, %p68
    %p71 = scmp.ne.s32.totalorder %s54, %s70
    %p72 = scmp.eq.s32.totalorder %s20, 0
    %p73 = por %p71, %p72
    %s75 = sadd.s32 %s74, 1
    %p78 = scmp.eq.s32.totalorder %s14, 1
    %p79 = scmp.ne.s32.totalorder %s74, %s76
    %p80 = scmp.eq.s32.totalorder %s14, 0
    %p81 = por %p79, %p80
    %p82 = scmp.ne.s32.totalorder %s74, %s76
    %p83 = scmp.eq.s32.totalorder %s19, 1
    %p84 = por %p82, %p83
    %p85 = scmp.ne.s32.totalorder %s76, %s77
    %p86 = scmp.eq.s32.totalorder %s19, 0
    %p87 = por %p85, %p86
    %p88 = scmp.ne.s32.totalorder %s76, %s77
    %p89 = scmp.eq.s32.totalorder %s20, 1
    %p90 = por %p88, %p89
    %p92 = scmp.ne.s32.totalorder %s77, %s91
    %p93 = scmp.eq.s32.totalorder %s20, 0
    %p94 = por %p92, %p93
    %s96 = sadd.s32 %s95, 1
    %p99 = scmp.eq.s32.totalorder %s14, 1
    %p100 = scmp.ne.s32.totalorder %s95, %s97
    %p101 = scmp.eq.s32.totalorder %s14, 0
    %p102 = por %p100, %p101
    %p103 = scmp.ne.s32.totalorder %s95, %s97
    %p104 = scmp.eq.s32.totalorder %s19, 1
    %p105 = por %p103, %p104
    %p106 = scmp.ne.s32.totalorder %s97, %s98
    %p107 = scmp.eq.s32.totalorder %s19, 0
    %p108 = por %p106, %p107
    %p109 = scmp.ne.s32.totalorder %s97, %s98
    %p110 = scmp.eq.s32.totalorder %s20, 1
    %p111 = por %p109, %p110
    %p113 = scmp.ne.s32.totalorder %s98, %s112
    %p114 = scmp.eq.s32.totalorder %s20, 0
    %p115 = por %p113, %p114
    %s117 = sadd.s32 %s116, 1
    %p120 = scmp.eq.s32.totalorder %s14, 1
    %p121 = scmp.ne.s32.totalorder %s116, %s118
    %p122 = scmp.eq.s32.totalorder %s14, 0
    %p123 = por %p121, %p122
    %p124 = scmp.ne.s32.totalorder %s116, %s118
    %p125 = scmp.eq.s32.totalorder %s19, 1
    %p126 = por %p124, %p125
    %p127 = scmp.ne.s32.totalorder %s118, %s119
    %p128 = scmp.eq.s32.totalorder %s19, 0
    %p129 = por %p127, %p128
    %p130 = scmp.ne.s32.totalorder %s118, %s119
    %p131 = scmp.eq.s32.totalorder %s20, 1
    %p132 = por %p130, %p131
    %p134 = scmp.ne.s32.totalorder %s119, %s133
    %p135 = scmp.eq.s32.totalorder %s20, 0
    %p136 = por %p134, %p135
    %s138 = sadd.s32 %s137, 1
    %p141 = scmp.eq.s32.totalorder %s14, 1
    %p142 = scmp.ne.s32.totalorder %s137, %s139
    %p143 = scmp.eq.s32.totalorder %s14, 0
    %p144 = por %p142, %p143
    %p145 = scmp.ne.s32.totalorder %s137, %s139
    %p146 = scmp.eq.s32.totalorder %s19, 1
    %p147 = por %p145, %p146
    %p148 = scmp.ne.s32.totalorder %s139, %s140
    %p149 = scmp.eq.s32.totalorder %s19, 0
    %p150 = por %p148, %p149
    %p151 = scmp.ne.s32.totalorder %s139, %s140
    %p152 = scmp.eq.s32.totalorder %s20, 1
    %p153 = por %p151, %p152
    %p155 = scmp.ne.s32.totalorder %s140, %s154
    %p156 = scmp.eq.s32.totalorder %s20, 0
    %p157 = por %p155, %p156
    %s159 = sadd.s32 %s158, 1
    %p162 = scmp.eq.s32.totalorder %s14, 1
    %p163 = scmp.ne.s32.totalorder %s158, %s160
    %p164 = scmp.eq.s32.totalorder %s14, 0
    %p165 = por %p163, %p164
    %p166 = scmp.ne.s32.totalorder %s158, %s160
    %p167 = scmp.eq.s32.totalorder %s19, 1
    %p168 = por %p166, %p167
    %p169 = scmp.ne.s32.totalorder %s160, %s161
    %p170 = scmp.eq.s32.totalorder %s19, 0
    %p171 = por %p169, %p170
    %p172 = scmp.ne.s32.totalorder %s160, %s161
    %p173 = scmp.eq.s32.totalorder %s20, 1
    %p174 = por %p172, %p173
    %p176 = scmp.ne.s32.totalorder %s161, %s175
    %p177 = scmp.eq.s32.totalorder %s20, 0
    %p178 = por %p176, %p177
    %s180 = sadd.s32 %s179, 1
    %p183 = scmp.eq.s32.totalorder %s14, 1
    %p184 = scmp.ne.s32.totalorder %s179, %s181
    %p185 = scmp.eq.s32.totalorder %s14, 0
    %p186 = por %p184, %p185
    %p187 = scmp.ne.s32.totalorder %s179, %s181
    %p188 = scmp.eq.s32.totalorder %s19, 1
    %p189 = por %p187, %p188
    %p190 = scmp.ne.s32.totalorder %s181, %s182
    %p191 = scmp.eq.s32.totalorder %s19, 0
    %p192 = por %p190, %p191
    %p193 = scmp.ne.s32.totalorder %s181, %s182
    %p194 = scmp.eq.s32.totalorder %s20, 1
    %p195 = por %p193, %p194
    %p197 = scmp.ne.s32.totalorder %s182, %s196
    %p198 = scmp.eq.s32.totalorder %s20, 0
    %p199 = por %p197, %p198
    %s200 = ssub.s32 %s14, %s21
    %p201 = scmp.eq.s32.totalorder %s200, 0
    %s203 = sadd.s32 %s202, 1
    %s204 = scalar_select %p201, %s202, %s203
    %p207 = pneg %p201
    %p208 = scmp.eq.s32.totalorder %s14, 1
    %p209 = por %p207, %p208
    %p210 = scmp.ne.s32.totalorder %s202, %s205
    %p211 = scmp.eq.s32.totalorder %s14, 0
    %p212 = por %p210, %p211
    %p213 = scmp.ne.s32.totalorder %s202, %s205
    %p214 = scmp.eq.s32.totalorder %s19, 1
    %p215 = por %p213, %p214
    %p216 = scmp.ne.s32.totalorder %s205, %s206
    %p217 = scmp.eq.s32.totalorder %s19, 0
    %p218 = por %p216, %p217
    %p219 = scmp.ne.s32.totalorder %s205, %s206
    %p220 = scmp.eq.s32.totalorder %s20, 1
    %p221 = por %p219, %p220
    %p223 = scmp.ne.s32.totalorder %s206, %s222
    %p224 = scmp.eq.s32.totalorder %s20, 0
    %p225 = por %p223, %p224
    %p226 = scmp.le.s32.totalorder 1, %s14
    %p227 = scmp.lt.s32.totalorder %s14, 3
    %p228 = pnand %p226, %p227
    %p229 = pneg %p228
    // Predicated region
    $region9: #{decoder_forward.5} parent=5 // pred_check
      _
    $region10: #{decoder_forward.5} parent=5 // pred_check_branch
      %231 = sbr.rel (%p228) target = $region12
    $region11: #{decoder_forward.5} parent=5 // pred_region
      %s232 = ssub.s32 %s14, 1
      // Predicated region
      $region13: #{decoder_forward.5} parent=11 // pred_check
        %p233 = pneg %p87
      $region14: #{decoder_forward.5} parent=11 // pred_check_branch
        %235 = sbr.rel (%p233) target = $region16
      $region15: #{decoder_forward.5} parent=11 // pred_region
        _
      $region16: #{decoder_forward.5} parent=11 // pred_fallthru
        _
      // Predicated region
      $region17: #{decoder_forward.5} parent=11 // pred_check
        %p236 = pneg %p108
      $region18: #{decoder_forward.5} parent=11 // pred_check_branch
        %238 = sbr.rel (%p236) target = $region20
      $region19: #{decoder_forward.5} parent=11 // pred_region
        _
      $region20: #{decoder_forward.5} parent=11 // pred_fallthru
        _
      // Predicated region
      $region21: #{decoder_forward.5} parent=11 // pred_check
        %p239 = pneg %p129
      $region22: #{decoder_forward.5} parent=11 // pred_check_branch
        %241 = sbr.rel (%p239) target = $region24
      $region23: #{decoder_forward.5} parent=11 // pred_region
        _
      $region24: #{decoder_forward.5} parent=11 // pred_fallthru
        _
      // Predicated region
      $region25: #{decoder_forward.5} parent=11 // pred_check
        %p242 = pneg %p150
      $region26: #{decoder_forward.5} parent=11 // pred_check_branch
        %244 = sbr.rel (%p242) target = $region28
      $region27: #{decoder_forward.5} parent=11 // pred_region
        _
      $region28: #{decoder_forward.5} parent=11 // pred_fallthru
        _
      // Predicated region
      $region29: #{decoder_forward.5} parent=11 // pred_check
        %p245 = pneg %p171
      $region30: #{decoder_forward.5} parent=11 // pred_check_branch
        %247 = sbr.rel (%p245) target = $region32
      $region31: #{decoder_forward.5} parent=11 // pred_region
        _
      $region32: #{decoder_forward.5} parent=11 // pred_fallthru
        _
      // Predicated region
      $region33: #{decoder_forward.5} parent=11 // pred_check
        %p248 = pneg %p192
      $region34: #{decoder_forward.5} parent=11 // pred_check_branch
        %250 = sbr.rel (%p248) target = $region36
      $region35: #{decoder_forward.5} parent=11 // pred_region
        _
      $region36: #{decoder_forward.5} parent=11 // pred_fallthru
        _
    $region12: #{decoder_forward.5} parent=5 // pred_fallthru
      _
    %p251 = scmp.lt.s32.totalorder %s14, 2
    // Predicated region
    $region37: #{decoder_forward.5} parent=5 // pred_check
      %p252 = pneg %p251
    $region38: #{decoder_forward.5} parent=5 // pred_check_branch
      %254 = sbr.rel (%p252) target = $region40
    $region39: #{decoder_forward.5} parent=5 // pred_region
      // Predicated region
      $region41: #{decoder_forward.5} parent=39 // pred_check
        %p255 = pneg %p34
      $region42: #{decoder_forward.5} parent=39 // pred_check_branch
        %257 = sbr.rel (%p255) target = $region44
      $region43: #{decoder_forward.5} parent=39 // pred_region
        %p258 = scmp.lt.s32.totalorder %s14, 1
        %s259 = scalar_select %p258, %s14, 1
        %s260 = smul.addr %s259, 4
        %s261 = scalar_lea.vmem %s0, %s260
      $region44: #{decoder_forward.5} parent=39 // pred_fallthru
        _
      // Predicated region
      $region45: #{decoder_forward.5} parent=39 // pred_check
        %p262 = pneg %p60
      $region46: #{decoder_forward.5} parent=39 // pred_check_branch
        %264 = sbr.rel (%p262) target = $region48
      $region47: #{decoder_forward.5} parent=39 // pred_region
        %p265 = scmp.lt.s32.totalorder %s14, 1
        %s266 = scalar_select %p265, %s14, 1
        %s267 = smul.addr %s266, 4
        %s268 = scalar_lea.vmem %s1, %s267
      $region48: #{decoder_forward.5} parent=39 // pred_fallthru
        _
    $region40: #{decoder_forward.5} parent=5 // pred_fallthru
      _
    %p269 = scmp.le.s32.totalorder 1, %s14
    %p270 = scmp.lt.s32.totalorder %s14, 3
    %p271 = pnand %p269, %p270
    %p272 = pneg %p271
    // Predicated region
    $region49: #{decoder_forward.5} parent=5 // pred_check
      _
    $region50: #{decoder_forward.5} parent=5 // pred_check_branch
      %274 = sbr.rel (%p271) target = $region52
    $region51: #{decoder_forward.5} parent=5 // pred_region
      %s275 = ssub.s32 %s14, 1
      %p276 = scmp.lt.s32.totalorder %s19, 1
      %s277 = scalar_select %p276, %s19, 1
      %s278 = smul.addr %s277, 4
      %s279 = scalar_lea.vmem %s0, %s278
      %p280 = pneg %p40
      %p281 = pneg %p37
      %p282 = scmp.lt.s32.totalorder %s19, 1
      %s283 = scalar_select %p282, %s19, 1
      %s284 = smul.addr %s283, 4
      %s285 = scalar_lea.vmem %s1, %s284
      %p286 = pneg %p66
      %p287 = pneg %p63
      %p288 = pneg %p87
      %p289 = pneg %p84
      %p290 = pneg %p108
      %p291 = pneg %p105
      %p292 = pneg %p129
      %p293 = pneg %p126
      %p294 = pneg %p150
      %p295 = pneg %p147
      %p296 = pneg %p171
      %p297 = pneg %p168
      %p298 = pneg %p192
      %p299 = pneg %p189
      %p300 = pneg %p218
      %p301 = pneg %p215
      %p302 = scmp.lt.s32.totalorder %s19, 1
      %s303 = scalar_select %p302, %s19, 1
      %s304 = smul.addr %s303, 4
      %s305 = scalar_lea.vmem %s8, %s304
      %p306 = scmp.lt.s32.totalorder %s19, 1
      %s307 = scalar_select %p306, %s19, 1
      %s308 = smul.addr %s307, 4
      %s309 = scalar_lea.vmem %s0, %s308
      %p310 = scmp.lt.s32.totalorder %s19, 1
      %s311 = scalar_select %p310, %s19, 1
      %s312 = smul.addr %s311, 4
      %s313 = scalar_lea.vmem %s1, %s312
      %p314 = scmp.lt.s32.totalorder %s19, 1
      %s315 = scalar_select %p314, %s19, 1
      %s316 = smul.addr %s315, 4
      %s317 = scalar_lea.vmem %s8, %s316
      %v319 = vld [vmem:[%s309] sm:$0xf]
      %v320 = vld [vmem:[%s313] sm:$0xf]
      %v321 = vld [vmem:[%s2] sm:$0xf]
      %v322 = vld [vmem:[%s2 + $0x4] sm:$0xf]
      %v323 = vld [vmem:[%s2 + $0x8] sm:$0xf]
      %v324 = vld [vmem:[%s2 + $0xc] sm:$0xf]
      %v325 = vld [vmem:[%s3] sm:$0x1]
      %v327 = vlaneseq
      %v328 = vshrl.u32 %v327, 7
      %v329 = vsub.s32 0, %v328
      %v330 = vrot.slane %v325, %v329
      %v336 = vunpack.c.l.b16 %v321
      %v337 = vunpack.c.l.b16 %v322
      %v338 = vunpack.c.l.b16 %v323
      %v339 = vunpack.c.l.b16 %v324
      %v340 = vpack.c.b16 %v337, %v336
      %v341 = vpack.c.b16 %v339, %v338
      %vm344 = vcmask 261120
      %v346 = vsel %vm344, %v319, 0
      %348 = vmatprep.subr.bf16.mxu0 0
      %349 = vmatpush1.bf16.msra.mxu0 %v340
      %350 = vmatprep.subr.bf16.mxu0 0
      %351 = vmatpush1.bf16.msra.mxu0 %v341
      %352 = vmatprep.subr.bf16.mxu0 0
      %353 = vmatpush1.bf16.msra.mxu0 0
      %354 = vmatprep.subr.bf16.mxu0 0
      %355 = vmatpush1.bf16.msra.mxu0 0
      %356 = vmatprep.subr.bf16.mxu0 0
      %357 = vmatpush1.bf16.msra.mxu0 0
      %358 = vmatprep.subr.bf16.mxu0 0
      %359 = vmatpush1.bf16.msra.mxu0 0
      %360 = vmatprep.subr.bf16.mxu0 0
      %361 = vmatpush1.bf16.msra.mxu0 0
      %362 = vmatprep.subr.bf16.mxu0 0
      %363 = vmatpush1.bf16.msra.mxu0 0
      %364 = vmatprep.subr.bf16.mxu0 0
      %365 = vmatpush1.bf16.msra.mxu0 0
      %366 = vmatprep.subr.bf16.mxu0 0
      %367 = vmatpush1.bf16.msra.mxu0 0
      %368 = vmatprep.subr.bf16.mxu0 0
      %369 = vmatpush1.bf16.msra.mxu0 0
      %370 = vmatprep.subr.bf16.mxu0 0
      %371 = vmatpush1.bf16.msra.mxu0 0
      %372 = vmatprep.subr.bf16.mxu0 0
      %373 = vmatpush1.bf16.msra.mxu0 0
      %374 = vmatprep.subr.bf16.mxu0 0
      %375 = vmatpush1.bf16.msra.mxu0 0
      %376 = vmatprep.subr.bf16.mxu0 0
      %377 = vmatpush1.bf16.msra.mxu0 0
      %378 = vmatprep.subr.bf16.mxu0 0
      %379 = vmatpush1.bf16.msra.mxu0 0
      %380 = vmatprep.mubr.bf16.mxu0 0
      %381 = vmatmul.mubr.bf16.gmra.mrb[0].mxu0 %v346
      %v382 = vpop.f32.mrb[0].mxu0
      %v383 = vadd.f32 %v330, %v382
      %v384 = vpop.f32.mrb[0].mxu0
      %v385 = vpop.f32.mrb[0].mxu0
      %v386 = vpop.f32.mrb[0].mxu0
      %387 = vdwg.mxu0
      %v388 = vpack.c.bf16 %v383, %v383
      %s389 = scalar_lea.vmem %s2, 16
      %v390 = vld [vmem:[%s389] sm:$0xf]
      %v391 = vld [vmem:[%s389 + $0x4] sm:$0xf]
      %v392 = vld [vmem:[%s389 + $0x8] sm:$0xf]
      %v393 = vld [vmem:[%s389 + $0xc] sm:$0xf]
      %s394 = scalar_lea.vmem %s3, 1
      %v395 = vld [vmem:[%s394] sm:$0x1]
      %v397 = vlaneseq
      %v398 = vshrl.u32 %v397, 7
      %v399 = vsub.s32 0, %v398
      %v400 = vrot.slane %v395, %v399
      %v406 = vunpack.c.l.b16 %v390
      %v407 = vunpack.c.l.b16 %v391
      %v408 = vunpack.c.l.b16 %v392
      %v409 = vunpack.c.l.b16 %v393
      %v410 = vpack.c.b16 %v407, %v406
      %v411 = vpack.c.b16 %v409, %v408
      %414 = vmatprep.subr.bf16.mxu0 0
      %415 = vmatpush1.bf16.msra.mxu0 %v410
      %416 = vmatprep.subr.bf16.mxu0 0
      %417 = vmatpush1.bf16.msra.mxu0 %v411
      %418 = vmatprep.subr.bf16.mxu0 0
      %419 = vmatpush1.bf16.msra.mxu0 0
      %420 = vmatprep.subr.bf16.mxu0 0
      %421 = vmatpush1.bf16.msra.mxu0 0
      %422 = vmatprep.subr.bf16.mxu0 0
      %423 = vmatpush1.bf16.msra.mxu0 0
      %424 = vmatprep.subr.bf16.mxu0 0
      %425 = vmatpush1.bf16.msra.mxu0 0
      %426 = vmatprep.subr.bf16.mxu0 0
      %427 = vmatpush1.bf16.msra.mxu0 0
      %428 = vmatprep.subr.bf16.mxu0 0
      %429 = vmatpush1.bf16.msra.mxu0 0
      %430 = vmatprep.subr.bf16.mxu0 0
      %431 = vmatpush1.bf16.msra.mxu0 0
      %432 = vmatprep.subr.bf16.mxu0 0
      %433 = vmatpush1.bf16.msra.mxu0 0
      %434 = vmatprep.subr.bf16.mxu0 0
      %435 = vmatpush1.bf16.msra.mxu0 0
      %436 = vmatprep.subr.bf16.mxu0 0
      %437 = vmatpush1.bf16.msra.mxu0 0
      %438 = vmatprep.subr.bf16.mxu0 0
      %439 = vmatpush1.bf16.msra.mxu0 0
      %440 = vmatprep.subr.bf16.mxu0 0
      %441 = vmatpush1.bf16.msra.mxu0 0
      %442 = vmatprep.subr.bf16.mxu0 0
      %443 = vmatpush1.bf16.msra.mxu0 0
      %444 = vmatprep.subr.bf16.mxu0 0
      %445 = vmatpush1.bf16.msra.mxu0 0
      %446 = vmatprep.mubr.bf16.mxu0 0
      %447 = vmatmul.mubr.bf16.gmra.mrb[0].mxu0 %v346
      %v448 = vpop.f32.mrb[0].mxu0
      %v449 = vadd.f32 %v400, %v448
      %v450 = vpop.f32.mrb[0].mxu0
      %v451 = vpop.f32.mrb[0].mxu0
      %v452 = vpop.f32.mrb[0].mxu0
      %453 = vdwg.mxu0
      %v454 = vpack.c.bf16 %v449, %v449
      %s455 = scalar_lea.vmem %s2, 32
      %v456 = vld [vmem:[%s455] sm:$0xf]
      %v457 = vld [vmem:[%s455 + $0x4] sm:$0xf]
      %v458 = vld [vmem:[%s455 + $0x8] sm:$0xf]
      %v459 = vld [vmem:[%s455 + $0xc] sm:$0xf]
      %s460 = scalar_lea.vmem %s3, 2
      %v461 = vld [vmem:[%s460] sm:$0x1]
      %v463 = vlaneseq
      %v464 = vshrl.u32 %v463, 7
      %v465 = vsub.s32 0, %v464
      %v466 = vrot.slane %v461, %v465
      %v472 = vunpack.c.l.b16 %v456
      %v473 = vunpack.c.l.b16 %v457
      %v474 = vunpack.c.l.b16 %v458
      %v475 = vunpack.c.l.b16 %v459
      %v476 = vpack.c.b16 %v473, %v472
      %v477 = vpack.c.b16 %v475, %v474
      %480 = vmatprep.subr.bf16.mxu0 0
      %481 = vmatpush1.bf16.msra.mxu0 %v476
      %482 = vmatprep.subr.bf16.mxu0 0
      %483 = vmatpush1.bf16.msra.mxu0 %v477
      %484 = vmatprep.subr.bf16.mxu0 0
      %485 = vmatpush1.bf16.msra.mxu0 0
      %486 = vmatprep.subr.bf16.mxu0 0
      %487 = vmatpush1.bf16.msra.mxu0 0
      %488 = vmatprep.subr.bf16.mxu0 0
      %489 = vmatpush1.bf16.msra.mxu0 0
      %490 = vmatprep.subr.bf16.mxu0 0
      %491 = vmatpush1.bf16.msra.mxu0 0
      %492 = vmatprep.subr.bf16.mxu0 0
      %493 = vmatpush1.bf16.msra.mxu0 0
      %494 = vmatprep.subr.bf16.mxu0 0
      %495 = vmatpush1.bf16.msra.mxu0 0
      %496 = vmatprep.subr.bf16.mxu0 0
      %497 = vmatpush1.bf16.msra.mxu0 0
      %498 = vmatprep.subr.bf16.mxu0 0
      %499 = vmatpush1.bf16.msra.mxu0 0
      %500 = vmatprep.subr.bf16.mxu0 0
      %501 = vmatpush1.bf16.msra.mxu0 0
      %502 = vmatprep.subr.bf16.mxu0 0
      %503 = vmatpush1.bf16.msra.mxu0 0
      %504 = vmatprep.subr.bf16.mxu0 0
      %505 = vmatpush1.bf16.msra.mxu0 0
      %506 = vmatprep.subr.bf16.mxu0 0
      %507 = vmatpush1.bf16.msra.mxu0 0
      %508 = vmatprep.subr.bf16.mxu0 0
      %509 = vmatpush1.bf16.msra.mxu0 0
      %510 = vmatprep.subr.bf16.mxu0 0
      %511 = vmatpush1.bf16.msra.mxu0 0
      %512 = vmatprep.mubr.bf16.mxu0 0
      %513 = vmatmul.mubr.bf16.gmra.mrb[0].mxu0 %v346
      %v514 = vpop.f32.mrb[0].mxu0
      %v515 = vadd.f32 %v466, %v514
      %v516 = vpop.f32.mrb[0].mxu0
      %v517 = vpop.f32.mrb[0].mxu0
      %v518 = vpop.f32.mrb[0].mxu0
      %519 = vdwg.mxu0
      %v520 = vpack.c.bf16 %v515, %v515
      %s521 = scalar_lea.vmem %s2, 48
      %v522 = vld [vmem:[%s521] sm:$0xf]
      %v523 = vld [vmem:[%s521 + $0x4] sm:$0xf]
      %v524 = vld [vmem:[%s521 + $0x8] sm:$0xf]
      %v525 = vld [vmem:[%s521 + $0xc] sm:$0xf]
      %v526 = vlaneseq
      %v527 = vshrl.u32 %v526, 7
      %v528 = vlaneseq
      %v529 = vand.u32 %v528, 127
      %vm530 = vcmp.ge.s32.totalorder %v527, %v529
      %v531 = vsel %vm530, 0.0, -1e+09
      %vm532 = vcmask 64512
      %v534 = vsel %vm532, %v388, 0
      %v537 = vsel %vm532, %v454, 0
      %539 = vmatprep.subr.bf16.mxu0 0
      %540 = vmatpush1.bf16.xpose.msra.mxu0 %v537
      %541 = vmatprep.subr.bf16.mxu0 0
      %542 = vmatpush1.bf16.xpose.msra.mxu0 0
      %543 = vmatprep.subr.bf16.mxu0 0
      %544 = vmatpush1.bf16.xpose.msra.mxu0 0
      %545 = vmatprep.subr.bf16.mxu0 0
      %546 = vmatpush1.bf16.xpose.msra.mxu0 0
      %547 = vmatprep.subr.bf16.mxu0 0
      %548 = vmatpush1.bf16.xpose.msra.mxu0 0
      %549 = vmatprep.subr.bf16.mxu0 0
      %550 = vmatpush1.bf16.xpose.msra.mxu0 0
      %551 = vmatprep.subr.bf16.mxu0 0
      %552 = vmatpush1.bf16.xpose.msra.mxu0 0
      %553 = vmatprep.subr.bf16.mxu0 0
      %554 = vmatpush1.bf16.xpose.msra.mxu0 0
      %555 = vmatprep.subr.bf16.mxu0 0
      %556 = vmatpush1.bf16.xpose.msra.mxu0 0
      %557 = vmatprep.subr.bf16.mxu0 0
      %558 = vmatpush1.bf16.xpose.msra.mxu0 0
      %559 = vmatprep.subr.bf16.mxu0 0
      %560 = vmatpush1.bf16.xpose.msra.mxu0 0
      %561 = vmatprep.subr.bf16.mxu0 0
      %562 = vmatpush1.bf16.xpose.msra.mxu0 0
      %563 = vmatprep.subr.bf16.mxu0 0
      %564 = vmatpush1.bf16.xpose.msra.mxu0 0
      %565 = vmatprep.subr.bf16.mxu0 0
      %566 = vmatpush1.bf16.xpose.msra.mxu0 0
      %567 = vmatprep.subr.bf16.mxu0 0
      %568 = vmatpush1.bf16.xpose.msra.mxu0 0
      %569 = vmatprep.subr.bf16.mxu0 0
      %570 = vmatpush1.bf16.xpose.msra.mxu0 0
      %571 = vmatprep.mubr.bf16.mxu0 0
      %572 = vmatmul.mubr.bf16.gmra.mrb[0].mxu0 %v534
      %v573 = vpop.f32.mrb[0].mxu0
      %v574 = vadd.f32 %v531, %v573
      %v575 = vpop.f32.mrb[0].mxu0
      %v576 = vpop.f32.mrb[0].mxu0
      %v577 = vpop.f32.mrb[0].mxu0
      %578 = vdwg.mxu0
      %v579 = vsel %vm532, %v574, -inf
      %580 = vmax.xlane.f32.xlu0 %v579
      %v581 = vpop.xlane.xlu0 %580
      %v582 = vsub.f32 %v574, %v581
      %v583 = vmul.f32 %v582, 1.442695
      %v584 = vpow.pop %v583
      %v585 = vsel %vm532, %v584, 0.0
      %586 = vadd.xlane.f32.xlu0 %v585
      %v587 = vpop.xlane.xlu0 %586
      %v588 = vrcp.pop %v587
      %v589 = vmul.f32 %v584, %v588
      %v590 = vpack.c.bf16 %v589, %v589
      %v592 = vsel %vm532, %v590, 0
      %vm594 = vcmask 1043456
      %v596 = vsel %vm594, %v520, 0
      %598 = vmatprep.subr.bf16.mxu0 0
      %599 = vmatpush1.bf16.msra.mxu0 %v596
      %600 = vmatprep.subr.bf16.mxu0 0
      %601 = vmatpush1.bf16.msra.mxu0 0
      %602 = vmatprep.subr.bf16.mxu0 0
      %603 = vmatpush1.bf16.msra.mxu0 0
      %604 = vmatprep.subr.bf16.mxu0 0
      %605 = vmatpush1.bf16.msra.mxu0 0
      %606 = vmatprep.subr.bf16.mxu0 0
      %607 = vmatpush1.bf16.msra.mxu0 0
      %608 = vmatprep.subr.bf16.mxu0 0
      %609 = vmatpush1.bf16.msra.mxu0 0
      %610 = vmatprep.subr.bf16.mxu0 0
      %611 = vmatpush1.bf16.msra.mxu0 0
      %612 = vmatprep.subr.bf16.mxu0 0
      %613 = vmatpush1.bf16.msra.mxu0 0
      %614 = vmatprep.subr.bf16.mxu0 0
      %615 = vmatpush1.bf16.msra.mxu0 0
      %616 = vmatprep.subr.bf16.mxu0 0
      %617 = vmatpush1.bf16.msra.mxu0 0
      %618 = vmatprep.subr.bf16.mxu0 0
      %619 = vmatpush1.bf16.msra.mxu0 0
      %620 = vmatprep.subr.bf16.mxu0 0
      %621 = vmatpush1.bf16.msra.mxu0 0
      %622 = vmatprep.subr.bf16.mxu0 0
      %623 = vmatpush1.bf16.msra.mxu0 0
      %624 = vmatprep.subr.bf16.mxu0 0
      %625 = vmatpush1.bf16.msra.mxu0 0
      %626 = vmatprep.subr.bf16.mxu0 0
      %627 = vmatpush1.bf16.msra.mxu0 0
      %628 = vmatprep.subr.bf16.mxu0 0
      %629 = vmatpush1.bf16.msra.mxu0 0
      %630 = vmatprep.mubr.bf16.mxu0 0
      %631 = vmatmul.mubr.bf16.gmra.mrb[0].mxu0 %v592
      %v632 = vpop.f32.mrb[0].mxu0
      %v633 = vadd.f32 0.0, %v632
      %v634 = vpop.f32.mrb[0].mxu0
      %v635 = vpop.f32.mrb[0].mxu0
      %v636 = vpop.f32.mrb[0].mxu0
      %637 = vdwg.mxu0
      %v638 = vpack.c.bf16 %v633, %v633
      %640 = vrot.lane.b32.xlu0 %v388, 120
      %v641 = vpop.permute.xlu0 %640
      %643 = vrot.lane.b32.xlu0 %v454, 120
      %v644 = vpop.permute.xlu0 %643
      %v646 = vsel %vm532, %v641, 0
      %v649 = vsel %vm532, %v644, 0
      %651 = vmatprep.subr.bf16.mxu0 0
      %652 = vmatpush1.bf16.xpose.msra.mxu0 %v649
      %653 = vmatprep.subr.bf16.mxu0 0
      %654 = vmatpush1.bf16.xpose.msra.mxu0 0
      %655 = vmatprep.subr.bf16.mxu0 0
      %656 = vmatpush1.bf16.xpose.msra.mxu0 0
      %657 = vmatprep.subr.bf16.mxu0 0
      %658 = vmatpush1.bf16.xpose.msra.mxu0 0
      %659 = vmatprep.subr.bf16.mxu0 0
      %660 = vmatpush1.bf16.xpose.msra.mxu0 0
      %661 = vmatprep.subr.bf16.mxu0 0
      %662 = vmatpush1.bf16.xpose.msra.mxu0 0
      %663 = vmatprep.subr.bf16.mxu0 0
      %664 = vmatpush1.bf16.xpose.msra.mxu0 0
      %665 = vmatprep.subr.bf16.mxu0 0
      %666 = vmatpush1.bf16.xpose.msra.mxu0 0
      %667 = vmatprep.subr.bf16.mxu0 0
      %668 = vmatpush1.bf16.xpose.msra.mxu0 0
      %669 = vmatprep.subr.bf16.mxu0 0
      %670 = vmatpush1.bf16.xpose.msra.mxu0 0
      %671 = vmatprep.subr.bf16.mxu0 0
      %672 = vmatpush1.bf16.xpose.msra.mxu0 0
      %673 = vmatprep.subr.bf16.mxu0 0
      %674 = vmatpush1.bf16.xpose.msra.mxu0 0
      %675 = vmatprep.subr.bf16.mxu0 0
      %676 = vmatpush1.bf16.xpose.msra.mxu0 0
      %677 = vmatprep.subr.bf16.mxu0 0
      %678 = vmatpush1.bf16.xpose.msra.mxu0 0
      %679 = vmatprep.subr.bf16.mxu0 0
      %680 = vmatpush1.bf16.xpose.msra.mxu0 0
      %681 = vmatprep.subr.bf16.mxu0 0
      %682 = vmatpush1.bf16.xpose.msra.mxu0 0
      %683 = vmatprep.mubr.bf16.mxu0 0
      %684 = vmatmul.mubr.bf16.gmra.mrb[0].mxu0 %v646
      %v685 = vpop.f32.mrb[0].mxu0
      %v686 = vadd.f32 %v531, %v685
      %v687 = vpop.f32.mrb[0].mxu0
      %v688 = vpop.f32.mrb[0].mxu0
      %v689 = vpop.f32.mrb[0].mxu0
      %690 = vdwg.mxu0
      %v691 = vsel %vm532, %v686, -inf
      %692 = vmax.xlane.f32.xlu0 %v691
      %v693 = vpop.xlane.xlu0 %692
      %v694 = vsub.f32 %v686, %v693
      %v695 = vmul.f32 %v694, 1.442695
      %v696 = vpow.pop %v695
      %v697 = vsel %vm532, %v696, 0.0
      %698 = vadd.xlane.f32.xlu0 %v697
      %v699 = vpop.xlane.xlu0 %698
      %v700 = vrcp.pop %v699
      %v701 = vmul.f32 %v696, %v700
      %v702 = vpack.c.bf16 %v701, %v701
      %704 = vrot.lane.b32.xlu0 %v520, 120
      %v705 = vpop.permute.xlu0 %704
      %v707 = vsel %vm532, %v702, 0
      %v710 = vsel %vm594, %v705, 0
      %712 = vmatprep.subr.bf16.mxu0 0
      %713 = vmatpush1.bf16.msra.mxu0 %v710
      %714 = vmatprep.subr.bf16.mxu0 0
      %715 = vmatpush1.bf16.msra.mxu0 0
      %716 = vmatprep.subr.bf16.mxu0 0
      %717 = vmatpush1.bf16.msra.mxu0 0
      %718 = vmatprep.subr.bf16.mxu0 0
      %719 = vmatpush1.bf16.msra.mxu0 0
      %720 = vmatprep.subr.bf16.mxu0 0
      %721 = vmatpush1.bf16.msra.mxu0 0
      %722 = vmatprep.subr.bf16.mxu0 0
      %723 = vmatpush1.bf16.msra.mxu0 0
      %724 = vmatprep.subr.bf16.mxu0 0
      %725 = vmatpush1.bf16.msra.mxu0 0
      %726 = vmatprep.subr.bf16.mxu0 0
      %727 = vmatpush1.bf16.msra.mxu0 0
      %728 = vmatprep.subr.bf16.mxu0 0
      %729 = vmatpush1.bf16.msra.mxu0 0
      %730 = vmatprep.subr.bf16.mxu0 0
      %731 = vmatpush1.bf16.msra.mxu0 0
      %732 = vmatprep.subr.bf16.mxu0 0
      %733 = vmatpush1.bf16.msra.mxu0 0
      %734 = vmatprep.subr.bf16.mxu0 0
      %735 = vmatpush1.bf16.msra.mxu0 0
      %736 = vmatprep.subr.bf16.mxu0 0
      %737 = vmatpush1.bf16.msra.mxu0 0
      %738 = vmatprep.subr.bf16.mxu0 0
      %739 = vmatpush1.bf16.msra.mxu0 0
      %740 = vmatprep.subr.bf16.mxu0 0
      %741 = vmatpush1.bf16.msra.mxu0 0
      %742 = vmatprep.subr.bf16.mxu0 0
      %743 = vmatpush1.bf16.msra.mxu0 0
      %744 = vmatprep.mubr.bf16.mxu0 0
      %745 = vmatmul.mubr.bf16.gmra.mrb[0].mxu0 %v707
      %v746 = vpop.f32.mrb[0].mxu0
      %v747 = vadd.f32 0.0, %v746
      %v748 = vpop.f32.mrb[0].mxu0
      %v749 = vpop.f32.mrb[0].mxu0
      %v750 = vpop.f32.mrb[0].mxu0
      %751 = vdwg.mxu0
      %v752 = vpack.c.bf16 %v747, %v747
      %v754 = vsel %vm532, %v752, 0
      %v757 = vsel %vm594, %v523, 0
      %759 = vmatprep.subr.bf16.mxu0 0
      %760 = vmatpush1.bf16.msra.mxu0 %v757
      %761 = vmatprep.subr.bf16.mxu0 0
      %762 = vmatpush1.bf16.msra.mxu0 0
      %763 = vmatprep.subr.bf16.mxu0 0
      %764 = vmatpush1.bf16.msra.mxu0 0
      %765 = vmatprep.subr.bf16.mxu0 0
      %766 = vmatpush1.bf16.msra.mxu0 0
      %767 = vmatprep.subr.bf16.mxu0 0
      %768 = vmatpush1.bf16.msra.mxu0 0
      %769 = vmatprep.subr.bf16.mxu0 0
      %770 = vmatpush1.bf16.msra.mxu0 0
      %771 = vmatprep.subr.bf16.mxu0 0
      %772 = vmatpush1.bf16.msra.mxu0 0
      %773 = vmatprep.subr.bf16.mxu0 0
      %774 = vmatpush1.bf16.msra.mxu0 0
      %775 = vmatprep.subr.bf16.mxu0 0
      %776 = vmatpush1.bf16.msra.mxu0 0
      %777 = vmatprep.subr.bf16.mxu0 0
      %778 = vmatpush1.bf16.msra.mxu0 0
      %779 = vmatprep.subr.bf16.mxu0 0
      %780 = vmatpush1.bf16.msra.mxu0 0
      %781 = vmatprep.subr.bf16.mxu0 0
      %782 = vmatpush1.bf16.msra.mxu0 0
      %783 = vmatprep.subr.bf16.mxu0 0
      %784 = vmatpush1.bf16.msra.mxu0 0
      %785 = vmatprep.subr.bf16.mxu0 0
      %786 = vmatpush1.bf16.msra.mxu0 0
      %787 = vmatprep.subr.bf16.mxu0 0
      %788 = vmatpush1.bf16.msra.mxu0 0
      %789 = vmatprep.subr.bf16.mxu0 0
      %790 = vmatpush1.bf16.msra.mxu0 0
      %791 = vmatprep.mubr.bf16.mxu0 0
      %792 = vmatmul.mubr.bf16.gmra.mrb[0].mxu0 %v754
      %v793 = vpop.f32.mrb[0].mxu0
      %v794 = vadd.f32 0.0, %v793
      %v795 = vpop.f32.mrb[0].mxu0
      %v796 = vpop.f32.mrb[0].mxu0
      %v797 = vpop.f32.mrb[0].mxu0
      %798 = vdwg.mxu0
      %v800 = vsel %vm532, %v638, 0
      %v803 = vsel %vm594, %v522, 0
      %805 = vmatprep.subr.bf16.mxu0 0
      %806 = vmatpush1.bf16.msra.mxu0 %v803
      %807 = vmatprep.subr.bf16.mxu0 0
      %808 = vmatpush1.bf16.msra.mxu0 0
      %809 = vmatprep.subr.bf16.mxu0 0
      %810 = vmatpush1.bf16.msra.mxu0 0
      %811 = vmatprep.subr.bf16.mxu0 0
      %812 = vmatpush1.bf16.msra.mxu0 0
      %813 = vmatprep.subr.bf16.mxu0 0
      %814 = vmatpush1.bf16.msra.mxu0 0
      %815 = vmatprep.subr.bf16.mxu0 0
      %816 = vmatpush1.bf16.msra.mxu0 0
      %817 = vmatprep.subr.bf16.mxu0 0
      %818 = vmatpush1.bf16.msra.mxu0 0
      %819 = vmatprep.subr.bf16.mxu0 0
      %820 = vmatpush1.bf16.msra.mxu0 0
      %821 = vmatprep.subr.bf16.mxu0 0
      %822 = vmatpush1.bf16.msra.mxu0 0
      %823 = vmatprep.subr.bf16.mxu0 0
      %824 = vmatpush1.bf16.msra.mxu0 0
      %825 = vmatprep.subr.bf16.mxu0 0
      %826 = vmatpush1.bf16.msra.mxu0 0
      %827 = vmatprep.subr.bf16.mxu0 0
      %828 = vmatpush1.bf16.msra.mxu0 0
      %829 = vmatprep.subr.bf16.mxu0 0
      %830 = vmatpush1.bf16.msra.mxu0 0
      %831 = vmatprep.subr.bf16.mxu0 0
      %832 = vmatpush1.bf16.msra.mxu0 0
      %833 = vmatprep.subr.bf16.mxu0 0
      %834 = vmatpush1.bf16.msra.mxu0 0
      %835 = vmatprep.subr.bf16.mxu0 0
      %836 = vmatpush1.bf16.msra.mxu0 0
      %837 = vmatprep.mubr.bf16.mxu0 0
      %838 = vmatmul.mubr.bf16.gmra.mrb[0].mxu0 %v800
      %v839 = vpop.f32.mrb[0].mxu0
      %v840 = vadd.f32 %v794, %v839
      %v841 = vpop.f32.mrb[0].mxu0
      %v842 = vpop.f32.mrb[0].mxu0
      %v843 = vpop.f32.mrb[0].mxu0
      %844 = vdwg.mxu0
      %845 = vrot.lane.b32.xlu0 %v388, 112
      %v846 = vpop.permute.xlu0 %845
      %847 = vrot.lane.b32.xlu0 %v454, 112
      %v848 = vpop.permute.xlu0 %847
      %v850 = vsel %vm532, %v846, 0
      %v853 = vsel %vm532, %v848, 0
      %855 = vmatprep.subr.bf16.mxu0 0
      %856 = vmatpush1.bf16.xpose.msra.mxu0 %v853
      %857 = vmatprep.subr.bf16.mxu0 0
      %858 = vmatpush1.bf16.xpose.msra.mxu0 0
      %859 = vmatprep.subr.bf16.mxu0 0
      %860 = vmatpush1.bf16.xpose.msra.mxu0 0
      %861 = vmatprep.subr.bf16.mxu0 0
      %862 = vmatpush1.bf16.xpose.msra.mxu0 0
      %863 = vmatprep.subr.bf16.mxu0 0
      %864 = vmatpush1.bf16.xpose.msra.mxu0 0
      %865 = vmatprep.subr.bf16.mxu0 0
      %866 = vmatpush1.bf16.xpose.msra.mxu0 0
      %867 = vmatprep.subr.bf16.mxu0 0
      %868 = vmatpush1.bf16.xpose.msra.mxu0 0
      %869 = vmatprep.subr.bf16.mxu0 0
      %870 = vmatpush1.bf16.xpose.msra.mxu0 0
      %871 = vmatprep.subr.bf16.mxu0 0
      %872 = vmatpush1.bf16.xpose.msra.mxu0 0
      %873 = vmatprep.subr.bf16.mxu0 0
      %874 = vmatpush1.bf16.xpose.msra.mxu0 0
      %875 = vmatprep.subr.bf16.mxu0 0
      %876 = vmatpush1.bf16.xpose.msra.mxu0 0
      %877 = vmatprep.subr.bf16.mxu0 0
      %878 = vmatpush1.bf16.xpose.msra.mxu0 0
      %879 = vmatprep.subr.bf16.mxu0 0
      %880 = vmatpush1.bf16.xpose.msra.mxu0 0
      %881 = vmatprep.subr.bf16.mxu0 0
      %882 = vmatpush1.bf16.xpose.msra.mxu0 0
      %883 = vmatprep.subr.bf16.mxu0 0
      %884 = vmatpush1.bf16.xpose.msra.mxu0 0
      %885 = vmatprep.subr.bf16.mxu0 0
      %886 = vmatpush1.bf16.xpose.msra.mxu0 0
      %887 = vmatprep.mubr.bf16.mxu0 0
      %888 = vmatmul.mubr.bf16.gmra.mrb[0].mxu0 %v850
      %v889 = vpop.f32.mrb[0].mxu0
      %v890 = vadd.f32 %v531, %v889
      %v891 = vpop.f32.mrb[0].mxu0
      %v892 = vpop.f32.mrb[0].mxu0
      %v893 = vpop.f32.mrb[0].mxu0
      %894 = vdwg.mxu0
      %v895 = vsel %vm532, %v890, -inf
      %896 = vmax.xlane.f32.xlu0 %v895
      %v897 = vpop.xlane.xlu0 %896
      %v898 = vsub.f32 %v890, %v897
      %v899 = vmul.f32 %v898, 1.442695
      %v900 = vpow.pop %v899
      %v901 = vsel %vm532, %v900, 0.0
      %902 = vadd.xlane.f32.xlu0 %v901
      %v903 = vpop.xlane.xlu0 %902
      %v904 = vrcp.pop %v903
      %v905 = vmul.f32 %v900, %v904
      %v906 = vpack.c.bf16 %v905, %v905
      %907 = vrot.lane.b32.xlu0 %v520, 112
      %v908 = vpop.permute.xlu0 %907
      %v910 = vsel %vm532, %v906, 0
      %v913 = vsel %vm594, %v908, 0
      %915 = vmatprep.subr.bf16.mxu0 0
      %916 = vmatpush1.bf16.msra.mxu0 %v913
      %917 = vmatprep.subr.bf16.mxu0 0
      %918 = vmatpush1.bf16.msra.mxu0 0
      %919 = vmatprep.subr.bf16.mxu0 0
      %920 = vmatpush1.bf16.msra.mxu0 0
      %921 = vmatprep.subr.bf16.mxu0 0
      %922 = vmatpush1.bf16.msra.mxu0 0
      %923 = vmatprep.subr.bf16.mxu0 0
      %924 = vmatpush1.bf16.msra.mxu0 0
      %925 = vmatprep.subr.bf16.mxu0 0
      %926 = vmatpush1.bf16.msra.mxu0 0
      %927 = vmatprep.subr.bf16.mxu0 0
      %928 = vmatpush1.bf16.msra.mxu0 0
      %929 = vmatprep.subr.bf16.mxu0 0
      %930 = vmatpush1.bf16.msra.mxu0 0
      %931 = vmatprep.subr.bf16.mxu0 0
      %932 = vmatpush1.bf16.msra.mxu0 0
      %933 = vmatprep.subr.bf16.mxu0 0
      %934 = vmatpush1.bf16.msra.mxu0 0
      %935 = vmatprep.subr.bf16.mxu0 0
      %936 = vmatpush1.bf16.msra.mxu0 0
      %937 = vmatprep.subr.bf16.mxu0 0
      %938 = vmatpush1.bf16.msra.mxu0 0
      %939 = vmatprep.subr.bf16.mxu0 0
      %940 = vmatpush1.bf16.msra.mxu0 0
      %941 = vmatprep.subr.bf16.mxu0 0
      %942 = vmatpush1.bf16.msra.mxu0 0
      %943 = vmatprep.subr.bf16.mxu0 0
      %944 = vmatpush1.bf16.msra.mxu0 0
      %945 = vmatprep.subr.bf16.mxu0 0
      %946 = vmatpush1.bf16.msra.mxu0 0
      %947 = vmatprep.mubr.bf16.mxu0 0
      %948 = vmatmul.mubr.bf16.gmra.mrb[0].mxu0 %v910
      %v949 = vpop.f32.mrb[0].mxu0
      %v950 = vadd.f32 0.0, %v949
      %v951 = vpop.f32.mrb[0].mxu0
      %v952 = vpop.f32.mrb[0].mxu0
      %v953 = vpop.f32.mrb[0].mxu0
      %954 = vdwg.mxu0
      %v955 = vpack.c.bf16 %v950, %v950
      %v957 = vsel %vm532, %v955, 0
      %v960 = vsel %vm594, %v524, 0
      %962 = vmatprep.subr.bf16.mxu0 0
      %963 = vmatpush1.bf16.msra.mxu0 %v960
      %964 = vmatprep.subr.bf16.mxu0 0
      %965 = vmatpush1.bf16.msra.mxu0 0
      %966 = vmatprep.subr.bf16.mxu0 0
      %967 = vmatpush1.bf16.msra.mxu0 0
      %968 = vmatprep.subr.bf16.mxu0 0
      %969 = vmatpush1.bf16.msra.mxu0 0
      %970 = vmatprep.subr.bf16.mxu0 0
      %971 = vmatpush1.bf16.msra.mxu0 0
      %972 = vmatprep.subr.bf16.mxu0 0
      %973 = vmatpush1.bf16.msra.mxu0 0
      %974 = vmatprep.subr.bf16.mxu0 0
      %975 = vmatpush1.bf16.msra.mxu0 0
      %976 = vmatprep.subr.bf16.mxu0 0
      %977 = vmatpush1.bf16.msra.mxu0 0
      %978 = vmatprep.subr.bf16.mxu0 0
      %979 = vmatpush1.bf16.msra.mxu0 0
      %980 = vmatprep.subr.bf16.mxu0 0
      %981 = vmatpush1.bf16.msra.mxu0 0
      %982 = vmatprep.subr.bf16.mxu0 0
      %983 = vmatpush1.bf16.msra.mxu0 0
      %984 = vmatprep.subr.bf16.mxu0 0
      %985 = vmatpush1.bf16.msra.mxu0 0
      %986 = vmatprep.subr.bf16.mxu0 0
      %987 = vmatpush1.bf16.msra.mxu0 0
      %988 = vmatprep.subr.bf16.mxu0 0
      %989 = vmatpush1.bf16.msra.mxu0 0
      %990 = vmatprep.subr.bf16.mxu0 0
      %991 = vmatpush1.bf16.msra.mxu0 0
      %992 = vmatprep.subr.bf16.mxu0 0
      %993 = vmatpush1.bf16.msra.mxu0 0
      %994 = vmatprep.mubr.bf16.mxu0 0
      %995 = vmatmul.mubr.bf16.gmra.mrb[0].mxu0 %v957
      %v996 = vpop.f32.mrb[0].mxu0
      %v997 = vadd.f32 0.0, %v996
      %v998 = vpop.f32.mrb[0].mxu0
      %v999 = vpop.f32.mrb[0].mxu0
      %v1000 = vpop.f32.mrb[0].mxu0
      %1001 = vdwg.mxu0
      %v1002 = vadd.f32 %v840, %v997
      %1003 = vrot.lane.b32.xlu0 %v388, 104
      %v1004 = vpop.permute.xlu0 %1003
      %1005 = vrot.lane.b32.xlu0 %v454, 104
      %v1006 = vpop.permute.xlu0 %1005
      %v1008 = vsel %vm532, %v1004, 0
      %v1011 = vsel %vm532, %v1006, 0
      %1013 = vmatprep.subr.bf16.mxu0 0
      %1014 = vmatpush1.bf16.xpose.msra.mxu0 %v1011
      %1015 = vmatprep.subr.bf16.mxu0 0
      %1016 = vmatpush1.bf16.xpose.msra.mxu0 0
      %1017 = vmatprep.subr.bf16.mxu0 0
      %1018 = vmatpush1.bf16.xpose.msra.mxu0 0
      %1019 = vmatprep.subr.bf16.mxu0 0
      %1020 = vmatpush1.bf16.xpose.msra.mxu0 0
      %1021 = vmatprep.subr.bf16.mxu0 0
      %1022 = vmatpush1.bf16.xpose.msra.mxu0 0
      %1023 = vmatprep.subr.bf16.mxu0 0
      %1024 = vmatpush1.bf16.xpose.msra.mxu0 0
      %1025 = vmatprep.subr.bf16.mxu0 0
      %1026 = vmatpush1.bf16.xpose.msra.mxu0 0
      %1027 = vmatprep.subr.bf16.mxu0 0
      %1028 = vmatpush1.bf16.xpose.msra.mxu0 0
      %1029 = vmatprep.subr.bf16.mxu0 0
      %1030 = vmatpush1.bf16.xpose.msra.mxu0 0
      %1031 = vmatprep.subr.bf16.mxu0 0
      %1032 = vmatpush1.bf16.xpose.msra.mxu0 0
      %1033 = vmatprep.subr.bf16.mxu0 0
      %1034 = vmatpush1.bf16.xpose.msra.mxu0 0
      %1035 = vmatprep.subr.bf16.mxu0 0
      %1036 = vmatpush1.bf16.xpose.msra.mxu0 0
      %1037 = vmatprep.subr.bf16.mxu0 0
      %1038 = vmatpush1.bf16.xpose.msra.mxu0 0
      %1039 = vmatprep.subr.bf16.mxu0 0
      %1040 = vmatpush1.bf16.xpose.msra.mxu0 0
      %1041 = vmatprep.subr.bf16.mxu0 0
      %1042 = vmatpush1.bf16.xpose.msra.mxu0 0
      %1043 = vmatprep.subr.bf16.mxu0 0
      %1044 = vmatpush1.bf16.xpose.msra.mxu0 0
      %1045 = vmatprep.mubr.bf16.mxu0 0
      %1046 = vmatmul.mubr.bf16.gmra.mrb[0].mxu0 %v1008
      %v1047 = vpop.f32.mrb[0].mxu0
      %v1048 = vadd.f32 %v531, %v1047
      %v1049 = vpop.f32.mrb[0].mxu0
      %v1050 = vpop.f32.mrb[0].mxu0
      %v1051 = vpop.f32.mrb[0].mxu0
      %1052 = vdwg.mxu0
      %v1053 = vsel %vm532, %v1048, -inf
      %1054 = vmax.xlane.f32.xlu0 %v1053
      %v1055 = vpop.xlane.xlu0 %1054
      %v1056 = vsub.f32 %v1048, %v1055
      %v1057 = vmul.f32 %v1056, 1.442695
      %v1058 = vpow.pop %v1057
      %v1059 = vsel %vm532, %v1058, 0.0
      %1060 = vadd.xlane.f32.xlu0 %v1059
      %v1061 = vpop.xlane.xlu0 %1060
      %v1062 = vrcp.pop %v1061
      %v1063 = vmul.f32 %v1058, %v1062
      %v1064 = vpack.c.bf16 %v1063, %v1063
      %1065 = vrot.lane.b32.xlu0 %v520, 104
      %v1066 = vpop.permute.xlu0 %1065
      %v1068 = vsel %vm532, %v1064, 0
      %v1071 = vsel %vm594, %v1066, 0
      %1073 = vmatprep.subr.bf16.mxu0 0
      %1074 = vmatpush1.bf16.msra.mxu0 %v1071
      %1075 = vmatprep.subr.bf16.mxu0 0
      %1076 = vmatpush1.bf16.msra.mxu0 0
      %1077 = vmatprep.subr.bf16.mxu0 0
      %1078 = vmatpush1.bf16.msra.mxu0 0
      %1079 = vmatprep.subr.bf16.mxu0 0
      %1080 = vmatpush1.bf16.msra.mxu0 0
      %1081 = vmatprep.subr.bf16.mxu0 0
      %1082 = vmatpush1.bf16.msra.mxu0 0
      %1083 = vmatprep.subr.bf16.mxu0 0
      %1084 = vmatpush1.bf16.msra.mxu0 0
      %1085 = vmatprep.subr.bf16.mxu0 0
      %1086 = vmatpush1.bf16.msra.mxu0 0
      %1087 = vmatprep.subr.bf16.mxu0 0
      %1088 = vmatpush1.bf16.msra.mxu0 0
      %1089 = vmatprep.subr.bf16.mxu0 0
      %1090 = vmatpush1.bf16.msra.mxu0 0
      %1091 = vmatprep.subr.bf16.mxu0 0
      %1092 = vmatpush1.bf16.msra.mxu0 0
      %1093 = vmatprep.subr.bf16.mxu0 0
      %1094 = vmatpush1.bf16.msra.mxu0 0
      %1095 = vmatprep.subr.bf16.mxu0 0
      %1096 = vmatpush1.bf16.msra.mxu0 0
      %1097 = vmatprep.subr.bf16.mxu0 0
      %1098 = vmatpush1.bf16.msra.mxu0 0
      %1099 = vmatprep.subr.bf16.mxu0 0
      %1100 = vmatpush1.bf16.msra.mxu0 0
      %1101 = vmatprep.subr.bf16.mxu0 0
      %1102 = vmatpush1.bf16.msra.mxu0 0
      %1103 = vmatprep.subr.bf16.mxu0 0
      %1104 = vmatpush1.bf16.msra.mxu0 0
      %1105 = vmatprep.mubr.bf16.mxu0 0
      %1106 = vmatmul.mubr.bf16.gmra.mrb[0].mxu0 %v1068
      %v1107 = vpop.f32.mrb[0].mxu0
      %v1108 = vadd.f32 0.0, %v1107
      %v1109 = vpop.f32.mrb[0].mxu0
      %v1110 = vpop.f32.mrb[0].mxu0
      %v1111 = vpop.f32.mrb[0].mxu0
      %1112 = vdwg.mxu0
      %v1113 = vpack.c.bf16 %v1108, %v1108
      %v1115 = vsel %vm532, %v1113, 0
      %v1118 = vsel %vm594, %v525, 0
      %1120 = vmatprep.subr.bf16.mxu0 0
      %1121 = vmatpush1.bf16.msra.mxu0 %v1118
      %1122 = vmatprep.subr.bf16.mxu0 0
      %1123 = vmatpush1.bf16.msra.mxu0 0
      %1124 = vmatprep.subr.bf16.mxu0 0
      %1125 = vmatpush1.bf16.msra.mxu0 0
      %1126 = vmatprep.subr.bf16.mxu0 0
      %1127 = vmatpush1.bf16.msra.mxu0 0
      %1128 = vmatprep.subr.bf16.mxu0 0
      %1129 = vmatpush1.bf16.msra.mxu0 0
      %1130 = vmatprep.subr.bf16.mxu0 0
      %1131 = vmatpush1.bf16.msra.mxu0 0
      %1132 = vmatprep.subr.bf16.mxu0 0
      %1133 = vmatpush1.bf16.msra.mxu0 0
      %1134 = vmatprep.subr.bf16.mxu0 0
      %1135 = vmatpush1.bf16.msra.mxu0 0
      %1136 = vmatprep.subr.bf16.mxu0 0
      %1137 = vmatpush1.bf16.msra.mxu0 0
      %1138 = vmatprep.subr.bf16.mxu0 0
      %1139 = vmatpush1.bf16.msra.mxu0 0
      %1140 = vmatprep.subr.bf16.mxu0 0
      %1141 = vmatpush1.bf16.msra.mxu0 0
      %1142 = vmatprep.subr.bf16.mxu0 0
      %1143 = vmatpush1.bf16.msra.mxu0 0
      %1144 = vmatprep.subr.bf16.mxu0 0
      %1145 = vmatpush1.bf16.msra.mxu0 0
      %1146 = vmatprep.subr.bf16.mxu0 0
      %1147 = vmatpush1.bf16.msra.mxu0 0
      %1148 = vmatprep.subr.bf16.mxu0 0
      %1149 = vmatpush1.bf16.msra.mxu0 0
      %1150 = vmatprep.subr.bf16.mxu0 0
      %1151 = vmatpush1.bf16.msra.mxu0 0
      %1152 = vmatprep.mubr.bf16.mxu0 0
      %1153 = vmatmul.mubr.bf16.gmra.mrb[0].mxu0 %v1115
      %v1154 = vpop.f32.mrb[0].mxu0
      %v1155 = vadd.f32 0.0, %v1154
      %v1156 = vpop.f32.mrb[0].mxu0
      %v1157 = vpop.f32.mrb[0].mxu0
      %v1158 = vpop.f32.mrb[0].mxu0
      %1159 = vdwg.mxu0
      %v1160 = vadd.f32 %v1002, %v1155
      %s1161 = scalar_lea.vmem %s3, 3
      %v1162 = vld [vmem:[%s1161] sm:$0x1]
      %v1164 = vlaneseq
      %v1165 = vshrl.u32 %v1164, 7
      %v1166 = vsub.s32 0, %v1165
      %v1167 = vrot.slane %v1162, %v1166
      %v1169 = vadd.f32 %v1160, %v1167
      %v1170 = vunpack.c.l.bf16 %v319
      %v1171 = vadd.f32 %v1169, %v1170
      %v1172 = vld [vmem:[%s6] sm:$0x1]
      %v1173 = vld [vmem:[%s7] sm:$0x1]
      %v1174 = vsel %vm344, %v1171, 0.0
      %1175 = vadd.xlane.f32.xlu0 %v1174
      %v1176 = vpop.xlane.xlu0 %1175
      %v1177 = vrcp.pop 32.0
      %v1178 = vmul.f32 %v1176, %v1177
      %v1179 = vsub.f32 %v1171, %v1178
      %v1180 = vmul.f32 %v1179, %v1179
      %v1181 = vsel %vm344, %v1180, 0.0
      %1182 = vadd.xlane.f32.xlu0 %v1181
      %v1183 = vpop.xlane.xlu0 %1182
      %v1184 = vmul.f32 %v1183, %v1177
      %v1185 = vadd.f32 %v1184, 1e-05
      %v1186 = vrsqrt.pop %v1185
      %v1187 = vmul.f32 %v1179, %v1186
      %v1189 = vlaneseq
      %v1190 = vshrl.u32 %v1189, 7
      %v1191 = vsub.s32 0, %v1190
      %v1192 = vrot.slane %v1172, %v1191
      %v1194 = vmul.f32 %v1187, %v1192
      %v1196 = vlaneseq
      %v1197 = vshrl.u32 %v1196, 7
      %v1198 = vsub.s32 0, %v1197
      %v1199 = vrot.slane %v1173, %v1198
      %v1201 = vadd.f32 %v1194, %v1199
      %v1202 = vpack.c.bf16 %v1201, %v1201
      %v1203 = vld [vmem:[%s4] sm:$0xf]
      %v1204 = vld [vmem:[%s4 + $0x4] sm:$0xf]
      %v1205 = vld [vmem:[%s4 + $0x8] sm:$0xf]
      %v1206 = vld [vmem:[%s4 + $0xc] sm:$0xf]
      %v1207 = vld [vmem:[%s5] sm:$0x1]
      %v1209 = vlaneseq
      %v1210 = vshrl.u32 %v1209, 7
      %v1211 = vsub.s32 0, %v1210
      %v1212 = vrot.slane %v1207, %v1211
      %v1218 = vunpack.c.l.b16 %v1203
      %v1219 = vunpack.c.l.b16 %v1204
      %v1220 = vunpack.c.l.b16 %v1205
      %v1221 = vunpack.c.l.b16 %v1206
      %v1222 = vpack.c.b16 %v1219, %v1218
      %v1223 = vpack.c.b16 %v1221, %v1220
      %v1227 = vsel %vm344, %v1202, 0
      %1229 = vmatprep.subr.bf16.mxu0 0
      %1230 = vmatpush1.bf16.msra.mxu0 %v1222
      %1231 = vmatprep.subr.bf16.mxu0 0
      %1232 = vmatpush1.bf16.msra.mxu0 %v1223
      %1233 = vmatprep.subr.bf16.mxu0 0
      %1234 = vmatpush1.bf16.msra.mxu0 0
      %1235 = vmatprep.subr.bf16.mxu0 0
      %1236 = vmatpush1.bf16.msra.mxu0 0
      %1237 = vmatprep.subr.bf16.mxu0 0
      %1238 = vmatpush1.bf16.msra.mxu0 0
      %1239 = vmatprep.subr.bf16.mxu0 0
      %1240 = vmatpush1.bf16.msra.mxu0 0
      %1241 = vmatprep.subr.bf16.mxu0 0
      %1242 = vmatpush1.bf16.msra.mxu0 0
      %1243 = vmatprep.subr.bf16.mxu0 0
      %1244 = vmatpush1.bf16.msra.mxu0 0
      %1245 = vmatprep.subr.bf16.mxu0 0
      %1246 = vmatpush1.bf16.msra.mxu0 0
      %1247 = vmatprep.subr.bf16.mxu0 0
      %1248 = vmatpush1.bf16.msra.mxu0 0
      %1249 = vmatprep.subr.bf16.mxu0 0
      %1250 = vmatpush1.bf16.msra.mxu0 0
      %1251 = vmatprep.subr.bf16.mxu0 0
      %1252 = vmatpush1.bf16.msra.mxu0 0
      %1253 = vmatprep.subr.bf16.mxu0 0
      %1254 = vmatpush1.bf16.msra.mxu0 0
      %1255 = vmatprep.subr.bf16.mxu0 0
      %1256 = vmatpush1.bf16.msra.mxu0 0
      %1257 = vmatprep.subr.bf16.mxu0 0
      %1258 = vmatpush1.bf16.msra.mxu0 0
      %1259 = vmatprep.subr.bf16.mxu0 0
      %1260 = vmatpush1.bf16.msra.mxu0 0
      %1261 = vmatprep.mubr.bf16.mxu0 0
      %1262 = vmatmul.mubr.bf16.gmra.mrb[0].mxu0 %v1227
      %v1263 = vpop.f32.mrb[0].mxu0
      %v1264 = vadd.f32 %v1212, %v1263
      %v1265 = vpop.f32.mrb[0].mxu0
      %v1266 = vpop.f32.mrb[0].mxu0
      %v1267 = vpop.f32.mrb[0].mxu0
      %1268 = vdwg.mxu0
      %v1269 = vpack.c.bf16 %v1264, %v1264
      %s1270 = scalar_lea.vmem %s4, 16
      %v1271 = vld [vmem:[%s1270] sm:$0xf]
      %v1272 = vld [vmem:[%s1270 + $0x4] sm:$0xf]
      %v1273 = vld [vmem:[%s1270 + $0x8] sm:$0xf]
      %v1274 = vld [vmem:[%s1270 + $0xc] sm:$0xf]
      %s1275 = scalar_lea.vmem %s5, 1
      %v1276 = vld [vmem:[%s1275] sm:$0x1]
      %v1278 = vlaneseq
      %v1279 = vshrl.u32 %v1278, 7
      %v1280 = vsub.s32 0, %v1279
      %v1281 = vrot.slane %v1276, %v1280
      %v1287 = vunpack.c.l.b16 %v1271
      %v1288 = vunpack.c.l.b16 %v1272
      %v1289 = vunpack.c.l.b16 %v1273
      %v1290 = vunpack.c.l.b16 %v1274
      %v1291 = vpack.c.b16 %v1288, %v1287
      %v1292 = vpack.c.b16 %v1290, %v1289
      %v1296 = vsel %vm344, %v320, 0
      %1298 = vmatprep.subr.bf16.mxu0 0
      %1299 = vmatpush1.bf16.msra.mxu0 %v1291
      %1300 = vmatprep.subr.bf16.mxu0 0
      %1301 = vmatpush1.bf16.msra.mxu0 %v1292
      %1302 = vmatprep.subr.bf16.mxu0 0
      %1303 = vmatpush1.bf16.msra.mxu0 0
      %1304 = vmatprep.subr.bf16.mxu0 0
      %1305 = vmatpush1.bf16.msra.mxu0 0
      %1306 = vmatprep.subr.bf16.mxu0 0
      %1307 = vmatpush1.bf16.msra.mxu0 0
      %1308 = vmatprep.subr.bf16.mxu0 0
      %1309 = vmatpush1.bf16.msra.mxu0 0
      %1310 = vmatprep.subr.bf16.mxu0 0
      %1311 = vmatpush1.bf16.msra.mxu0 0
      %1312 = vmatprep.subr.bf16.mxu0 0
      %1313 = vmatpush1.bf16.msra.mxu0 0
      %1314 = vmatprep.subr.bf16.mxu0 0
      %1315 = vmatpush1.bf16.msra.mxu0 0
      %1316 = vmatprep.subr.bf16.mxu0 0
      %1317 = vmatpush1.bf16.msra.mxu0 0
      %1318 = vmatprep.subr.bf16.mxu0 0
      %1319 = vmatpush1.bf16.msra.mxu0 0
      %1320 = vmatprep.subr.bf16.mxu0 0
      %1321 = vmatpush1.bf16.msra.mxu0 0
      %1322 = vmatprep.subr.bf16.mxu0 0
      %1323 = vmatpush1.bf16.msra.mxu0 0
      %1324 = vmatprep.subr.bf16.mxu0 0
      %1325 = vmatpush1.bf16.msra.mxu0 0
      %1326 = vmatprep.subr.bf16.mxu0 0
      %1327 = vmatpush1.bf16.msra.mxu0 0
      %1328 = vmatprep.subr.bf16.mxu0 0
      %1329 = vmatpush1.bf16.msra.mxu0 0
      %1330 = vmatprep.mubr.bf16.mxu0 0
      %1331 = vmatmul.mubr.bf16.gmra.mrb[0].mxu0 %v1296
      %v1332 = vpop.f32.mrb[0].mxu0
      %v1333 = vadd.f32 %v1281, %v1332
      %v1334 = vpop.f32.mrb[0].mxu0
      %v1335 = vpop.f32.mrb[0].mxu0
      %v1336 = vpop.f32.mrb[0].mxu0
      %1337 = vdwg.mxu0
      %v1338 = vpack.c.bf16 %v1333, %v1333
      %s1339 = scalar_lea.vmem %s4, 32
      %v1340 = vld [vmem:[%s1339] sm:$0xf]
      %v1341 = vld [vmem:[%s1339 + $0x4] sm:$0xf]
      %v1342 = vld [vmem:[%s1339 + $0x8] sm:$0xf]
      %v1343 = vld [vmem:[%s1339 + $0xc] sm:$0xf]
      %s1344 = scalar_lea.vmem %s5, 2
      %v1345 = vld [vmem:[%s1344] sm:$0x1]
      %v1347 = vlaneseq
      %v1348 = vshrl.u32 %v1347, 7
      %v1349 = vsub.s32 0, %v1348
      %v1350 = vrot.slane %v1345, %v1349
      %v1356 = vunpack.c.l.b16 %v1340
      %v1357 = vunpack.c.l.b16 %v1341
      %v1358 = vunpack.c.l.b16 %v1342
      %v1359 = vunpack.c.l.b16 %v1343
      %v1360 = vpack.c.b16 %v1357, %v1356
      %v1361 = vpack.c.b16 %v1359, %v1358
      %1364 = vmatprep.subr.bf16.mxu0 0
      %1365 = vmatpush1.bf16.msra.mxu0 %v1360
      %1366 = vmatprep.subr.bf16.mxu0 0
      %1367 = vmatpush1.bf16.msra.mxu0 %v1361
      %1368 = vmatprep.subr.bf16.mxu0 0
      %1369 = vmatpush1.bf16.msra.mxu0 0
      %1370 = vmatprep.subr.bf16.mxu0 0
      %1371 = vmatpush1.bf16.msra.mxu0 0
      %1372 = vmatprep.subr.bf16.mxu0 0
      %1373 = vmatpush1.bf16.msra.mxu0 0
      %1374 = vmatprep.subr.bf16.mxu0 0
      %1375 = vmatpush1.bf16.msra.mxu0 0
      %1376 = vmatprep.subr.bf16.mxu0 0
      %1377 = vmatpush1.bf16.msra.mxu0 0
      %1378 = vmatprep.subr.bf16.mxu0 0
      %1379 = vmatpush1.bf16.msra.mxu0 0
      %1380 = vmatprep.subr.bf16.mxu0 0
      %1381 = vmatpush1.bf16.msra.mxu0 0
      %1382 = vmatprep.subr.bf16.mxu0 0
      %1383 = vmatpush1.bf16.msra.mxu0 0
      %1384 = vmatprep.subr.bf16.mxu0 0
      %1385 = vmatpush1.bf16.msra.mxu0 0
      %1386 = vmatprep.subr.bf16.mxu0 0
      %1387 = vmatpush1.bf16.msra.mxu0 0
      %1388 = vmatprep.subr.bf16.mxu0 0
      %1389 = vmatpush1.bf16.msra.mxu0 0
      %1390 = vmatprep.subr.bf16.mxu0 0
      %1391 = vmatpush1.bf16.msra.mxu0 0
      %1392 = vmatprep.subr.bf16.mxu0 0
      %1393 = vmatpush1.bf16.msra.mxu0 0
      %1394 = vmatprep.subr.bf16.mxu0 0
      %1395 = vmatpush1.bf16.msra.mxu0 0
      %1396 = vmatprep.mubr.bf16.mxu0 0
      %1397 = vmatmul.mubr.bf16.gmra.mrb[0].mxu0 %v1296
      %v1398 = vpop.f32.mrb[0].mxu0
      %v1399 = vadd.f32 %v1350, %v1398
      %v1400 = vpop.f32.mrb[0].mxu0
      %v1401 = vpop.f32.mrb[0].mxu0
      %v1402 = vpop.f32.mrb[0].mxu0
      %1403 = vdwg.mxu0
      %v1404 = vpack.c.bf16 %v1399, %v1399
      %s1405 = scalar_lea.vmem %s4, 48
      %v1406 = vld [vmem:[%s1405] sm:$0xf]
      %v1407 = vld [vmem:[%s1405 + $0x4] sm:$0xf]
      %v1408 = vld [vmem:[%s1405 + $0x8] sm:$0xf]
      %v1409 = vld [vmem:[%s1405 + $0xc] sm:$0xf]
      %v1411 = vsel %vm532, %v1269, 0
      %v1414 = vsel %vm532, %v1338, 0
      %1416 = vmatprep.subr.bf16.mxu0 0
      %1417 = vmatpush1.bf16.xpose.msra.mxu0 %v1414
      %1418 = vmatprep.subr.bf16.mxu0 0
      %1419 = vmatpush1.bf16.xpose.msra.mxu0 0
      %1420 = vmatprep.subr.bf16.mxu0 0
      %1421 = vmatpush1.bf16.xpose.msra.mxu0 0
      %1422 = vmatprep.subr.bf16.mxu0 0
      %1423 = vmatpush1.bf16.xpose.msra.mxu0 0
      %1424 = vmatprep.subr.bf16.mxu0 0
      %1425 = vmatpush1.bf16.xpose.msra.mxu0 0
      %1426 = vmatprep.subr.bf16.mxu0 0
      %1427 = vmatpush1.bf16.xpose.msra.mxu0 0
      %1428 = vmatprep.subr.bf16.mxu0 0
      %1429 = vmatpush1.bf16.xpose.msra.mxu0 0
      %1430 = vmatprep.subr.bf16.mxu0 0
      %1431 = vmatpush1.bf16.xpose.msra.mxu0 0
      %1432 = vmatprep.subr.bf16.mxu0 0
      %1433 = vmatpush1.bf16.xpose.msra.mxu0 0
      %1434 = vmatprep.subr.bf16.mxu0 0
      %1435 = vmatpush1.bf16.xpose.msra.mxu0 0
      %1436 = vmatprep.subr.bf16.mxu0 0
      %1437 = vmatpush1.bf16.xpose.msra.mxu0 0
      %1438 = vmatprep.subr.bf16.mxu0 0
      %1439 = vmatpush1.bf16.xpose.msra.mxu0 0
      %1440 = vmatprep.subr.bf16.mxu0 0
      %1441 = vmatpush1.bf16.xpose.msra.mxu0 0
      %1442 = vmatprep.subr.bf16.mxu0 0
      %1443 = vmatpush1.bf16.xpose.msra.mxu0 0
      %1444 = vmatprep.subr.bf16.mxu0 0
      %1445 = vmatpush1.bf16.xpose.msra.mxu0 0
      %1446 = vmatprep.subr.bf16.mxu0 0
      %1447 = vmatpush1.bf16.xpose.msra.mxu0 0
      %1448 = vmatprep.mubr.bf16.mxu0 0
      %1449 = vmatmul.mubr.bf16.gmra.mrb[0].mxu0 %v1411
      %v1450 = vpop.f32.mrb[0].mxu0
      %v1451 = vadd.f32 0.0, %v1450
      %v1452 = vpop.f32.mrb[0].mxu0
      %v1453 = vpop.f32.mrb[0].mxu0
      %v1454 = vpop.f32.mrb[0].mxu0
      %1455 = vdwg.mxu0
      %v1456 = vsel %vm532, %v1451, -inf
      %1457 = vmax.xlane.f32.xlu0 %v1456
      %v1458 = vpop.xlane.xlu0 %1457
      %v1459 = vsub.f32 %v1451, %v1458
      %v1460 = vmul.f32 %v1459, 1.442695
      %v1461 = vpow.pop %v1460
      %v1462 = vsel %vm532, %v1461, 0.0
      %1463 = vadd.xlane.f32.xlu0 %v1462
      %v1464 = vpop.xlane.xlu0 %1463
      %v1465 = vrcp.pop %v1464
      %v1466 = vmul.f32 %v1461, %v1465
      %v1467 = vpack.c.bf16 %v1466, %v1466
      %v1469 = vsel %vm532, %v1467, 0
      %v1472 = vsel %vm594, %v1404, 0
      %1474 = vmatprep.subr.bf16.mxu0 0
      %1475 = vmatpush1.bf16.msra.mxu0 %v1472
      %1476 = vmatprep.subr.bf16.mxu0 0
      %1477 = vmatpush1.bf16.msra.mxu0 0
      %1478 = vmatprep.subr.bf16.mxu0 0
      %1479 = vmatpush1.bf16.msra.mxu0 0
      %1480 = vmatprep.subr.bf16.mxu0 0
      %1481 = vmatpush1.bf16.msra.mxu0 0
      %1482 = vmatprep.subr.bf16.mxu0 0
      %1483 = vmatpush1.bf16.msra.mxu0 0
      %1484 = vmatprep.subr.bf16.mxu0 0
      %1485 = vmatpush1.bf16.msra.mxu0 0
      %1486 = vmatprep.subr.bf16.mxu0 0
      %1487 = vmatpush1.bf16.msra.mxu0 0
      %1488 = vmatprep.subr.bf16.mxu0 0
      %1489 = vmatpush1.bf16.msra.mxu0 0
      %1490 = vmatprep.subr.bf16.mxu0 0
      %1491 = vmatpush1.bf16.msra.mxu0 0
      %1492 = vmatprep.subr.bf16.mxu0 0
      %1493 = vmatpush1.bf16.msra.mxu0 0
      %1494 = vmatprep.subr.bf16.mxu0 0
      %1495 = vmatpush1.bf16.msra.mxu0 0
      %1496 = vmatprep.subr.bf16.mxu0 0
      %1497 = vmatpush1.bf16.msra.mxu0 0
      %1498 = vmatprep.subr.bf16.mxu0 0
      %1499 = vmatpush1.bf16.msra.mxu0 0
      %1500 = vmatprep.subr.bf16.mxu0 0
      %1501 = vmatpush1.bf16.msra.mxu0 0
      %1502 = vmatprep.subr.bf16.mxu0 0
      %1503 = vmatpush1.bf16.msra.mxu0 0
      %1504 = vmatprep.subr.bf16.mxu0 0
      %1505 = vmatpush1.bf16.msra.mxu0 0
      %1506 = vmatprep.mubr.bf16.mxu0 0
      %1507 = vmatmul.mubr.bf16.gmra.mrb[0].mxu0 %v1469
      %v1508 = vpop.f32.mrb[0].mxu0
      %v1509 = vadd.f32 0.0, %v1508
      %v1510 = vpop.f32.mrb[0].mxu0
      %v1511 = vpop.f32.mrb[0].mxu0
      %v1512 = vpop.f32.mrb[0].mxu0
      %1513 = vdwg.mxu0
      %v1514 = vpack.c.bf16 %v1509, %v1509
      %1516 = vrot.lane.b32.xlu0 %v1269, 120
      %v1517 = vpop.permute.xlu0 %1516
      %1519 = vrot.lane.b32.xlu0 %v1338, 120
      %v1520 = vpop.permute.xlu0 %1519
      %v1522 = vsel %vm532, %v1517, 0
      %v1525 = vsel %vm532, %v1520, 0
      %1527 = vmatprep.subr.bf16.mxu0 0
      %1528 = vmatpush1.bf16.xpose.msra.mxu0 %v1525
      %1529 = vmatprep.subr.bf16.mxu0 0
      %1530 = vmatpush1.bf16.xpose.msra.mxu0 0
      %1531 = vmatprep.subr.bf16.mxu0 0
      %1532 = vmatpush1.bf16.xpose.msra.mxu0 0
      %1533 = vmatprep.subr.bf16.mxu0 0
      %1534 = vmatpush1.bf16.xpose.msra.mxu0 0
      %1535 = vmatprep.subr.bf16.mxu0 0
      %1536 = vmatpush1.bf16.xpose.msra.mxu0 0
      %1537 = vmatprep.subr.bf16.mxu0 0
      %1538 = vmatpush1.bf16.xpose.msra.mxu0 0
      %1539 = vmatprep.subr.bf16.mxu0 0
      %1540 = vmatpush1.bf16.xpose.msra.mxu0 0
      %1541 = vmatprep.subr.bf16.mxu0 0
      %1542 = vmatpush1.bf16.xpose.msra.mxu0 0
      %1543 = vmatprep.subr.bf16.mxu0 0
      %1544 = vmatpush1.bf16.xpose.msra.mxu0 0
      %1545 = vmatprep.subr.bf16.mxu0 0
      %1546 = vmatpush1.bf16.xpose.msra.mxu0 0
      %1547 = vmatprep.subr.bf16.mxu0 0
      %1548 = vmatpush1.bf16.xpose.msra.mxu0 0
      %1549 = vmatprep.subr.bf16.mxu0 0
      %1550 = vmatpush1.bf16.xpose.msra.mxu0 0
      %1551 = vmatprep.subr.bf16.mxu0 0
      %1552 = vmatpush1.bf16.xpose.msra.mxu0 0
      %1553 = vmatprep.subr.bf16.mxu0 0
      %1554 = vmatpush1.bf16.xpose.msra.mxu0 0
      %1555 = vmatprep.subr.bf16.mxu0 0
      %1556 = vmatpush1.bf16.xpose.msra.mxu0 0
      %1557 = vmatprep.subr.bf16.mxu0 0
      %1558 = vmatpush1.bf16.xpose.msra.mxu0 0
      %1559 = vmatprep.mubr.bf16.mxu0 0
      %1560 = vmatmul.mubr.bf16.gmra.mrb[0].mxu0 %v1522
      %v1561 = vpop.f32.mrb[0].mxu0
      %v1562 = vadd.f32 0.0, %v1561
      %v1563 = vpop.f32.mrb[0].mxu0
      %v1564 = vpop.f32.mrb[0].mxu0
      %v1565 = vpop.f32.mrb[0].mxu0
      %1566 = vdwg.mxu0
      %v1567 = vsel %vm532, %v1562, -inf
      %1568 = vmax.xlane.f32.xlu0 %v1567
      %v1569 = vpop.xlane.xlu0 %1568
      %v1570 = vsub.f32 %v1562, %v1569
      %v1571 = vmul.f32 %v1570, 1.442695
      %v1572 = vpow.pop %v1571
      %v1573 = vsel %vm532, %v1572, 0.0
      %1574 = vadd.xlane.f32.xlu0 %v1573
      %v1575 = vpop.xlane.xlu0 %1574
      %v1576 = vrcp.pop %v1575
      %v1577 = vmul.f32 %v1572, %v1576
      %v1578 = vpack.c.bf16 %v1577, %v1577
      %1580 = vrot.lane.b32.xlu0 %v1404, 120
      %v1581 = vpop.permute.xlu0 %1580
      %v1583 = vsel %vm532, %v1578, 0
      %v1586 = vsel %vm594, %v1581, 0
      %1588 = vmatprep.subr.bf16.mxu0 0
      %1589 = vmatpush1.bf16.msra.mxu0 %v1586
      %1590 = vmatprep.subr.bf16.mxu0 0
      %1591 = vmatpush1.bf16.msra.mxu0 0
      %1592 = vmatprep.subr.bf16.mxu0 0
      %1593 = vmatpush1.bf16.msra.mxu0 0
      %1594 = vmatprep.subr.bf16.mxu0 0
      %1595 = vmatpush1.bf16.msra.mxu0 0
      %1596 = vmatprep.subr.bf16.mxu0 0
      %1597 = vmatpush1.bf16.msra.mxu0 0
      %1598 = vmatprep.subr.bf16.mxu0 0
      %1599 = vmatpush1.bf16.msra.mxu0 0
      %1600 = vmatprep.subr.bf16.mxu0 0
      %1601 = vmatpush1.bf16.msra.mxu0 0
      %1602 = vmatprep.subr.bf16.mxu0 0
      %1603 = vmatpush1.bf16.msra.mxu0 0
      %1604 = vmatprep.subr.bf16.mxu0 0
      %1605 = vmatpush1.bf16.msra.mxu0 0
      %1606 = vmatprep.subr.bf16.mxu0 0
      %1607 = vmatpush1.bf16.msra.mxu0 0
      %1608 = vmatprep.subr.bf16.mxu0 0
      %1609 = vmatpush1.bf16.msra.mxu0 0
      %1610 = vmatprep.subr.bf16.mxu0 0
      %1611 = vmatpush1.bf16.msra.mxu0 0
      %1612 = vmatprep.subr.bf16.mxu0 0
      %1613 = vmatpush1.bf16.msra.mxu0 0
      %1614 = vmatprep.subr.bf16.mxu0 0
      %1615 = vmatpush1.bf16.msra.mxu0 0
      %1616 = vmatprep.subr.bf16.mxu0 0
      %1617 = vmatpush1.bf16.msra.mxu0 0
      %1618 = vmatprep.subr.bf16.mxu0 0
      %1619 = vmatpush1.bf16.msra.mxu0 0
      %1620 = vmatprep.mubr.bf16.mxu0 0
      %1621 = vmatmul.mubr.bf16.gmra.mrb[0].mxu0 %v1583
      %v1622 = vpop.f32.mrb[0].mxu0
      %v1623 = vadd.f32 0.0, %v1622
      %v1624 = vpop.f32.mrb[0].mxu0
      %v1625 = vpop.f32.mrb[0].mxu0
      %v1626 = vpop.f32.mrb[0].mxu0
      %1627 = vdwg.mxu0
      %v1628 = vpack.c.bf16 %v1623, %v1623
      %v1630 = vsel %vm532, %v1628, 0
      %v1633 = vsel %vm594, %v1407, 0
      %1635 = vmatprep.subr.bf16.mxu0 0
      %1636 = vmatpush1.bf16.msra.mxu0 %v1633
      %1637 = vmatprep.subr.bf16.mxu0 0
      %1638 = vmatpush1.bf16.msra.mxu0 0
      %1639 = vmatprep.subr.bf16.mxu0 0
      %1640 = vmatpush1.bf16.msra.mxu0 0
      %1641 = vmatprep.subr.bf16.mxu0 0
      %1642 = vmatpush1.bf16.msra.mxu0 0
      %1643 = vmatprep.subr.bf16.mxu0 0
      %1644 = vmatpush1.bf16.msra.mxu0 0
      %1645 = vmatprep.subr.bf16.mxu0 0
      %1646 = vmatpush1.bf16.msra.mxu0 0
      %1647 = vmatprep.subr.bf16.mxu0 0
      %1648 = vmatpush1.bf16.msra.mxu0 0
      %1649 = vmatprep.subr.bf16.mxu0 0
      %1650 = vmatpush1.bf16.msra.mxu0 0
      %1651 = vmatprep.subr.bf16.mxu0 0
      %1652 = vmatpush1.bf16.msra.mxu0 0
      %1653 = vmatprep.subr.bf16.mxu0 0
      %1654 = vmatpush1.bf16.msra.mxu0 0
      %1655 = vmatprep.subr.bf16.mxu0 0
      %1656 = vmatpush1.bf16.msra.mxu0 0
      %1657 = vmatprep.subr.bf16.mxu0 0
      %1658 = vmatpush1.bf16.msra.mxu0 0
      %1659 = vmatprep.subr.bf16.mxu0 0
      %1660 = vmatpush1.bf16.msra.mxu0 0
      %1661 = vmatprep.subr.bf16.mxu0 0
      %1662 = vmatpush1.bf16.msra.mxu0 0
      %1663 = vmatprep.subr.bf16.mxu0 0
      %1664 = vmatpush1.bf16.msra.mxu0 0
      %1665 = vmatprep.subr.bf16.mxu0 0
      %1666 = vmatpush1.bf16.msra.mxu0 0
      %1667 = vmatprep.mubr.bf16.mxu0 0
      %1668 = vmatmul.mubr.bf16.gmra.mrb[0].mxu0 %v1630
      %v1669 = vpop.f32.mrb[0].mxu0
      %v1670 = vadd.f32 0.0, %v1669
      %v1671 = vpop.f32.mrb[0].mxu0
      %v1672 = vpop.f32.mrb[0].mxu0
      %v1673 = vpop.f32.mrb[0].mxu0
      %1674 = vdwg.mxu0
      %v1676 = vsel %vm532, %v1514, 0
      %v1679 = vsel %vm594, %v1406, 0
      %1681 = vmatprep.subr.bf16.mxu0 0
      %1682 = vmatpush1.bf16.msra.mxu0 %v1679
      %1683 = vmatprep.subr.bf16.mxu0 0
      %1684 = vmatpush1.bf16.msra.mxu0 0
      %1685 = vmatprep.subr.bf16.mxu0 0
      %1686 = vmatpush1.bf16.msra.mxu0 0
      %1687 = vmatprep.subr.bf16.mxu0 0
      %1688 = vmatpush1.bf16.msra.mxu0 0
      %1689 = vmatprep.subr.bf16.mxu0 0
      %1690 = vmatpush1.bf16.msra.mxu0 0
      %1691 = vmatprep.subr.bf16.mxu0 0
      %1692 = vmatpush1.bf16.msra.mxu0 0
      %1693 = vmatprep.subr.bf16.mxu0 0
      %1694 = vmatpush1.bf16.msra.mxu0 0
      %1695 = vmatprep.subr.bf16.mxu0 0
      %1696 = vmatpush1.bf16.msra.mxu0 0
      %1697 = vmatprep.subr.bf16.mxu0 0
      %1698 = vmatpush1.bf16.msra.mxu0 0
      %1699 = vmatprep.subr.bf16.mxu0 0
      %1700 = vmatpush1.bf16.msra.mxu0 0
      %1701 = vmatprep.subr.bf16.mxu0 0
      %1702 = vmatpush1.bf16.msra.mxu0 0
      %1703 = vmatprep.subr.bf16.mxu0 0
      %1704 = vmatpush1.bf16.msra.mxu0 0
      %1705 = vmatprep.subr.bf16.mxu0 0
      %1706 = vmatpush1.bf16.msra.mxu0 0
      %1707 = vmatprep.subr.bf16.mxu0 0
      %1708 = vmatpush1.bf16.msra.mxu0 0
      %1709 = vmatprep.subr.bf16.mxu0 0
      %1710 = vmatpush1.bf16.msra.mxu0 0
      %1711 = vmatprep.subr.bf16.mxu0 0
      %1712 = vmatpush1.bf16.msra.mxu0 0
      %1713 = vmatprep.mubr.bf16.mxu0 0
      %1714 = vmatmul.mubr.bf16.gmra.mrb[0].mxu0 %v1676
      %v1715 = vpop.f32.mrb[0].mxu0
      %v1716 = vadd.f32 %v1670, %v1715
      %v1717 = vpop.f32.mrb[0].mxu0
      %v1718 = vpop.f32.mrb[0].mxu0
      %v1719 = vpop.f32.mrb[0].mxu0
      %1720 = vdwg.mxu0
      %1721 = vrot.lane.b32.xlu0 %v1269, 112
      %v1722 = vpop.permute.xlu0 %1721
      %1723 = vrot.lane.b32.xlu0 %v1338, 112
      %v1724 = vpop.permute.xlu0 %1723
      %v1726 = vsel %vm532, %v1722, 0
      %v1729 = vsel %vm532, %v1724, 0
      %1731 = vmatprep.subr.bf16.mxu0 0
      %1732 = vmatpush1.bf16.xpose.msra.mxu0 %v1729
      %1733 = vmatprep.subr.bf16.mxu0 0
      %1734 = vmatpush1.bf16.xpose.msra.mxu0 0
      %1735 = vmatprep.subr.bf16.mxu0 0
      %1736 = vmatpush1.bf16.xpose.msra.mxu0 0
      %1737 = vmatprep.subr.bf16.mxu0 0
      %1738 = vmatpush1.bf16.xpose.msra.mxu0 0
      %1739 = vmatprep.subr.bf16.mxu0 0
      %1740 = vmatpush1.bf16.xpose.msra.mxu0 0
      %1741 = vmatprep.subr.bf16.mxu0 0
      %1742 = vmatpush1.bf16.xpose.msra.mxu0 0
      %1743 = vmatprep.subr.bf16.mxu0 0
      %1744 = vmatpush1.bf16.xpose.msra.mxu0 0
      %1745 = vmatprep.subr.bf16.mxu0 0
      %1746 = vmatpush1.bf16.xpose.msra.mxu0 0
      %1747 = vmatprep.subr.bf16.mxu0 0
      %1748 = vmatpush1.bf16.xpose.msra.mxu0 0
      %1749 = vmatprep.subr.bf16.mxu0 0
      %1750 = vmatpush1.bf16.xpose.msra.mxu0 0
      %1751 = vmatprep.subr.bf16.mxu0 0
      %1752 = vmatpush1.bf16.xpose.msra.mxu0 0
      %1753 = vmatprep.subr.bf16.mxu0 0
      %1754 = vmatpush1.bf16.xpose.msra.mxu0 0
      %1755 = vmatprep.subr.bf16.mxu0 0
      %1756 = vmatpush1.bf16.xpose.msra.mxu0 0
      %1757 = vmatprep.subr.bf16.mxu0 0
      %1758 = vmatpush1.bf16.xpose.msra.mxu0 0
      %1759 = vmatprep.subr.bf16.mxu0 0
      %1760 = vmatpush1.bf16.xpose.msra.mxu0 0
      %1761 = vmatprep.subr.bf16.mxu0 0
      %1762 = vmatpush1.bf16.xpose.msra.mxu0 0
      %1763 = vmatprep.mubr.bf16.mxu0 0
      %1764 = vmatmul.mubr.bf16.gmra.mrb[0].mxu0 %v1726
      %v1765 = vpop.f32.mrb[0].mxu0
      %v1766 = vadd.f32 0.0, %v1765
      %v1767 = vpop.f32.mrb[0].mxu0
      %v1768 = vpop.f32.mrb[0].mxu0
      %v1769 = vpop.f32.mrb[0].mxu0
      %1770 = vdwg.mxu0
      %v1771 = vsel %vm532, %v1766, -inf
      %1772 = vmax.xlane.f32.xlu0 %v1771
      %v1773 = vpop.xlane.xlu0 %1772
      %v1774 = vsub.f32 %v1766, %v1773
      %v1775 = vmul.f32 %v1774, 1.442695
      %v1776 = vpow.pop %v1775
      %v1777 = vsel %vm532, %v1776, 0.0
      %1778 = vadd.xlane.f32.xlu0 %v1777
      %v1779 = vpop.xlane.xlu0 %1778
      %v1780 = vrcp.pop %v1779
      %v1781 = vmul.f32 %v1776, %v1780
      %v1782 = vpack.c.bf16 %v1781, %v1781
      %1783 = vrot.lane.b32.xlu0 %v1404, 112
      %v1784 = vpop.permute.xlu0 %1783
      %v1786 = vsel %vm532, %v1782, 0
      %v1789 = vsel %vm594, %v1784, 0
      %1791 = vmatprep.subr.bf16.mxu0 0
      %1792 = vmatpush1.bf16.msra.mxu0 %v1789
      %1793 = vmatprep.subr.bf16.mxu0 0
      %1794 = vmatpush1.bf16.msra.mxu0 0
      %1795 = vmatprep.subr.bf16.mxu0 0
      %1796 = vmatpush1.bf16.msra.mxu0 0
      %1797 = vmatprep.subr.bf16.mxu0 0
      %1798 = vmatpush1.bf16.msra.mxu0 0
      %1799 = vmatprep.subr.bf16.mxu0 0
      %1800 = vmatpush1.bf16.msra.mxu0 0
      %1801 = vmatprep.subr.bf16.mxu0 0
      %1802 = vmatpush1.bf16.msra.mxu0 0
      %1803 = vmatprep.subr.bf16.mxu0 0
      %1804 = vmatpush1.bf16.msra.mxu0 0
      %1805 = vmatprep.subr.bf16.mxu0 0
      %1806 = vmatpush1.bf16.msra.mxu0 0
      %1807 = vmatprep.subr.bf16.mxu0 0
      %1808 = vmatpush1.bf16.msra.mxu0 0
      %1809 = vmatprep.subr.bf16.mxu0 0
      %1810 = vmatpush1.bf16.msra.mxu0 0
      %1811 = vmatprep.subr.bf16.mxu0 0
      %1812 = vmatpush1.bf16.msra.mxu0 0
      %1813 = vmatprep.subr.bf16.mxu0 0
      %1814 = vmatpush1.bf16.msra.mxu0 0
      %1815 = vmatprep.subr.bf16.mxu0 0
      %1816 = vmatpush1.bf16.msra.mxu0 0
      %1817 = vmatprep.subr.bf16.mxu0 0
      %1818 = vmatpush1.bf16.msra.mxu0 0
      %1819 = vmatprep.subr.bf16.mxu0 0
      %1820 = vmatpush1.bf16.msra.mxu0 0
      %1821 = vmatprep.subr.bf16.mxu0 0
      %1822 = vmatpush1.bf16.msra.mxu0 0
      %1823 = vmatprep.mubr.bf16.mxu0 0
      %1824 = vmatmul.mubr.bf16.gmra.mrb[0].mxu0 %v1786
      %v1825 = vpop.f32.mrb[0].mxu0
      %v1826 = vadd.f32 0.0, %v1825
      %v1827 = vpop.f32.mrb[0].mxu0
      %v1828 = vpop.f32.mrb[0].mxu0
      %v1829 = vpop.f32.mrb[0].mxu0
      %1830 = vdwg.mxu0
      %v1831 = vpack.c.bf16 %v1826, %v1826
      %v1833 = vsel %vm532, %v1831, 0
      %v1836 = vsel %vm594, %v1408, 0
      %1838 = vmatprep.subr.bf16.mxu0 0
      %1839 = vmatpush1.bf16.msra.mxu0 %v1836
      %1840 = vmatprep.subr.bf16.mxu0 0
      %1841 = vmatpush1.bf16.msra.mxu0 0
      %1842 = vmatprep.subr.bf16.mxu0 0
      %1843 = vmatpush1.bf16.msra.mxu0 0
      %1844 = vmatprep.subr.bf16.mxu0 0
      %1845 = vmatpush1.bf16.msra.mxu0 0
      %1846 = vmatprep.subr.bf16.mxu0 0
      %1847 = vmatpush1.bf16.msra.mxu0 0
      %1848 = vmatprep.subr.bf16.mxu0 0
      %1849 = vmatpush1.bf16.msra.mxu0 0
      %1850 = vmatprep.subr.bf16.mxu0 0
      %1851 = vmatpush1.bf16.msra.mxu0 0
      %1852 = vmatprep.subr.bf16.mxu0 0
      %1853 = vmatpush1.bf16.msra.mxu0 0
      %1854 = vmatprep.subr.bf16.mxu0 0
      %1855 = vmatpush1.bf16.msra.mxu0 0
      %1856 = vmatprep.subr.bf16.mxu0 0
      %1857 = vmatpush1.bf16.msra.mxu0 0
      %1858 = vmatprep.subr.bf16.mxu0 0
      %1859 = vmatpush1.bf16.msra.mxu0 0
      %1860 = vmatprep.subr.bf16.mxu0 0
      %1861 = vmatpush1.bf16.msra.mxu0 0
      %1862 = vmatprep.subr.bf16.mxu0 0
      %1863 = vmatpush1.bf16.msra.mxu0 0
      %1864 = vmatprep.subr.bf16.mxu0 0
      %1865 = vmatpush1.bf16.msra.mxu0 0
      %1866 = vmatprep.subr.bf16.mxu0 0
      %1867 = vmatpush1.bf16.msra.mxu0 0
      %1868 = vmatprep.subr.bf16.mxu0 0
      %1869 = vmatpush1.bf16.msra.mxu0 0
      %1870 = vmatprep.mubr.bf16.mxu0 0
      %1871 = vmatmul.mubr.bf16.gmra.mrb[0].mxu0 %v1833
      %v1872 = vpop.f32.mrb[0].mxu0
      %v1873 = vadd.f32 0.0, %v1872
      %v1874 = vpop.f32.mrb[0].mxu0
      %v1875 = vpop.f32.mrb[0].mxu0
      %v1876 = vpop.f32.mrb[0].mxu0
      %1877 = vdwg.mxu0
      %v1878 = vadd.f32 %v1716, %v1873
      %1879 = vrot.lane.b32.xlu0 %v1269, 104
      %v1880 = vpop.permute.xlu0 %1879
      %1881 = vrot.lane.b32.xlu0 %v1338, 104
      %v1882 = vpop.permute.xlu0 %1881
      %v1884 = vsel %vm532, %v1880, 0
      %v1887 = vsel %vm532, %v1882, 0
      %1889 = vmatprep.subr.bf16.mxu0 0
      %1890 = vmatpush1.bf16.xpose.msra.mxu0 %v1887
      %1891 = vmatprep.subr.bf16.mxu0 0
      %1892 = vmatpush1.bf16.xpose.msra.mxu0 0
      %1893 = vmatprep.subr.bf16.mxu0 0
      %1894 = vmatpush1.bf16.xpose.msra.mxu0 0
      %1895 = vmatprep.subr.bf16.mxu0 0
      %1896 = vmatpush1.bf16.xpose.msra.mxu0 0
      %1897 = vmatprep.subr.bf16.mxu0 0
      %1898 = vmatpush1.bf16.xpose.msra.mxu0 0
      %1899 = vmatprep.subr.bf16.mxu0 0
      %1900 = vmatpush1.bf16.xpose.msra.mxu0 0
      %1901 = vmatprep.subr.bf16.mxu0 0
      %1902 = vmatpush1.bf16.xpose.msra.mxu0 0
      %1903 = vmatprep.subr.bf16.mxu0 0
      %1904 = vmatpush1.bf16.xpose.msra.mxu0 0
      %1905 = vmatprep.subr.bf16.mxu0 0
      %1906 = vmatpush1.bf16.xpose.msra.mxu0 0
      %1907 = vmatprep.subr.bf16.mxu0 0
      %1908 = vmatpush1.bf16.xpose.msra.mxu0 0
      %1909 = vmatprep.subr.bf16.mxu0 0
      %1910 = vmatpush1.bf16.xpose.msra.mxu0 0
      %1911 = vmatprep.subr.bf16.mxu0 0
      %1912 = vmatpush1.bf16.xpose.msra.mxu0 0
      %1913 = vmatprep.subr.bf16.mxu0 0
      %1914 = vmatpush1.bf16.xpose.msra.mxu0 0
      %1915 = vmatprep.subr.bf16.mxu0 0
      %1916 = vmatpush1.bf16.xpose.msra.mxu0 0
      %1917 = vmatprep.subr.bf16.mxu0 0
      %1918 = vmatpush1.bf16.xpose.msra.mxu0 0
      %1919 = vmatprep.subr.bf16.mxu0 0
      %1920 = vmatpush1.bf16.xpose.msra.mxu0 0
      %1921 = vmatprep.mubr.bf16.mxu0 0
      %1922 = vmatmul.mubr.bf16.gmra.mrb[0].mxu0 %v1884
      %v1923 = vpop.f32.mrb[0].mxu0
      %v1924 = vadd.f32 0.0, %v1923
      %v1925 = vpop.f32.mrb[0].mxu0
      %v1926 = vpop.f32.mrb[0].mxu0
      %v1927 = vpop.f32.mrb[0].mxu0
      %1928 = vdwg.mxu0
      %v1929 = vsel %vm532, %v1924, -inf
      %1930 = vmax.xlane.f32.xlu0 %v1929
      %v1931 = vpop.xlane.xlu0 %1930
      %v1932 = vsub.f32 %v1924, %v1931
      %v1933 = vmul.f32 %v1932, 1.442695
      %v1934 = vpow.pop %v1933
      %v1935 = vsel %vm532, %v1934, 0.0
      %1936 = vadd.xlane.f32.xlu0 %v1935
      %v1937 = vpop.xlane.xlu0 %1936
      %v1938 = vrcp.pop %v1937
      %v1939 = vmul.f32 %v1934, %v1938
      %v1940 = vpack.c.bf16 %v1939, %v1939
      %1941 = vrot.lane.b32.xlu0 %v1404, 104
      %v1942 = vpop.permute.xlu0 %1941
      %v1944 = vsel %vm532, %v1940, 0
      %v1947 = vsel %vm594, %v1942, 0
      %1949 = vmatprep.subr.bf16.mxu0 0
      %1950 = vmatpush1.bf16.msra.mxu0 %v1947
      %1951 = vmatprep.subr.bf16.mxu0 0
      %1952 = vmatpush1.bf16.msra.mxu0 0
      %1953 = vmatprep.subr.bf16.mxu0 0
      %1954 = vmatpush1.bf16.msra.mxu0 0
      %1955 = vmatprep.subr.bf16.mxu0 0
      %1956 = vmatpush1.bf16.msra.mxu0 0
      %1957 = vmatprep.subr.bf16.mxu0 0
      %1958 = vmatpush1.bf16.msra.mxu0 0
      %1959 = vmatprep.subr.bf16.mxu0 0
      %1960 = vmatpush1.bf16.msra.mxu0 0
      %1961 = vmatprep.subr.bf16.mxu0 0
      %1962 = vmatpush1.bf16.msra.mxu0 0
      %1963 = vmatprep.subr.bf16.mxu0 0
      %1964 = vmatpush1.bf16.msra.mxu0 0
      %1965 = vmatprep.subr.bf16.mxu0 0
      %1966 = vmatpush1.bf16.msra.mxu0 0
      %1967 = vmatprep.subr.bf16.mxu0 0
      %1968 = vmatpush1.bf16.msra.mxu0 0
      %1969 = vmatprep.subr.bf16.mxu0 0
      %1970 = vmatpush1.bf16.msra.mxu0 0
      %1971 = vmatprep.subr.bf16.mxu0 0
      %1972 = vmatpush1.bf16.msra.mxu0 0
      %1973 = vmatprep.subr.bf16.mxu0 0
      %1974 = vmatpush1.bf16.msra.mxu0 0
      %1975 = vmatprep.subr.bf16.mxu0 0
      %1976 = vmatpush1.bf16.msra.mxu0 0
      %1977 = vmatprep.subr.bf16.mxu0 0
      %1978 = vmatpush1.bf16.msra.mxu0 0
      %1979 = vmatprep.subr.bf16.mxu0 0
      %1980 = vmatpush1.bf16.msra.mxu0 0
      %1981 = vmatprep.mubr.bf16.mxu0 0
      %1982 = vmatmul.mubr.bf16.gmra.mrb[0].mxu0 %v1944
      %v1983 = vpop.f32.mrb[0].mxu0
      %v1984 = vadd.f32 0.0, %v1983
      %v1985 = vpop.f32.mrb[0].mxu0
      %v1986 = vpop.f32.mrb[0].mxu0
      %v1987 = vpop.f32.mrb[0].mxu0
      %1988 = vdwg.mxu0
      %v1989 = vpack.c.bf16 %v1984, %v1984
      %v1991 = vsel %vm532, %v1989, 0
      %v1994 = vsel %vm594, %v1409, 0
      %1996 = vmatprep.subr.bf16.mxu0 0
      %1997 = vmatpush1.bf16.msra.mxu0 %v1994
      %1998 = vmatprep.subr.bf16.mxu0 0
      %1999 = vmatpush1.bf16.msra.mxu0 0
      %2000 = vmatprep.subr.bf16.mxu0 0
      %2001 = vmatpush1.bf16.msra.mxu0 0
      %2002 = vmatprep.subr.bf16.mxu0 0
      %2003 = vmatpush1.bf16.msra.mxu0 0
      %2004 = vmatprep.subr.bf16.mxu0 0
      %2005 = vmatpush1.bf16.msra.mxu0 0
      %2006 = vmatprep.subr.bf16.mxu0 0
      %2007 = vmatpush1.bf16.msra.mxu0 0
      %2008 = vmatprep.subr.bf16.mxu0 0
      %2009 = vmatpush1.bf16.msra.mxu0 0
      %2010 = vmatprep.subr.bf16.mxu0 0
      %2011 = vmatpush1.bf16.msra.mxu0 0
      %2012 = vmatprep.subr.bf16.mxu0 0
      %2013 = vmatpush1.bf16.msra.mxu0 0
      %2014 = vmatprep.subr.bf16.mxu0 0
      %2015 = vmatpush1.bf16.msra.mxu0 0
      %2016 = vmatprep.subr.bf16.mxu0 0
      %2017 = vmatpush1.bf16.msra.mxu0 0
      %2018 = vmatprep.subr.bf16.mxu0 0
      %2019 = vmatpush1.bf16.msra.mxu0 0
      %2020 = vmatprep.subr.bf16.mxu0 0
      %2021 = vmatpush1.bf16.msra.mxu0 0
      %2022 = vmatprep.subr.bf16.mxu0 0
      %2023 = vmatpush1.bf16.msra.mxu0 0
      %2024 = vmatprep.subr.bf16.mxu0 0
      %2025 = vmatpush1.bf16.msra.mxu0 0
      %2026 = vmatprep.subr.bf16.mxu0 0
      %2027 = vmatpush1.bf16.msra.mxu0 0
      %2028 = vmatprep.mubr.bf16.mxu0 0
      %2029 = vmatmul.mubr.bf16.gmra.mrb[0].mxu0 %v1991
      %v2030 = vpop.f32.mrb[0].mxu0
      %v2031 = vadd.f32 0.0, %v2030
      %v2032 = vpop.f32.mrb[0].mxu0
      %v2033 = vpop.f32.mrb[0].mxu0
      %v2034 = vpop.f32.mrb[0].mxu0
      %2035 = vdwg.mxu0
      %v2036 = vadd.f32 %v1878, %v2031
      %s2037 = scalar_lea.vmem %s5, 3
      %v2038 = vld [vmem:[%s2037] sm:$0x1]
      %v2040 = vlaneseq
      %v2041 = vshrl.u32 %v2040, 7
      %v2042 = vsub.s32 0, %v2041
      %v2043 = vrot.slane %v2038, %v2042
      %v2045 = vadd.f32 %v2036, %v2043
      %v2046 = vadd.f32 %v2045, %v1201
      %s2047 = scalar_lea.vmem %s6, 1
      %v2048 = vld [vmem:[%s2047] sm:$0x1]
      %s2049 = scalar_lea.vmem %s7, 1
      %v2050 = vld [vmem:[%s2049] sm:$0x1]
      %v2051 = vsel %vm344, %v2046, 0.0
      %2052 = vadd.xlane.f32.xlu0 %v2051
      %v2053 = vpop.xlane.xlu0 %2052
      %v2054 = vmul.f32 %v2053, %v1177
      %v2055 = vsub.f32 %v2046, %v2054
      %v2056 = vmul.f32 %v2055, %v2055
      %v2057 = vsel %vm344, %v2056, 0.0
      %2058 = vadd.xlane.f32.xlu0 %v2057
      %v2059 = vpop.xlane.xlu0 %2058
      %v2060 = vmul.f32 %v2059, %v1177
      %v2061 = vadd.f32 %v2060, 1e-05
      %v2062 = vrsqrt.pop %v2061
      %v2063 = vmul.f32 %v2055, %v2062
      %v2065 = vlaneseq
      %v2066 = vshrl.u32 %v2065, 7
      %v2067 = vsub.s32 0, %v2066
      %v2068 = vrot.slane %v2048, %v2067
      %v2070 = vmul.f32 %v2063, %v2068
      %v2072 = vlaneseq
      %v2073 = vshrl.u32 %v2072, 7
      %v2074 = vsub.s32 0, %v2073
      %v2075 = vrot.slane %v2050, %v2074
      %v2077 = vadd.f32 %v2070, %v2075
      %v2078 = vpack.c.bf16 %v2077, %v2077
      %vm2079 = vcmask 257024
      %2080 = vst.msk [vmem:[%s317] sm:$0xf] %vm2079, %v2078
      %p2081 = scmp.lt.s32.totalorder %s19, 1
      %s2082 = scalar_select %p2081, %s19, 1
      %s2083 = smul.addr %s2082, 4
      %s2084 = scalar_lea.vmem %s8, %s2083
      // Predicated region
      $region53: #{decoder_forward.5} parent=51 // pred_check
        %p2085 = pneg %p215
      $region54: #{decoder_forward.5} parent=51 // pred_check_branch
        %2087 = sbr.rel (%p2085) target = $region56
      $region55: #{decoder_forward.5} parent=51 // pred_region
        _
      $region56: #{decoder_forward.5} parent=51 // pred_fallthru
        _
    $region52: #{decoder_forward.5} parent=5 // pred_fallthru
      _
    %p2088 = scmp.le.s32.totalorder 2, %s14
    // Predicated region
    $region57: #{decoder_forward.5} parent=5 // pred_check
      %p2089 = pneg %p2088
    $region58: #{decoder_forward.5} parent=5 // pred_check_branch
      %2091 = sbr.rel (%p2089) target = $region60
    $region59: #{decoder_forward.5} parent=5 // pred_region
      %s2092 = ssub.s32 %s14, 2
      // Predicated region
      $region61: #{decoder_forward.5} parent=59 // pred_check
        %p2093 = pneg %p221
      $region62: #{decoder_forward.5} parent=59 // pred_check_branch
        %2095 = sbr.rel (%p2093) target = $region64
      $region63: #{decoder_forward.5} parent=59 // pred_region
        %p2096 = scmp.lt.s32.totalorder %s20, 1
        %s2097 = scalar_select %p2096, %s20, 1
        %s2098 = smul.addr %s2097, 4
        %s2099 = scalar_lea.vmem %s8, %s2098
      $region64: #{decoder_forward.5} parent=59 // pred_fallthru
        _
    $region60: #{decoder_forward.5} parent=5 // pred_fallthru
      _
  $region6: #{decoder_forward.5} parent=0 // loop_footer
    %s18 = sadd.s32 1, %s14
  $region7: #{decoder_forward.5} parent=0 // loop_footer_branch
    %13 = sbr.rel target = $region3
  $region8: #{decoder_forward.5} parent=0 // loop_exit
    _

</llo_original>
